<compile_context>
chip_gen: v7x
topology: tpu7x:2x2x1
jax: 0.10.0
libtpu: 0.0.40
codegen_flags: <defaults>
</compile_context>

<pallas_src>
import functools

import jax
import jax.numpy as jnp
import numpy as np
from jax import lax
from jax.experimental import pallas as pl
from jax.experimental.pallas import tpu as pltpu


# ----------------------------- Pallas kernel --------------------------------
def _shift_rows(a, off):
    """result[i] = a[i + off] if 0 <= i + off < n else 0  (off is a static int)."""
    if off == 0:
        return a
    pad = jnp.zeros((abs(off),) + a.shape[1:], a.dtype)
    if off > 0:
        return jnp.concatenate([a[off:], pad], axis=0)
    return jnp.concatenate([pad, a[:off]], axis=0)


def mixpool_kernel(xfull_ref, wcat_ref, w1_ref, wf2b_ref, out_ref, *, W, Cin):
    # xfull_ref : (BP, 9*Cin + 2)   [ im2col taps | ones | maxpool(m) ]
    # wcat_ref  : (9*Cin + 2, out_c + Ch)  BN-scale-folded [fmask-conv | conv2]
    #             weights; row 9*Cin = folded bias/shift, row 9*Cin+1 = 0.
    # w1_ref    : (9*Cin + 2, Ch)   same layout for conv1.
    # wf2b_ref  : (1, out_c + 1)    [ 1x1-conv weight row | bias ]
    # out_ref   : (BP, out_c)       [ conv1 | conv2 ] channel concat.
    BP, K = xfull_ref.shape
    Kc = K - 2                      # 9 * Cin
    Ch = w1_ref.shape[1]
    out_c = wf2b_ref.shape[1] - 1

    xfull = xfull_ref[...]

    # Fused 3x3 convs (fmask trunk || conv2): ONE MXU matmul; BN scale and conv
    # bias are folded into the weight matrix (bias enters via the ones column).
    y = jnp.dot(xfull, wcat_ref[...], preferred_element_type=jnp.float32)
    h = jnp.maximum(y[:, :out_c], 0.0)
    c2 = jnp.maximum(y[:, out_c:], 0.0)

    # 1x1 conv as VPU multiply + lane reduce.  sigmoid(z) > 0.5  <=>  z > 0.
    # NOTE: z>0 is threshold-sensitive to matmul rounding; default f32 matmul
    # precision was verified against the HIGHEST-precision reference at 2e-3.
    wf2b = wf2b_ref[...]
    z = jnp.sum(h * wf2b[:, :out_c], axis=-1, keepdims=True) + wf2b[:, out_c:]
    mpool = xfull[:, Kc + 1:Kc + 2]                     # pooled-mask column
    orval = jnp.logical_or(z > 0.0, mpool > 0.0).astype(jnp.float32)   # (BP, 1)

    # conv1 branch: conv3x3(x * or).  Mask the im2col columns directly: the
    # tap-(dh,dw) column of im2col(x*or) equals im2col(x)'s tap column times
    # `or` shifted by (dh-1)*W+(dw-1) pixels in flat (b,h,w) order.  Wherever
    # the shift is "wrong" (image edge / tile edge), the im2col entry is
    # already zero from the zero padding, so the product is still correct.
    w_trio = jnp.concatenate(
        [jnp.broadcast_to(_shift_rows(orval, dw - 1), (BP, Cin))
         for dw in range(3)], axis=-1)                                # (BP, 3*Cin)
    or_taps = jnp.concatenate(
        [_shift_rows(w_trio, (dh - 1) * W) for dh in range(3)], axis=-1)  # (BP, 9*Cin)
    or_full = jnp.concatenate(
        [or_taps, jnp.ones((BP, 2), jnp.float32)], axis=-1)   # ones col stays 1,
    #                                                          # mpool col hits a 0 weight row
    c1 = jnp.maximum(
        jnp.dot(xfull * or_full, w1_ref[...], preferred_element_type=jnp.float32),
        0.0)

    # torch.cat([x1, x2], dim=1): write branch results straight into out slices.
    out_ref[:, :Ch] = c1
    out_ref[:, Ch:] = c2


# ------------------------------- wrapper -------------------------------------
def _pick_batch_tile(n, cap=16):
    # Largest divisor of n that is <= cap while keeping >= 2 grid steps so the
    # "parallel" grid axis can be sharded across both v7x TensorCores.
    min_steps = 2 if n >= 2 else 1
    best = 1
    for b in range(1, min(n, cap) + 1):
        if n % b == 0 and n // b >= min_steps:
            best = b
    return best


def mixpool_forward(x_nchw, m_nchw, p, batch_tile=None):
    N, Cin, H, W = x_nchw.shape
    Hm, Wm = m_nchw.shape[2], m_nchw.shape[3]
    kh, kw = Hm // H, Wm // W
    P = H * W
    out_c = p["wf1"].shape[-1]
    Ch = p["w1"].shape[-1]
    Kc = 9 * Cin
    K = Kc + 2

    B = batch_tile if batch_tile is not None else _pick_batch_tile(N)
    assert N % B == 0
    BP = B * P

    # ---- layout prep in plain XLA (free relative to the kernel) -------------
    # TODO(synk): at production sizes on v5e the 9x im2col HBM amplification can
    # dominate; if so, move the im2col in-kernel (DMA x + halo) instead.
    x_nhwc = jnp.transpose(x_nchw, (0, 2, 3, 1)).astype(jnp.float32)
    xp = jnp.pad(x_nhwc, ((0, 0), (1, 1), (1, 1), (0, 0)))
    slabs = [xp[:, dh:dh + H, dw:dw + W, :]
             for dh in range(3) for dw in range(3)]
    xcol = jnp.concatenate(slabs, axis=-1).reshape(N * P, Kc)

    # MaxPool2d(m): the reduction is free in the surrounding XLA graph.
    mpool = m_nchw[:, 0].reshape(N, H, kh, W, kw).max(axis=(2, 4))
    mpool = mpool.reshape(N * P, 1).astype(jnp.float32)
    ones = jnp.ones((N * P, 1), jnp.float32)
    xfull = jnp.concatenate([xcol, ones, mpool], axis=-1)          # (N*P, K)

    # Fold BN scale into the weights, shift/bias into a bias row; fuse the
    # fmask-conv and conv2 weights along Cout (they share the same input).
    wf1_s = p["wf1"].reshape(Kc, out_c) * p["scf"]
    w2_s = p["w2"].reshape(Kc, Ch) * p["sc2"]
    w1_s = p["w1"].reshape(Kc, Ch) * p["sc1"]
    wcat = jnp.concatenate([
        jnp.concatenate([wf1_s, w2_s], axis=-1),                   # taps
        jnp.concatenate([p["shf"], p["sh2"]], axis=-1),            # bias row
        jnp.zeros((1, out_c + Ch), jnp.float32),                   # mpool row
    ], axis=0)                                                     # (K, out_c+Ch)
    w1a = jnp.concatenate(
        [w1_s, p["sh1"], jnp.zeros((1, Ch), jnp.float32)], axis=0)  # (K, Ch)
    wf2b = jnp.concatenate(
        [p["wf2"].reshape(1, out_c), p["bf2"].reshape(1, 1)], axis=-1)  # (1, out_c+1)

    kernel = functools.partial(mixpool_kernel, W=W, Cin=Cin)

    grid_spec = pltpu.PrefetchScalarGridSpec(
        num_scalar_prefetch=0,
        grid=(N // B,),
        in_specs=[
            pl.BlockSpec((BP, K), lambda n: (n, 0)),               # xfull
            pl.BlockSpec((K, out_c + Ch), lambda n: (0, 0)),       # fused weights
            pl.BlockSpec((K, Ch), lambda n: (0, 0)),               # conv1 weights
            pl.BlockSpec((1, out_c + 1), lambda n: (0, 0)),        # 1x1 w|b
        ],
        out_specs=pl.BlockSpec((BP, out_c), lambda n: (n, 0)),
    )

    out_flat = pl.pallas_call(
        kernel,
        out_shape=jax.ShapeDtypeStruct((N * P, out_c), jnp.float32),
        grid_spec=grid_spec,
        compiler_params=pltpu.CompilerParams(
            dimension_semantics=("parallel",),      # batch tiles independent
            vmem_limit_bytes=32 * 1024 * 1024),
    )(xfull, wcat, w1a, wf2b)

    out_nhwc = out_flat.reshape(N, H, W, out_c)
    return jnp.transpose(out_nhwc, (0, 3, 1, 2))   # back to NCHW


# --------------------- deterministic parameter init --------------------------
def init_params(in_c, out_c, key):
    Ch = out_c // 2
    ks = jax.random.split(key, 8)
    wf1 = 0.3 * jax.random.normal(ks[0], (3, 3, in_c, out_c), jnp.float32)
    bf1 = 0.1 * jax.random.normal(ks[1], (out_c,), jnp.float32)
    wf2 = 0.5 * jax.random.normal(ks[2], (out_c, 1), jnp.float32)
    bf2 = 0.1 * jax.random.normal(ks[3], (1,), jnp.float32)
    w1 = 0.3 * jax.random.normal(ks[4], (3, 3, in_c, Ch), jnp.float32)
    b1 = 0.1 * jax.random.normal(ks[5], (Ch,), jnp.float32)
    w2 = 0.3 * jax.random.normal(ks[6], (3, 3, in_c, Ch), jnp.float32)
    b2 = 0.1 * jax.random.normal(ks[7], (Ch,), jnp.float32)

    # Inference-mode BatchNorm (mean=0, var=1, gamma=1, beta=0, eps=1e-5) and
    # the conv bias, as per-channel scale/shift: y = conv*s + b*s.
    eps = 1e-5
    s = np.float32(1.0 / np.sqrt(1.0 + eps))
    return dict(
        wf1=wf1, scf=jnp.full((1, out_c), s, jnp.float32), shf=(bf1 * s)[None, :],
        wf2=wf2, bf2=bf2.reshape(1, 1),
        w1=w1, sc1=jnp.full((1, Ch), s, jnp.float32), sh1=(b1 * s)[None, :],
        w2=w2, sc2=jnp.full((1, Ch), s, jnp.float32), sh2=(b2 * s)[None, :],
    )


# --------------------------- pure-JAX reference ------------------------------
def _conv_bn_relu_ref(x_nhwc, w_hwio, scale, shift):
    y = lax.conv_general_dilated(
        x_nhwc, w_hwio, (1, 1), "SAME",
        dimension_numbers=("NHWC", "HWIO", "NHWC"),
        precision=lax.Precision.HIGHEST)
    return jnp.maximum(y * scale + shift, 0.0)


def mixpool_ref(x_nchw, m_nchw, p):
    x = jnp.transpose(x_nchw, (0, 2, 3, 1)).astype(jnp.float32)
    N, H, W, _ = x.shape
    kh, kw = m_nchw.shape[2] // H, m_nchw.shape[3] // W
    h = _conv_bn_relu_ref(x, p["wf1"], p["scf"], p["shf"])
    z = jnp.einsum("nhwc,cd->nhwd", h, p["wf2"],
                   precision=lax.Precision.HIGHEST) + p["bf2"][0, 0]
    fm = (z > 0.0).astype(jnp.float32)      # == (sigmoid(z) > 0.5)
    mp = m_nchw[:, 0].reshape(N, H, kh, W, kw).max(axis=(2, 4))[..., None]
    orv = jnp.logical_or(fm != 0.0, mp != 0.0).astype(jnp.float32)
    x1 = _conv_bn_relu_ref(x * orv, p["w1"], p["sc1"], p["sh1"])
    x2 = _conv_bn_relu_ref(x, p["w2"], p["sc2"], p["sh2"])
    out = jnp.concatenate([x1, x2], axis=-1)
    return jnp.transpose(out, (0, 3, 1, 2))


# ---------------------------------- main --------------------------------------
if __name__ == "__main__":
    in_c, out_c = 4, 8
    N, H, W = 2, 16, 16
    Hm, Wm = 32, 32            # m is a higher-resolution binary mask (pool 2x2)

    key = jax.random.PRNGKey(0)
    kx, km, kp = jax.random.split(key, 3)
    x = jax.random.normal(kx, (N, in_c, H, W), jnp.float32)
    m = (jax.random.uniform(km, (N, 1, Hm, Wm)) > 0.5).astype(jnp.float32)

    params = init_params(in_c, out_c, kp)

    out = jax.jit(mixpool_forward)(x, m, params)
    out = jax.block_until_ready(out)
    assert out.shape == (N, out_c, H, W)

    ref = mixpool_ref(x, m, params)
    np.testing.assert_allclose(np.asarray(out), np.asarray(ref),
                               rtol=2e-3, atol=2e-3)
    print("KERNEL_OK")
</pallas_src>

<mosaic_0001>
module attributes {stable_mosaic.version = 11 : i64} {
  func.func @mixpool_kernel(%arg0: i32, %arg1: memref<256x38xf32, #tpu.memory_space<vmem>>, %arg2: memref<38x12xf32, #tpu.memory_space<vmem>>, %arg3: memref<38x4xf32, #tpu.memory_space<vmem>>, %arg4: memref<1x9xf32, #tpu.memory_space<vmem>>, %arg5: memref<256x8xf32, #tpu.memory_space<vmem>>) attributes {dimension_semantics = [#tpu.dimension_semantics<parallel>], iteration_bounds = array<i64: 2>, scalar_prefetch = 0 : i64, scratch_operands = 0 : i64, tpu.core_type = #tpu.core_type<tc>, window_params = [{transform_indices = @transform_0, window_bounds = array<i64: 256, 38>}, {pipeline_mode = #tpu.pipeline_mode<synchronous>, transform_indices = @transform_1, window_bounds = array<i64: 38, 12>}, {pipeline_mode = #tpu.pipeline_mode<synchronous>, transform_indices = @transform_2, window_bounds = array<i64: 38, 4>}, {pipeline_mode = #tpu.pipeline_mode<synchronous>, transform_indices = @transform_3, window_bounds = array<i64: 1, 9>}, {transform_indices = @transform_4, window_bounds = array<i64: 256, 8>}]} {
    %c0 = arith.constant 0 : index
    %c0_0 = arith.constant 0 : index
    %0 = vector.load %arg1[%c0, %c0_0] : memref<256x38xf32, #tpu.memory_space<vmem>>, vector<256x38xf32>
    %c0_1 = arith.constant 0 : index
    %c0_2 = arith.constant 0 : index
    %1 = vector.load %arg2[%c0_1, %c0_2] : memref<38x12xf32, #tpu.memory_space<vmem>>, vector<38x12xf32>
    %cst = arith.constant dense<0.000000e+00> : vector<256x12xf32>
    %2 = tpu.matmul %0, %1, %cst {dimension_numbers = #tpu.dot_dimension_numbers<[1], [0], [0], [1], [0, 0, 1, 1], [], []>} : vector<256x38xf32>, vector<38x12xf32>, vector<256x12xf32> -> vector<256x12xf32>
    %3 = vector.extract_strided_slice %2 {offsets = [0, 0], sizes = [256, 8], strides = [1, 1]} : vector<256x12xf32> to vector<256x8xf32>
    %cst_3 = arith.constant 0.000000e+00 : f32
    %4 = vector.broadcast %cst_3 : f32 to vector<256x8xf32>
    %5 = arith.maximumf %3, %4 : vector<256x8xf32>
    %6 = vector.extract_strided_slice %2 {offsets = [0, 8], sizes = [256, 4], strides = [1, 1]} : vector<256x12xf32> to vector<256x4xf32>
    %cst_4 = arith.constant 0.000000e+00 : f32
    %7 = vector.broadcast %cst_4 : f32 to vector<256x4xf32>
    %8 = arith.maximumf %6, %7 : vector<256x4xf32>
    %c0_5 = arith.constant 0 : index
    %c0_6 = arith.constant 0 : index
    %9 = vector.load %arg4[%c0_5, %c0_6] : memref<1x9xf32, #tpu.memory_space<vmem>>, vector<1x9xf32>
    %10 = vector.extract_strided_slice %9 {offsets = [0, 0], sizes = [1, 8], strides = [1, 1]} : vector<1x9xf32> to vector<1x8xf32>
    %11 = vector.broadcast %10 : vector<1x8xf32> to vector<256x8xf32>
    %12 = arith.mulf %5, %11 : vector<256x8xf32>
    %cst_7 = arith.constant dense<0.000000e+00> : vector<256xf32>
    %13 = vector.multi_reduction <add>, %12, %cst_7 [1] : vector<256x8xf32> to vector<256xf32>
    %14 = vector.shape_cast %13 : vector<256xf32> to vector<256x1xf32>
    %15 = vector.extract_strided_slice %9 {offsets = [0, 8], sizes = [1, 1], strides = [1, 1]} : vector<1x9xf32> to vector<1x1xf32>
    %16 = vector.broadcast %15 : vector<1x1xf32> to vector<256x1xf32>
    %17 = arith.addf %14, %16 : vector<256x1xf32>
    %18 = vector.extract_strided_slice %0 {offsets = [0, 37], sizes = [256, 1], strides = [1, 1]} : vector<256x38xf32> to vector<256x1xf32>
    %cst_8 = arith.constant 0.000000e+00 : f32
    %19 = vector.broadcast %cst_8 : f32 to vector<256x1xf32>
    %20 = arith.cmpf ogt, %17, %19 : vector<256x1xf32>
    %cst_9 = arith.constant 0.000000e+00 : f32
    %21 = vector.broadcast %cst_9 : f32 to vector<256x1xf32>
    %22 = arith.cmpf ogt, %18, %21 : vector<256x1xf32>
    %23 = arith.ori %20, %22 : vector<256x1xi1>
    %24 = arith.extui %23 : vector<256x1xi1> to vector<256x1xi32>
    %25 = arith.sitofp %24 : vector<256x1xi32> to vector<256x1xf32>
    %cst_10 = arith.constant 0.000000e+00 : f32
    %26 = vector.broadcast %cst_10 : f32 to vector<1x1xf32>
    %27 = vector.extract_strided_slice %25 {offsets = [0, 0], sizes = [255, 1], strides = [1, 1]} : vector<256x1xf32> to vector<255x1xf32>
    %28 = tpu.concatenate %26, %27 in 0 : vector<1x1xf32>, vector<255x1xf32> -> vector<256x1xf32>
    %29 = vector.shape_cast %28 : vector<256x1xf32> to vector<256x1xf32>
    %30 = vector.broadcast %29 : vector<256x1xf32> to vector<256x4xf32>
    %31 = vector.shape_cast %25 : vector<256x1xf32> to vector<256x1xf32>
    %32 = vector.broadcast %31 : vector<256x1xf32> to vector<256x4xf32>
    %cst_11 = arith.constant 0.000000e+00 : f32
    %33 = vector.broadcast %cst_11 : f32 to vector<1x1xf32>
    %34 = vector.extract_strided_slice %25 {offsets = [1, 0], sizes = [255, 1], strides = [1, 1]} : vector<256x1xf32> to vector<255x1xf32>
    %35 = tpu.concatenate %34, %33 in 0 : vector<255x1xf32>, vector<1x1xf32> -> vector<256x1xf32>
    %36 = vector.shape_cast %35 : vector<256x1xf32> to vector<256x1xf32>
    %37 = vector.broadcast %36 : vector<256x1xf32> to vector<256x4xf32>
    %38 = tpu.concatenate %30, %32, %37 in 1 : vector<256x4xf32>, vector<256x4xf32>, vector<256x4xf32> -> vector<256x12xf32>
    %cst_12 = arith.constant 0.000000e+00 : f32
    %39 = vector.broadcast %cst_12 : f32 to vector<16x12xf32>
    %40 = vector.extract_strided_slice %38 {offsets = [0, 0], sizes = [240, 12], strides = [1, 1]} : vector<256x12xf32> to vector<240x12xf32>
    %41 = tpu.concatenate %39, %40 in 0 : vector<16x12xf32>, vector<240x12xf32> -> vector<256x12xf32>
    %cst_13 = arith.constant 0.000000e+00 : f32
    %42 = vector.broadcast %cst_13 : f32 to vector<16x12xf32>
    %43 = vector.extract_strided_slice %38 {offsets = [16, 0], sizes = [240, 12], strides = [1, 1]} : vector<256x12xf32> to vector<240x12xf32>
    %44 = tpu.concatenate %43, %42 in 0 : vector<240x12xf32>, vector<16x12xf32> -> vector<256x12xf32>
    %45 = tpu.concatenate %41, %38, %44 in 1 : vector<256x12xf32>, vector<256x12xf32>, vector<256x12xf32> -> vector<256x36xf32>
    %cst_14 = arith.constant 1.000000e+00 : f32
    %46 = vector.broadcast %cst_14 : f32 to vector<256x2xf32>
    %47 = tpu.concatenate %45, %46 in 1 : vector<256x36xf32>, vector<256x2xf32> -> vector<256x38xf32>
    %48 = arith.mulf %0, %47 : vector<256x38xf32>
    %c0_15 = arith.constant 0 : index
    %c0_16 = arith.constant 0 : index
    %49 = vector.load %arg3[%c0_15, %c0_16] : memref<38x4xf32, #tpu.memory_space<vmem>>, vector<38x4xf32>
    %cst_17 = arith.constant dense<0.000000e+00> : vector<256x4xf32>
    %50 = tpu.matmul %48, %49, %cst_17 {dimension_numbers = #tpu.dot_dimension_numbers<[1], [0], [0], [1], [0, 0, 1, 1], [], []>} : vector<256x38xf32>, vector<38x4xf32>, vector<256x4xf32> -> vector<256x4xf32>
    %cst_18 = arith.constant 0.000000e+00 : f32
    %51 = vector.broadcast %cst_18 : f32 to vector<256x4xf32>
    %52 = arith.maximumf %50, %51 : vector<256x4xf32>
    %c0_19 = arith.constant 0 : index
    %c0_20 = arith.constant 0 : index
    %53 = vector.load %arg5[%c0_19, %c0_20] : memref<256x8xf32, #tpu.memory_space<vmem>>, vector<256x4xf32>
    tpu.vector_store %arg5[%c0_19, %c0_20], %52 {strides = array<i32>} : memref<256x8xf32, #tpu.memory_space<vmem>>, vector<256x4xf32>,
    %c0_21 = arith.constant 0 : index
    %c4 = arith.constant 4 : index
    %54 = vector.load %arg5[%c0_21, %c4] : memref<256x8xf32, #tpu.memory_space<vmem>>, vector<256x4xf32>
    tpu.vector_store %arg5[%c0_21, %c4], %8 {strides = array<i32>} : memref<256x8xf32, #tpu.memory_space<vmem>>, vector<256x4xf32>,
    return
  }
  func.func @transform_0(%arg0: i32) -> (i32, i32) {
    %c0_i32 = arith.constant 0 : i32
    %c0_i32_0 = arith.constant 0 : i32
    return %arg0, %c0_i32 : i32, i32
  }
  func.func @transform_1(%arg0: i32) -> (i32, i32) {
    %c0_i32 = arith.constant 0 : i32
    %c0_i32_0 = arith.constant 0 : i32
    %c0_i32_1 = arith.constant 0 : i32
    return %c0_i32, %c0_i32_0 : i32, i32
  }
  func.func @transform_2(%arg0: i32) -> (i32, i32) {
    %c0_i32 = arith.constant 0 : i32
    %c0_i32_0 = arith.constant 0 : i32
    %c0_i32_1 = arith.constant 0 : i32
    return %c0_i32, %c0_i32_0 : i32, i32
  }
  func.func @transform_3(%arg0: i32) -> (i32, i32) {
    %c0_i32 = arith.constant 0 : i32
    %c0_i32_0 = arith.constant 0 : i32
    %c0_i32_1 = arith.constant 0 : i32
    return %c0_i32, %c0_i32_0 : i32, i32
  }
  func.func @transform_4(%arg0: i32) -> (i32, i32) {
    %c0_i32 = arith.constant 0 : i32
    %c0_i32_0 = arith.constant 0 : i32
    return %arg0, %c0_i32 : i32, i32
  }
}

</mosaic_0001>

<llo_original>
// kernel: squeeze.1
$region0: #{squeeze.1}
  %s0 = inlined_call_operand.vmem [shape: f32[2,1,32,32], index: 0, kind: input, shape index: {}]
  %s1 = inlined_call_operand.vmem [shape: f32[2,16,2,16,2], index: 1, kind: output, shape index: {}]
  %v2 = vld [vmem:[%s0] sm:$0xff]
  %vm3 = vcmask 15360
  %4 = vst.msk [vmem:[%s1] ss:$16 sm:$0x3] %vm3, %v2
  %5 = vst.msk [vmem:[%s1] ss:$16 sm:$0xc] %vm3, %v2
  %6 = vst.msk [vmem:[%s1] ss:$16 sm:$0x30] %vm3, %v2
  %7 = vst.msk [vmem:[%s1] ss:$16 sm:$0xc0] %vm3, %v2
  %s8 = scalar_lea.vmem %s0, 8
  %v9 = vld [vmem:[%s8] sm:$0xff]
  %vm10 = vcmask 15360
  %s11 = scalar_lea.vmem %s1, 128
  %12 = vst.msk [vmem:[%s11] ss:$16 sm:$0x3] %vm10, %v9
  %s13 = scalar_lea.vmem %s1, 128
  %14 = vst.msk [vmem:[%s13] ss:$16 sm:$0xc] %vm10, %v9
  %s15 = scalar_lea.vmem %s1, 128
  %16 = vst.msk [vmem:[%s15] ss:$16 sm:$0x30] %vm10, %v9
  %s17 = scalar_lea.vmem %s1, 128
  %18 = vst.msk [vmem:[%s17] ss:$16 sm:$0xc0] %vm10, %v9
  %s19 = scalar_lea.vmem %s0, 16
  %v20 = vld [vmem:[%s19] sm:$0xff]
  %vm21 = vcmask 15360
  %s22 = scalar_lea.vmem %s1, 256
  %23 = vst.msk [vmem:[%s22] ss:$16 sm:$0x3] %vm21, %v20
  %s24 = scalar_lea.vmem %s1, 256
  %25 = vst.msk [vmem:[%s24] ss:$16 sm:$0xc] %vm21, %v20
  %s26 = scalar_lea.vmem %s1, 256
  %27 = vst.msk [vmem:[%s26] ss:$16 sm:$0x30] %vm21, %v20
  %s28 = scalar_lea.vmem %s1, 256
  %29 = vst.msk [vmem:[%s28] ss:$16 sm:$0xc0] %vm21, %v20
  %s30 = scalar_lea.vmem %s0, 24
  %v31 = vld [vmem:[%s30] sm:$0xff]
  %vm32 = vcmask 15360
  %s33 = scalar_lea.vmem %s1, 384
  %34 = vst.msk [vmem:[%s33] ss:$16 sm:$0x3] %vm32, %v31
  %s35 = scalar_lea.vmem %s1, 384
  %36 = vst.msk [vmem:[%s35] ss:$16 sm:$0xc] %vm32, %v31
  %s37 = scalar_lea.vmem %s1, 384
  %38 = vst.msk [vmem:[%s37] ss:$16 sm:$0x30] %vm32, %v31
  %s39 = scalar_lea.vmem %s1, 384
  %40 = vst.msk [vmem:[%s39] ss:$16 sm:$0xc0] %vm32, %v31
  %s41 = scalar_lea.vmem %s0, 32
  %v42 = vld [vmem:[%s41] sm:$0xff]
  %vm43 = vcmask 15360
  %s44 = scalar_lea.vmem %s1, 512
  %45 = vst.msk [vmem:[%s44] ss:$16 sm:$0x3] %vm43, %v42
  %s46 = scalar_lea.vmem %s1, 512
  %47 = vst.msk [vmem:[%s46] ss:$16 sm:$0xc] %vm43, %v42
  %s48 = scalar_lea.vmem %s1, 512
  %49 = vst.msk [vmem:[%s48] ss:$16 sm:$0x30] %vm43, %v42
  %s50 = scalar_lea.vmem %s1, 512
  %51 = vst.msk [vmem:[%s50] ss:$16 sm:$0xc0] %vm43, %v42
  %s52 = scalar_lea.vmem %s0, 40
  %v53 = vld [vmem:[%s52] sm:$0xff]
  %vm54 = vcmask 15360
  %s55 = scalar_lea.vmem %s1, 640
  %56 = vst.msk [vmem:[%s55] ss:$16 sm:$0x3] %vm54, %v53
  %s57 = scalar_lea.vmem %s1, 640
  %58 = vst.msk [vmem:[%s57] ss:$16 sm:$0xc] %vm54, %v53
  %s59 = scalar_lea.vmem %s1, 640
  %60 = vst.msk [vmem:[%s59] ss:$16 sm:$0x30] %vm54, %v53
  %s61 = scalar_lea.vmem %s1, 640
  %62 = vst.msk [vmem:[%s61] ss:$16 sm:$0xc0] %vm54, %v53
  %s63 = scalar_lea.vmem %s0, 48
  %v64 = vld [vmem:[%s63] sm:$0xff]
  %vm65 = vcmask 15360
  %s66 = scalar_lea.vmem %s1, 768
  %67 = vst.msk [vmem:[%s66] ss:$16 sm:$0x3] %vm65, %v64
  %s68 = scalar_lea.vmem %s1, 768
  %69 = vst.msk [vmem:[%s68] ss:$16 sm:$0xc] %vm65, %v64
  %s70 = scalar_lea.vmem %s1, 768
  %71 = vst.msk [vmem:[%s70] ss:$16 sm:$0x30] %vm65, %v64
  %s72 = scalar_lea.vmem %s1, 768
  %73 = vst.msk [vmem:[%s72] ss:$16 sm:$0xc0] %vm65, %v64
  %s74 = scalar_lea.vmem %s0, 56
  %v75 = vld [vmem:[%s74] sm:$0xff]
  %vm76 = vcmask 15360
  %s77 = scalar_lea.vmem %s1, 896
  %78 = vst.msk [vmem:[%s77] ss:$16 sm:$0x3] %vm76, %v75
  %s79 = scalar_lea.vmem %s1, 896
  %80 = vst.msk [vmem:[%s79] ss:$16 sm:$0xc] %vm76, %v75
  %s81 = scalar_lea.vmem %s1, 896
  %82 = vst.msk [vmem:[%s81] ss:$16 sm:$0x30] %vm76, %v75
  %s83 = scalar_lea.vmem %s1, 896
  %84 = vst.msk [vmem:[%s83] ss:$16 sm:$0xc0] %vm76, %v75
  %v85 = vld [vmem:[%s0] sm:$0xff]
  %86 = vrot.lane.b32.xlu0 %v85, 126
  %v87 = vpop.permute.xlu0 %86
  %vm88 = vcmask 15360
  %s89 = scalar_lea.vmem %s1, 1
  %90 = vst.msk [vmem:[%s89] ss:$16 sm:$0x3] %vm88, %v87
  %s91 = scalar_lea.vmem %s1, 1
  %92 = vst.msk [vmem:[%s91] ss:$16 sm:$0xc] %vm88, %v87
  %s93 = scalar_lea.vmem %s1, 1
  %94 = vst.msk [vmem:[%s93] ss:$16 sm:$0x30] %vm88, %v87
  %s95 = scalar_lea.vmem %s1, 1
  %96 = vst.msk [vmem:[%s95] ss:$16 sm:$0xc0] %vm88, %v87
  %s97 = scalar_lea.vmem %s0, 8
  %v98 = vld [vmem:[%s97] sm:$0xff]
  %99 = vrot.lane.b32.xlu0 %v98, 126
  %v100 = vpop.permute.xlu0 %99
  %vm101 = vcmask 15360
  %s102 = scalar_lea.vmem %s1, 129
  %103 = vst.msk [vmem:[%s102] ss:$16 sm:$0x3] %vm101, %v100
  %s104 = scalar_lea.vmem %s1, 129
  %105 = vst.msk [vmem:[%s104] ss:$16 sm:$0xc] %vm101, %v100
  %s106 = scalar_lea.vmem %s1, 129
  %107 = vst.msk [vmem:[%s106] ss:$16 sm:$0x30] %vm101, %v100
  %s108 = scalar_lea.vmem %s1, 129
  %109 = vst.msk [vmem:[%s108] ss:$16 sm:$0xc0] %vm101, %v100
  %s110 = scalar_lea.vmem %s0, 16
  %v111 = vld [vmem:[%s110] sm:$0xff]
  %112 = vrot.lane.b32.xlu0 %v111, 126
  %v113 = vpop.permute.xlu0 %112
  %vm114 = vcmask 15360
  %s115 = scalar_lea.vmem %s1, 257
  %116 = vst.msk [vmem:[%s115] ss:$16 sm:$0x3] %vm114, %v113
  %s117 = scalar_lea.vmem %s1, 257
  %118 = vst.msk [vmem:[%s117] ss:$16 sm:$0xc] %vm114, %v113
  %s119 = scalar_lea.vmem %s1, 257
  %120 = vst.msk [vmem:[%s119] ss:$16 sm:$0x30] %vm114, %v113
  %s121 = scalar_lea.vmem %s1, 257
  %122 = vst.msk [vmem:[%s121] ss:$16 sm:$0xc0] %vm114, %v113
  %s123 = scalar_lea.vmem %s0, 24
  %v124 = vld [vmem:[%s123] sm:$0xff]
  %125 = vrot.lane.b32.xlu0 %v124, 126
  %v126 = vpop.permute.xlu0 %125
  %vm127 = vcmask 15360
  %s128 = scalar_lea.vmem %s1, 385
  %129 = vst.msk [vmem:[%s128] ss:$16 sm:$0x3] %vm127, %v126
  %s130 = scalar_lea.vmem %s1, 385
  %131 = vst.msk [vmem:[%s130] ss:$16 sm:$0xc] %vm127, %v126
  %s132 = scalar_lea.vmem %s1, 385
  %133 = vst.msk [vmem:[%s132] ss:$16 sm:$0x30] %vm127, %v126
  %s134 = scalar_lea.vmem %s1, 385
  %135 = vst.msk [vmem:[%s134] ss:$16 sm:$0xc0] %vm127, %v126
  %s136 = scalar_lea.vmem %s0, 32
  %v137 = vld [vmem:[%s136] sm:$0xff]
  %138 = vrot.lane.b32.xlu0 %v137, 126
  %v139 = vpop.permute.xlu0 %138
  %vm140 = vcmask 15360
  %s141 = scalar_lea.vmem %s1, 513
  %142 = vst.msk [vmem:[%s141] ss:$16 sm:$0x3] %vm140, %v139
  %s143 = scalar_lea.vmem %s1, 513
  %144 = vst.msk [vmem:[%s143] ss:$16 sm:$0xc] %vm140, %v139
  %s145 = scalar_lea.vmem %s1, 513
  %146 = vst.msk [vmem:[%s145] ss:$16 sm:$0x30] %vm140, %v139
  %s147 = scalar_lea.vmem %s1, 513
  %148 = vst.msk [vmem:[%s147] ss:$16 sm:$0xc0] %vm140, %v139
  %s149 = scalar_lea.vmem %s0, 40
  %v150 = vld [vmem:[%s149] sm:$0xff]
  %151 = vrot.lane.b32.xlu0 %v150, 126
  %v152 = vpop.permute.xlu0 %151
  %vm153 = vcmask 15360
  %s154 = scalar_lea.vmem %s1, 641
  %155 = vst.msk [vmem:[%s154] ss:$16 sm:$0x3] %vm153, %v152
  %s156 = scalar_lea.vmem %s1, 641
  %157 = vst.msk [vmem:[%s156] ss:$16 sm:$0xc] %vm153, %v152
  %s158 = scalar_lea.vmem %s1, 641
  %159 = vst.msk [vmem:[%s158] ss:$16 sm:$0x30] %vm153, %v152
  %s160 = scalar_lea.vmem %s1, 641
  %161 = vst.msk [vmem:[%s160] ss:$16 sm:$0xc0] %vm153, %v152
  %s162 = scalar_lea.vmem %s0, 48
  %v163 = vld [vmem:[%s162] sm:$0xff]
  %164 = vrot.lane.b32.xlu0 %v163, 126
  %v165 = vpop.permute.xlu0 %164
  %vm166 = vcmask 15360
  %s167 = scalar_lea.vmem %s1, 769
  %168 = vst.msk [vmem:[%s167] ss:$16 sm:$0x3] %vm166, %v165
  %s169 = scalar_lea.vmem %s1, 769
  %170 = vst.msk [vmem:[%s169] ss:$16 sm:$0xc] %vm166, %v165
  %s171 = scalar_lea.vmem %s1, 769
  %172 = vst.msk [vmem:[%s171] ss:$16 sm:$0x30] %vm166, %v165
  %s173 = scalar_lea.vmem %s1, 769
  %174 = vst.msk [vmem:[%s173] ss:$16 sm:$0xc0] %vm166, %v165
  %s175 = scalar_lea.vmem %s0, 56
  %v176 = vld [vmem:[%s175] sm:$0xff]
  %177 = vrot.lane.b32.xlu0 %v176, 126
  %v178 = vpop.permute.xlu0 %177
  %vm179 = vcmask 15360
  %s180 = scalar_lea.vmem %s1, 897
  %181 = vst.msk [vmem:[%s180] ss:$16 sm:$0x3] %vm179, %v178
  %s182 = scalar_lea.vmem %s1, 897
  %183 = vst.msk [vmem:[%s182] ss:$16 sm:$0xc] %vm179, %v178
  %s184 = scalar_lea.vmem %s1, 897
  %185 = vst.msk [vmem:[%s184] ss:$16 sm:$0x30] %vm179, %v178
  %s186 = scalar_lea.vmem %s1, 897
  %187 = vst.msk [vmem:[%s186] ss:$16 sm:$0xc0] %vm179, %v178
  %v188 = vld [vmem:[%s0] sm:$0xff]
  %189 = vrot.lane.b32.xlu0 %v188, 124
  %v190 = vpop.permute.xlu0 %189
  %vm191 = vcmask 15360
  %s192 = scalar_lea.vmem %s1, 2
  %193 = vst.msk [vmem:[%s192] ss:$16 sm:$0x3] %vm191, %v190
  %s194 = scalar_lea.vmem %s1, 2
  %195 = vst.msk [vmem:[%s194] ss:$16 sm:$0xc] %vm191, %v190
  %s196 = scalar_lea.vmem %s1, 2
  %197 = vst.msk [vmem:[%s196] ss:$16 sm:$0x30] %vm191, %v190
  %s198 = scalar_lea.vmem %s1, 2
  %199 = vst.msk [vmem:[%s198] ss:$16 sm:$0xc0] %vm191, %v190
  %s200 = scalar_lea.vmem %s0, 8
  %v201 = vld [vmem:[%s200] sm:$0xff]
  %202 = vrot.lane.b32.xlu0 %v201, 124
  %v203 = vpop.permute.xlu0 %202
  %vm204 = vcmask 15360
  %s205 = scalar_lea.vmem %s1, 130
  %206 = vst.msk [vmem:[%s205] ss:$16 sm:$0x3] %vm204, %v203
  %s207 = scalar_lea.vmem %s1, 130
  %208 = vst.msk [vmem:[%s207] ss:$16 sm:$0xc] %vm204, %v203
  %s209 = scalar_lea.vmem %s1, 130
  %210 = vst.msk [vmem:[%s209] ss:$16 sm:$0x30] %vm204, %v203
  %s211 = scalar_lea.vmem %s1, 130
  %212 = vst.msk [vmem:[%s211] ss:$16 sm:$0xc0] %vm204, %v203
  %s213 = scalar_lea.vmem %s0, 16
  %v214 = vld [vmem:[%s213] sm:$0xff]
  %215 = vrot.lane.b32.xlu0 %v214, 124
  %v216 = vpop.permute.xlu0 %215
  %vm217 = vcmask 15360
  %s218 = scalar_lea.vmem %s1, 258
  %219 = vst.msk [vmem:[%s218] ss:$16 sm:$0x3] %vm217, %v216
  %s220 = scalar_lea.vmem %s1, 258
  %221 = vst.msk [vmem:[%s220] ss:$16 sm:$0xc] %vm217, %v216
  %s222 = scalar_lea.vmem %s1, 258
  %223 = vst.msk [vmem:[%s222] ss:$16 sm:$0x30] %vm217, %v216
  %s224 = scalar_lea.vmem %s1, 258
  %225 = vst.msk [vmem:[%s224] ss:$16 sm:$0xc0] %vm217, %v216
  %s226 = scalar_lea.vmem %s0, 24
  %v227 = vld [vmem:[%s226] sm:$0xff]
  %228 = vrot.lane.b32.xlu0 %v227, 124
  %v229 = vpop.permute.xlu0 %228
  %vm230 = vcmask 15360
  %s231 = scalar_lea.vmem %s1, 386
  %232 = vst.msk [vmem:[%s231] ss:$16 sm:$0x3] %vm230, %v229
  %s233 = scalar_lea.vmem %s1, 386
  %234 = vst.msk [vmem:[%s233] ss:$16 sm:$0xc] %vm230, %v229
  %s235 = scalar_lea.vmem %s1, 386
  %236 = vst.msk [vmem:[%s235] ss:$16 sm:$0x30] %vm230, %v229
  %s237 = scalar_lea.vmem %s1, 386
  %238 = vst.msk [vmem:[%s237] ss:$16 sm:$0xc0] %vm230, %v229
  %s239 = scalar_lea.vmem %s0, 32
  %v240 = vld [vmem:[%s239] sm:$0xff]
  %241 = vrot.lane.b32.xlu0 %v240, 124
  %v242 = vpop.permute.xlu0 %241
  %vm243 = vcmask 15360
  %s244 = scalar_lea.vmem %s1, 514
  %245 = vst.msk [vmem:[%s244] ss:$16 sm:$0x3] %vm243, %v242
  %s246 = scalar_lea.vmem %s1, 514
  %247 = vst.msk [vmem:[%s246] ss:$16 sm:$0xc] %vm243, %v242
  %s248 = scalar_lea.vmem %s1, 514
  %249 = vst.msk [vmem:[%s248] ss:$16 sm:$0x30] %vm243, %v242
  %s250 = scalar_lea.vmem %s1, 514
  %251 = vst.msk [vmem:[%s250] ss:$16 sm:$0xc0] %vm243, %v242
  %s252 = scalar_lea.vmem %s0, 40
  %v253 = vld [vmem:[%s252] sm:$0xff]
  %254 = vrot.lane.b32.xlu0 %v253, 124
  %v255 = vpop.permute.xlu0 %254
  %vm256 = vcmask 15360
  %s257 = scalar_lea.vmem %s1, 642
  %258 = vst.msk [vmem:[%s257] ss:$16 sm:$0x3] %vm256, %v255
  %s259 = scalar_lea.vmem %s1, 642
  %260 = vst.msk [vmem:[%s259] ss:$16 sm:$0xc] %vm256, %v255
  %s261 = scalar_lea.vmem %s1, 642
  %262 = vst.msk [vmem:[%s261] ss:$16 sm:$0x30] %vm256, %v255
  %s263 = scalar_lea.vmem %s1, 642
  %264 = vst.msk [vmem:[%s263] ss:$16 sm:$0xc0] %vm256, %v255
  %s265 = scalar_lea.vmem %s0, 48
  %v266 = vld [vmem:[%s265] sm:$0xff]
  %267 = vrot.lane.b32.xlu0 %v266, 124
  %v268 = vpop.permute.xlu0 %267
  %vm269 = vcmask 15360
  %s270 = scalar_lea.vmem %s1, 770
  %271 = vst.msk [vmem:[%s270] ss:$16 sm:$0x3] %vm269, %v268
  %s272 = scalar_lea.vmem %s1, 770
  %273 = vst.msk [vmem:[%s272] ss:$16 sm:$0xc] %vm269, %v268
  %s274 = scalar_lea.vmem %s1, 770
  %275 = vst.msk [vmem:[%s274] ss:$16 sm:$0x30] %vm269, %v268
  %s276 = scalar_lea.vmem %s1, 770
  %277 = vst.msk [vmem:[%s276] ss:$16 sm:$0xc0] %vm269, %v268
  %s278 = scalar_lea.vmem %s0, 56
  %v279 = vld [vmem:[%s278] sm:$0xff]
  %280 = vrot.lane.b32.xlu0 %v279, 124
  %v281 = vpop.permute.xlu0 %280
  %vm282 = vcmask 15360
  %s283 = scalar_lea.vmem %s1, 898
  %284 = vst.msk [vmem:[%s283] ss:$16 sm:$0x3] %vm282, %v281
  %s285 = scalar_lea.vmem %s1, 898
  %286 = vst.msk [vmem:[%s285] ss:$16 sm:$0xc] %vm282, %v281
  %s287 = scalar_lea.vmem %s1, 898
  %288 = vst.msk [vmem:[%s287] ss:$16 sm:$0x30] %vm282, %v281
  %s289 = scalar_lea.vmem %s1, 898
  %290 = vst.msk [vmem:[%s289] ss:$16 sm:$0xc0] %vm282, %v281
  %v291 = vld [vmem:[%s0] sm:$0xff]
  %292 = vrot.lane.b32.xlu0 %v291, 122
  %v293 = vpop.permute.xlu0 %292
  %vm294 = vcmask 15360
  %s295 = scalar_lea.vmem %s1, 3
  %296 = vst.msk [vmem:[%s295] ss:$16 sm:$0x3] %vm294, %v293
  %s297 = scalar_lea.vmem %s1, 3
  %298 = vst.msk [vmem:[%s297] ss:$16 sm:$0xc] %vm294, %v293
  %s299 = scalar_lea.vmem %s1, 3
  %300 = vst.msk [vmem:[%s299] ss:$16 sm:$0x30] %vm294, %v293
  %s301 = scalar_lea.vmem %s1, 3
  %302 = vst.msk [vmem:[%s301] ss:$16 sm:$0xc0] %vm294, %v293
  %s303 = scalar_lea.vmem %s0, 8
  %v304 = vld [vmem:[%s303] sm:$0xff]
  %305 = vrot.lane.b32.xlu0 %v304, 122
  %v306 = vpop.permute.xlu0 %305
  %vm307 = vcmask 15360
  %s308 = scalar_lea.vmem %s1, 131
  %309 = vst.msk [vmem:[%s308] ss:$16 sm:$0x3] %vm307, %v306
  %s310 = scalar_lea.vmem %s1, 131
  %311 = vst.msk [vmem:[%s310] ss:$16 sm:$0xc] %vm307, %v306
  %s312 = scalar_lea.vmem %s1, 131
  %313 = vst.msk [vmem:[%s312] ss:$16 sm:$0x30] %vm307, %v306
  %s314 = scalar_lea.vmem %s1, 131
  %315 = vst.msk [vmem:[%s314] ss:$16 sm:$0xc0] %vm307, %v306
  %s316 = scalar_lea.vmem %s0, 16
  %v317 = vld [vmem:[%s316] sm:$0xff]
  %318 = vrot.lane.b32.xlu0 %v317, 122
  %v319 = vpop.permute.xlu0 %318
  %vm320 = vcmask 15360
  %s321 = scalar_lea.vmem %s1, 259
  %322 = vst.msk [vmem:[%s321] ss:$16 sm:$0x3] %vm320, %v319
  %s323 = scalar_lea.vmem %s1, 259
  %324 = vst.msk [vmem:[%s323] ss:$16 sm:$0xc] %vm320, %v319
  %s325 = scalar_lea.vmem %s1, 259
  %326 = vst.msk [vmem:[%s325] ss:$16 sm:$0x30] %vm320, %v319
  %s327 = scalar_lea.vmem %s1, 259
  %328 = vst.msk [vmem:[%s327] ss:$16 sm:$0xc0] %vm320, %v319
  %s329 = scalar_lea.vmem %s0, 24
  %v330 = vld [vmem:[%s329] sm:$0xff]
  %331 = vrot.lane.b32.xlu0 %v330, 122
  %v332 = vpop.permute.xlu0 %331
  %vm333 = vcmask 15360
  %s334 = scalar_lea.vmem %s1, 387
  %335 = vst.msk [vmem:[%s334] ss:$16 sm:$0x3] %vm333, %v332
  %s336 = scalar_lea.vmem %s1, 387
  %337 = vst.msk [vmem:[%s336] ss:$16 sm:$0xc] %vm333, %v332
  %s338 = scalar_lea.vmem %s1, 387
  %339 = vst.msk [vmem:[%s338] ss:$16 sm:$0x30] %vm333, %v332
  %s340 = scalar_lea.vmem %s1, 387
  %341 = vst.msk [vmem:[%s340] ss:$16 sm:$0xc0] %vm333, %v332
  %s342 = scalar_lea.vmem %s0, 32
  %v343 = vld [vmem:[%s342] sm:$0xff]
  %344 = vrot.lane.b32.xlu0 %v343, 122
  %v345 = vpop.permute.xlu0 %344
  %vm346 = vcmask 15360
  %s347 = scalar_lea.vmem %s1, 515
  %348 = vst.msk [vmem:[%s347] ss:$16 sm:$0x3] %vm346, %v345
  %s349 = scalar_lea.vmem %s1, 515
  %350 = vst.msk [vmem:[%s349] ss:$16 sm:$0xc] %vm346, %v345
  %s351 = scalar_lea.vmem %s1, 515
  %352 = vst.msk [vmem:[%s351] ss:$16 sm:$0x30] %vm346, %v345
  %s353 = scalar_lea.vmem %s1, 515
  %354 = vst.msk [vmem:[%s353] ss:$16 sm:$0xc0] %vm346, %v345
  %s355 = scalar_lea.vmem %s0, 40
  %v356 = vld [vmem:[%s355] sm:$0xff]
  %357 = vrot.lane.b32.xlu0 %v356, 122
  %v358 = vpop.permute.xlu0 %357
  %vm359 = vcmask 15360
  %s360 = scalar_lea.vmem %s1, 643
  %361 = vst.msk [vmem:[%s360] ss:$16 sm:$0x3] %vm359, %v358
  %s362 = scalar_lea.vmem %s1, 643
  %363 = vst.msk [vmem:[%s362] ss:$16 sm:$0xc] %vm359, %v358
  %s364 = scalar_lea.vmem %s1, 643
  %365 = vst.msk [vmem:[%s364] ss:$16 sm:$0x30] %vm359, %v358
  %s366 = scalar_lea.vmem %s1, 643
  %367 = vst.msk [vmem:[%s366] ss:$16 sm:$0xc0] %vm359, %v358
  %s368 = scalar_lea.vmem %s0, 48
  %v369 = vld [vmem:[%s368] sm:$0xff]
  %370 = vrot.lane.b32.xlu0 %v369, 122
  %v371 = vpop.permute.xlu0 %370
  %vm372 = vcmask 15360
  %s373 = scalar_lea.vmem %s1, 771
  %374 = vst.msk [vmem:[%s373] ss:$16 sm:$0x3] %vm372, %v371
  %s375 = scalar_lea.vmem %s1, 771
  %376 = vst.msk [vmem:[%s375] ss:$16 sm:$0xc] %vm372, %v371
  %s377 = scalar_lea.vmem %s1, 771
  %378 = vst.msk [vmem:[%s377] ss:$16 sm:$0x30] %vm372, %v371
  %s379 = scalar_lea.vmem %s1, 771
  %380 = vst.msk [vmem:[%s379] ss:$16 sm:$0xc0] %vm372, %v371
  %s381 = scalar_lea.vmem %s0, 56
  %v382 = vld [vmem:[%s381] sm:$0xff]
  %383 = vrot.lane.b32.xlu0 %v382, 122
  %v384 = vpop.permute.xlu0 %383
  %vm385 = vcmask 15360
  %s386 = scalar_lea.vmem %s1, 899
  %387 = vst.msk [vmem:[%s386] ss:$16 sm:$0x3] %vm385, %v384
  %s388 = scalar_lea.vmem %s1, 899
  %389 = vst.msk [vmem:[%s388] ss:$16 sm:$0xc] %vm385, %v384
  %s390 = scalar_lea.vmem %s1, 899
  %391 = vst.msk [vmem:[%s390] ss:$16 sm:$0x30] %vm385, %v384
  %s392 = scalar_lea.vmem %s1, 899
  %393 = vst.msk [vmem:[%s392] ss:$16 sm:$0xc0] %vm385, %v384
  %v394 = vld [vmem:[%s0] sm:$0xff]
  %395 = vrot.lane.b32.xlu0 %v394, 120
  %v396 = vpop.permute.xlu0 %395
  %vm397 = vcmask 15360
  %s398 = scalar_lea.vmem %s1, 4
  %399 = vst.msk [vmem:[%s398] ss:$16 sm:$0x3] %vm397, %v396
  %s400 = scalar_lea.vmem %s1, 4
  %401 = vst.msk [vmem:[%s400] ss:$16 sm:$0xc] %vm397, %v396
  %s402 = scalar_lea.vmem %s1, 4
  %403 = vst.msk [vmem:[%s402] ss:$16 sm:$0x30] %vm397, %v396
  %s404 = scalar_lea.vmem %s1, 4
  %405 = vst.msk [vmem:[%s404] ss:$16 sm:$0xc0] %vm397, %v396
  %s406 = scalar_lea.vmem %s0, 8
  %v407 = vld [vmem:[%s406] sm:$0xff]
  %408 = vrot.lane.b32.xlu0 %v407, 120
  %v409 = vpop.permute.xlu0 %408
  %vm410 = vcmask 15360
  %s411 = scalar_lea.vmem %s1, 132
  %412 = vst.msk [vmem:[%s411] ss:$16 sm:$0x3] %vm410, %v409
  %s413 = scalar_lea.vmem %s1, 132
  %414 = vst.msk [vmem:[%s413] ss:$16 sm:$0xc] %vm410, %v409
  %s415 = scalar_lea.vmem %s1, 132
  %416 = vst.msk [vmem:[%s415] ss:$16 sm:$0x30] %vm410, %v409
  %s417 = scalar_lea.vmem %s1, 132
  %418 = vst.msk [vmem:[%s417] ss:$16 sm:$0xc0] %vm410, %v409
  %s419 = scalar_lea.vmem %s0, 16
  %v420 = vld [vmem:[%s419] sm:$0xff]
  %421 = vrot.lane.b32.xlu0 %v420, 120
  %v422 = vpop.permute.xlu0 %421
  %vm423 = vcmask 15360
  %s424 = scalar_lea.vmem %s1, 260
  %425 = vst.msk [vmem:[%s424] ss:$16 sm:$0x3] %vm423, %v422
  %s426 = scalar_lea.vmem %s1, 260
  %427 = vst.msk [vmem:[%s426] ss:$16 sm:$0xc] %vm423, %v422
  %s428 = scalar_lea.vmem %s1, 260
  %429 = vst.msk [vmem:[%s428] ss:$16 sm:$0x30] %vm423, %v422
  %s430 = scalar_lea.vmem %s1, 260
  %431 = vst.msk [vmem:[%s430] ss:$16 sm:$0xc0] %vm423, %v422
  %s432 = scalar_lea.vmem %s0, 24
  %v433 = vld [vmem:[%s432] sm:$0xff]
  %434 = vrot.lane.b32.xlu0 %v433, 120
  %v435 = vpop.permute.xlu0 %434
  %vm436 = vcmask 15360
  %s437 = scalar_lea.vmem %s1, 388
  %438 = vst.msk [vmem:[%s437] ss:$16 sm:$0x3] %vm436, %v435
  %s439 = scalar_lea.vmem %s1, 388
  %440 = vst.msk [vmem:[%s439] ss:$16 sm:$0xc] %vm436, %v435
  %s441 = scalar_lea.vmem %s1, 388
  %442 = vst.msk [vmem:[%s441] ss:$16 sm:$0x30] %vm436, %v435
  %s443 = scalar_lea.vmem %s1, 388
  %444 = vst.msk [vmem:[%s443] ss:$16 sm:$0xc0] %vm436, %v435
  %s445 = scalar_lea.vmem %s0, 32
  %v446 = vld [vmem:[%s445] sm:$0xff]
  %447 = vrot.lane.b32.xlu0 %v446, 120
  %v448 = vpop.permute.xlu0 %447
  %vm449 = vcmask 15360
  %s450 = scalar_lea.vmem %s1, 516
  %451 = vst.msk [vmem:[%s450] ss:$16 sm:$0x3] %vm449, %v448
  %s452 = scalar_lea.vmem %s1, 516
  %453 = vst.msk [vmem:[%s452] ss:$16 sm:$0xc] %vm449, %v448
  %s454 = scalar_lea.vmem %s1, 516
  %455 = vst.msk [vmem:[%s454] ss:$16 sm:$0x30] %vm449, %v448
  %s456 = scalar_lea.vmem %s1, 516
  %457 = vst.msk [vmem:[%s456] ss:$16 sm:$0xc0] %vm449, %v448
  %s458 = scalar_lea.vmem %s0, 40
  %v459 = vld [vmem:[%s458] sm:$0xff]
  %460 = vrot.lane.b32.xlu0 %v459, 120
  %v461 = vpop.permute.xlu0 %460
  %vm462 = vcmask 15360
  %s463 = scalar_lea.vmem %s1, 644
  %464 = vst.msk [vmem:[%s463] ss:$16 sm:$0x3] %vm462, %v461
  %s465 = scalar_lea.vmem %s1, 644
  %466 = vst.msk [vmem:[%s465] ss:$16 sm:$0xc] %vm462, %v461
  %s467 = scalar_lea.vmem %s1, 644
  %468 = vst.msk [vmem:[%s467] ss:$16 sm:$0x30] %vm462, %v461
  %s469 = scalar_lea.vmem %s1, 644
  %470 = vst.msk [vmem:[%s469] ss:$16 sm:$0xc0] %vm462, %v461
  %s471 = scalar_lea.vmem %s0, 48
  %v472 = vld [vmem:[%s471] sm:$0xff]
  %473 = vrot.lane.b32.xlu0 %v472, 120
  %v474 = vpop.permute.xlu0 %473
  %vm475 = vcmask 15360
  %s476 = scalar_lea.vmem %s1, 772
  %477 = vst.msk [vmem:[%s476] ss:$16 sm:$0x3] %vm475, %v474
  %s478 = scalar_lea.vmem %s1, 772
  %479 = vst.msk [vmem:[%s478] ss:$16 sm:$0xc] %vm475, %v474
  %s480 = scalar_lea.vmem %s1, 772
  %481 = vst.msk [vmem:[%s480] ss:$16 sm:$0x30] %vm475, %v474
  %s482 = scalar_lea.vmem %s1, 772
  %483 = vst.msk [vmem:[%s482] ss:$16 sm:$0xc0] %vm475, %v474
  %s484 = scalar_lea.vmem %s0, 56
  %v485 = vld [vmem:[%s484] sm:$0xff]
  %486 = vrot.lane.b32.xlu0 %v485, 120
  %v487 = vpop.permute.xlu0 %486
  %vm488 = vcmask 15360
  %s489 = scalar_lea.vmem %s1, 900
  %490 = vst.msk [vmem:[%s489] ss:$16 sm:$0x3] %vm488, %v487
  %s491 = scalar_lea.vmem %s1, 900
  %492 = vst.msk [vmem:[%s491] ss:$16 sm:$0xc] %vm488, %v487
  %s493 = scalar_lea.vmem %s1, 900
  %494 = vst.msk [vmem:[%s493] ss:$16 sm:$0x30] %vm488, %v487
  %s495 = scalar_lea.vmem %s1, 900
  %496 = vst.msk [vmem:[%s495] ss:$16 sm:$0xc0] %vm488, %v487
  %v497 = vld [vmem:[%s0] sm:$0xff]
  %498 = vrot.lane.b32.xlu0 %v497, 118
  %v499 = vpop.permute.xlu0 %498
  %vm500 = vcmask 15360
  %s501 = scalar_lea.vmem %s1, 5
  %502 = vst.msk [vmem:[%s501] ss:$16 sm:$0x3] %vm500, %v499
  %s503 = scalar_lea.vmem %s1, 5
  %504 = vst.msk [vmem:[%s503] ss:$16 sm:$0xc] %vm500, %v499
  %s505 = scalar_lea.vmem %s1, 5
  %506 = vst.msk [vmem:[%s505] ss:$16 sm:$0x30] %vm500, %v499
  %s507 = scalar_lea.vmem %s1, 5
  %508 = vst.msk [vmem:[%s507] ss:$16 sm:$0xc0] %vm500, %v499
  %s509 = scalar_lea.vmem %s0, 8
  %v510 = vld [vmem:[%s509] sm:$0xff]
  %511 = vrot.lane.b32.xlu0 %v510, 118
  %v512 = vpop.permute.xlu0 %511
  %vm513 = vcmask 15360
  %s514 = scalar_lea.vmem %s1, 133
  %515 = vst.msk [vmem:[%s514] ss:$16 sm:$0x3] %vm513, %v512
  %s516 = scalar_lea.vmem %s1, 133
  %517 = vst.msk [vmem:[%s516] ss:$16 sm:$0xc] %vm513, %v512
  %s518 = scalar_lea.vmem %s1, 133
  %519 = vst.msk [vmem:[%s518] ss:$16 sm:$0x30] %vm513, %v512
  %s520 = scalar_lea.vmem %s1, 133
  %521 = vst.msk [vmem:[%s520] ss:$16 sm:$0xc0] %vm513, %v512
  %s522 = scalar_lea.vmem %s0, 16
  %v523 = vld [vmem:[%s522] sm:$0xff]
  %524 = vrot.lane.b32.xlu0 %v523, 118
  %v525 = vpop.permute.xlu0 %524
  %vm526 = vcmask 15360
  %s527 = scalar_lea.vmem %s1, 261
  %528 = vst.msk [vmem:[%s527] ss:$16 sm:$0x3] %vm526, %v525
  %s529 = scalar_lea.vmem %s1, 261
  %530 = vst.msk [vmem:[%s529] ss:$16 sm:$0xc] %vm526, %v525
  %s531 = scalar_lea.vmem %s1, 261
  %532 = vst.msk [vmem:[%s531] ss:$16 sm:$0x30] %vm526, %v525
  %s533 = scalar_lea.vmem %s1, 261
  %534 = vst.msk [vmem:[%s533] ss:$16 sm:$0xc0] %vm526, %v525
  %s535 = scalar_lea.vmem %s0, 24
  %v536 = vld [vmem:[%s535] sm:$0xff]
  %537 = vrot.lane.b32.xlu0 %v536, 118
  %v538 = vpop.permute.xlu0 %537
  %vm539 = vcmask 15360
  %s540 = scalar_lea.vmem %s1, 389
  %541 = vst.msk [vmem:[%s540] ss:$16 sm:$0x3] %vm539, %v538
  %s542 = scalar_lea.vmem %s1, 389
  %543 = vst.msk [vmem:[%s542] ss:$16 sm:$0xc] %vm539, %v538
  %s544 = scalar_lea.vmem %s1, 389
  %545 = vst.msk [vmem:[%s544] ss:$16 sm:$0x30] %vm539, %v538
  %s546 = scalar_lea.vmem %s1, 389
  %547 = vst.msk [vmem:[%s546] ss:$16 sm:$0xc0] %vm539, %v538
  %s548 = scalar_lea.vmem %s0, 32
  %v549 = vld [vmem:[%s548] sm:$0xff]
  %550 = vrot.lane.b32.xlu0 %v549, 118
  %v551 = vpop.permute.xlu0 %550
  %vm552 = vcmask 15360
  %s553 = scalar_lea.vmem %s1, 517
  %554 = vst.msk [vmem:[%s553] ss:$16 sm:$0x3] %vm552, %v551
  %s555 = scalar_lea.vmem %s1, 517
  %556 = vst.msk [vmem:[%s555] ss:$16 sm:$0xc] %vm552, %v551
  %s557 = scalar_lea.vmem %s1, 517
  %558 = vst.msk [vmem:[%s557] ss:$16 sm:$0x30] %vm552, %v551
  %s559 = scalar_lea.vmem %s1, 517
  %560 = vst.msk [vmem:[%s559] ss:$16 sm:$0xc0] %vm552, %v551
  %s561 = scalar_lea.vmem %s0, 40
  %v562 = vld [vmem:[%s561] sm:$0xff]
  %563 = vrot.lane.b32.xlu0 %v562, 118
  %v564 = vpop.permute.xlu0 %563
  %vm565 = vcmask 15360
  %s566 = scalar_lea.vmem %s1, 645
  %567 = vst.msk [vmem:[%s566] ss:$16 sm:$0x3] %vm565, %v564
  %s568 = scalar_lea.vmem %s1, 645
  %569 = vst.msk [vmem:[%s568] ss:$16 sm:$0xc] %vm565, %v564
  %s570 = scalar_lea.vmem %s1, 645
  %571 = vst.msk [vmem:[%s570] ss:$16 sm:$0x30] %vm565, %v564
  %s572 = scalar_lea.vmem %s1, 645
  %573 = vst.msk [vmem:[%s572] ss:$16 sm:$0xc0] %vm565, %v564
  %s574 = scalar_lea.vmem %s0, 48
  %v575 = vld [vmem:[%s574] sm:$0xff]
  %576 = vrot.lane.b32.xlu0 %v575, 118
  %v577 = vpop.permute.xlu0 %576
  %vm578 = vcmask 15360
  %s579 = scalar_lea.vmem %s1, 773
  %580 = vst.msk [vmem:[%s579] ss:$16 sm:$0x3] %vm578, %v577
  %s581 = scalar_lea.vmem %s1, 773
  %582 = vst.msk [vmem:[%s581] ss:$16 sm:$0xc] %vm578, %v577
  %s583 = scalar_lea.vmem %s1, 773
  %584 = vst.msk [vmem:[%s583] ss:$16 sm:$0x30] %vm578, %v577
  %s585 = scalar_lea.vmem %s1, 773
  %586 = vst.msk [vmem:[%s585] ss:$16 sm:$0xc0] %vm578, %v577
  %s587 = scalar_lea.vmem %s0, 56
  %v588 = vld [vmem:[%s587] sm:$0xff]
  %589 = vrot.lane.b32.xlu0 %v588, 118
  %v590 = vpop.permute.xlu0 %589
  %vm591 = vcmask 15360
  %s592 = scalar_lea.vmem %s1, 901
  %593 = vst.msk [vmem:[%s592] ss:$16 sm:$0x3] %vm591, %v590
  %s594 = scalar_lea.vmem %s1, 901
  %595 = vst.msk [vmem:[%s594] ss:$16 sm:$0xc] %vm591, %v590
  %s596 = scalar_lea.vmem %s1, 901
  %597 = vst.msk [vmem:[%s596] ss:$16 sm:$0x30] %vm591, %v590
  %s598 = scalar_lea.vmem %s1, 901
  %599 = vst.msk [vmem:[%s598] ss:$16 sm:$0xc0] %vm591, %v590
  %v600 = vld [vmem:[%s0] sm:$0xff]
  %601 = vrot.lane.b32.xlu0 %v600, 116
  %v602 = vpop.permute.xlu0 %601
  %vm603 = vcmask 15360
  %s604 = scalar_lea.vmem %s1, 6
  %605 = vst.msk [vmem:[%s604] ss:$16 sm:$0x3] %vm603, %v602
  %s606 = scalar_lea.vmem %s1, 6
  %607 = vst.msk [vmem:[%s606] ss:$16 sm:$0xc] %vm603, %v602
  %s608 = scalar_lea.vmem %s1, 6
  %609 = vst.msk [vmem:[%s608] ss:$16 sm:$0x30] %vm603, %v602
  %s610 = scalar_lea.vmem %s1, 6
  %611 = vst.msk [vmem:[%s610] ss:$16 sm:$0xc0] %vm603, %v602
  %s612 = scalar_lea.vmem %s0, 8
  %v613 = vld [vmem:[%s612] sm:$0xff]
  %614 = vrot.lane.b32.xlu0 %v613, 116
  %v615 = vpop.permute.xlu0 %614
  %vm616 = vcmask 15360
  %s617 = scalar_lea.vmem %s1, 134
  %618 = vst.msk [vmem:[%s617] ss:$16 sm:$0x3] %vm616, %v615
  %s619 = scalar_lea.vmem %s1, 134
  %620 = vst.msk [vmem:[%s619] ss:$16 sm:$0xc] %vm616, %v615
  %s621 = scalar_lea.vmem %s1, 134
  %622 = vst.msk [vmem:[%s621] ss:$16 sm:$0x30] %vm616, %v615
  %s623 = scalar_lea.vmem %s1, 134
  %624 = vst.msk [vmem:[%s623] ss:$16 sm:$0xc0] %vm616, %v615
  %s625 = scalar_lea.vmem %s0, 16
  %v626 = vld [vmem:[%s625] sm:$0xff]
  %627 = vrot.lane.b32.xlu0 %v626, 116
  %v628 = vpop.permute.xlu0 %627
  %vm629 = vcmask 15360
  %s630 = scalar_lea.vmem %s1, 262
  %631 = vst.msk [vmem:[%s630] ss:$16 sm:$0x3] %vm629, %v628
  %s632 = scalar_lea.vmem %s1, 262
  %633 = vst.msk [vmem:[%s632] ss:$16 sm:$0xc] %vm629, %v628
  %s634 = scalar_lea.vmem %s1, 262
  %635 = vst.msk [vmem:[%s634] ss:$16 sm:$0x30] %vm629, %v628
  %s636 = scalar_lea.vmem %s1, 262
  %637 = vst.msk [vmem:[%s636] ss:$16 sm:$0xc0] %vm629, %v628
  %s638 = scalar_lea.vmem %s0, 24
  %v639 = vld [vmem:[%s638] sm:$0xff]
  %640 = vrot.lane.b32.xlu0 %v639, 116
  %v641 = vpop.permute.xlu0 %640
  %vm642 = vcmask 15360
  %s643 = scalar_lea.vmem %s1, 390
  %644 = vst.msk [vmem:[%s643] ss:$16 sm:$0x3] %vm642, %v641
  %s645 = scalar_lea.vmem %s1, 390
  %646 = vst.msk [vmem:[%s645] ss:$16 sm:$0xc] %vm642, %v641
  %s647 = scalar_lea.vmem %s1, 390
  %648 = vst.msk [vmem:[%s647] ss:$16 sm:$0x30] %vm642, %v641
  %s649 = scalar_lea.vmem %s1, 390
  %650 = vst.msk [vmem:[%s649] ss:$16 sm:$0xc0] %vm642, %v641
  %s651 = scalar_lea.vmem %s0, 32
  %v652 = vld [vmem:[%s651] sm:$0xff]
  %653 = vrot.lane.b32.xlu0 %v652, 116
  %v654 = vpop.permute.xlu0 %653
  %vm655 = vcmask 15360
  %s656 = scalar_lea.vmem %s1, 518
  %657 = vst.msk [vmem:[%s656] ss:$16 sm:$0x3] %vm655, %v654
  %s658 = scalar_lea.vmem %s1, 518
  %659 = vst.msk [vmem:[%s658] ss:$16 sm:$0xc] %vm655, %v654
  %s660 = scalar_lea.vmem %s1, 518
  %661 = vst.msk [vmem:[%s660] ss:$16 sm:$0x30] %vm655, %v654
  %s662 = scalar_lea.vmem %s1, 518
  %663 = vst.msk [vmem:[%s662] ss:$16 sm:$0xc0] %vm655, %v654
  %s664 = scalar_lea.vmem %s0, 40
  %v665 = vld [vmem:[%s664] sm:$0xff]
  %666 = vrot.lane.b32.xlu0 %v665, 116
  %v667 = vpop.permute.xlu0 %666
  %vm668 = vcmask 15360
  %s669 = scalar_lea.vmem %s1, 646
  %670 = vst.msk [vmem:[%s669] ss:$16 sm:$0x3] %vm668, %v667
  %s671 = scalar_lea.vmem %s1, 646
  %672 = vst.msk [vmem:[%s671] ss:$16 sm:$0xc] %vm668, %v667
  %s673 = scalar_lea.vmem %s1, 646
  %674 = vst.msk [vmem:[%s673] ss:$16 sm:$0x30] %vm668, %v667
  %s675 = scalar_lea.vmem %s1, 646
  %676 = vst.msk [vmem:[%s675] ss:$16 sm:$0xc0] %vm668, %v667
  %s677 = scalar_lea.vmem %s0, 48
  %v678 = vld [vmem:[%s677] sm:$0xff]
  %679 = vrot.lane.b32.xlu0 %v678, 116
  %v680 = vpop.permute.xlu0 %679
  %vm681 = vcmask 15360
  %s682 = scalar_lea.vmem %s1, 774
  %683 = vst.msk [vmem:[%s682] ss:$16 sm:$0x3] %vm681, %v680
  %s684 = scalar_lea.vmem %s1, 774
  %685 = vst.msk [vmem:[%s684] ss:$16 sm:$0xc] %vm681, %v680
  %s686 = scalar_lea.vmem %s1, 774
  %687 = vst.msk [vmem:[%s686] ss:$16 sm:$0x30] %vm681, %v680
  %s688 = scalar_lea.vmem %s1, 774
  %689 = vst.msk [vmem:[%s688] ss:$16 sm:$0xc0] %vm681, %v680
  %s690 = scalar_lea.vmem %s0, 56
  %v691 = vld [vmem:[%s690] sm:$0xff]
  %692 = vrot.lane.b32.xlu0 %v691, 116
  %v693 = vpop.permute.xlu0 %692
  %vm694 = vcmask 15360
  %s695 = scalar_lea.vmem %s1, 902
  %696 = vst.msk [vmem:[%s695] ss:$16 sm:$0x3] %vm694, %v693
  %s697 = scalar_lea.vmem %s1, 902
  %698 = vst.msk [vmem:[%s697] ss:$16 sm:$0xc] %vm694, %v693
  %s699 = scalar_lea.vmem %s1, 902
  %700 = vst.msk [vmem:[%s699] ss:$16 sm:$0x30] %vm694, %v693
  %s701 = scalar_lea.vmem %s1, 902
  %702 = vst.msk [vmem:[%s701] ss:$16 sm:$0xc0] %vm694, %v693
  %v703 = vld [vmem:[%s0] sm:$0xff]
  %704 = vrot.lane.b32.xlu0 %v703, 114
  %v705 = vpop.permute.xlu0 %704
  %vm706 = vcmask 15360
  %s707 = scalar_lea.vmem %s1, 7
  %708 = vst.msk [vmem:[%s707] ss:$16 sm:$0x3] %vm706, %v705
  %s709 = scalar_lea.vmem %s1, 7
  %710 = vst.msk [vmem:[%s709] ss:$16 sm:$0xc] %vm706, %v705
  %s711 = scalar_lea.vmem %s1, 7
  %712 = vst.msk [vmem:[%s711] ss:$16 sm:$0x30] %vm706, %v705
  %s713 = scalar_lea.vmem %s1, 7
  %714 = vst.msk [vmem:[%s713] ss:$16 sm:$0xc0] %vm706, %v705
  %s715 = scalar_lea.vmem %s0, 8
  %v716 = vld [vmem:[%s715] sm:$0xff]
  %717 = vrot.lane.b32.xlu0 %v716, 114
  %v718 = vpop.permute.xlu0 %717
  %vm719 = vcmask 15360
  %s720 = scalar_lea.vmem %s1, 135
  %721 = vst.msk [vmem:[%s720] ss:$16 sm:$0x3] %vm719, %v718
  %s722 = scalar_lea.vmem %s1, 135
  %723 = vst.msk [vmem:[%s722] ss:$16 sm:$0xc] %vm719, %v718
  %s724 = scalar_lea.vmem %s1, 135
  %725 = vst.msk [vmem:[%s724] ss:$16 sm:$0x30] %vm719, %v718
  %s726 = scalar_lea.vmem %s1, 135
  %727 = vst.msk [vmem:[%s726] ss:$16 sm:$0xc0] %vm719, %v718
  %s728 = scalar_lea.vmem %s0, 16
  %v729 = vld [vmem:[%s728] sm:$0xff]
  %730 = vrot.lane.b32.xlu0 %v729, 114
  %v731 = vpop.permute.xlu0 %730
  %vm732 = vcmask 15360
  %s733 = scalar_lea.vmem %s1, 263
  %734 = vst.msk [vmem:[%s733] ss:$16 sm:$0x3] %vm732, %v731
  %s735 = scalar_lea.vmem %s1, 263
  %736 = vst.msk [vmem:[%s735] ss:$16 sm:$0xc] %vm732, %v731
  %s737 = scalar_lea.vmem %s1, 263
  %738 = vst.msk [vmem:[%s737] ss:$16 sm:$0x30] %vm732, %v731
  %s739 = scalar_lea.vmem %s1, 263
  %740 = vst.msk [vmem:[%s739] ss:$16 sm:$0xc0] %vm732, %v731
  %s741 = scalar_lea.vmem %s0, 24
  %v742 = vld [vmem:[%s741] sm:$0xff]
  %743 = vrot.lane.b32.xlu0 %v742, 114
  %v744 = vpop.permute.xlu0 %743
  %vm745 = vcmask 15360
  %s746 = scalar_lea.vmem %s1, 391
  %747 = vst.msk [vmem:[%s746] ss:$16 sm:$0x3] %vm745, %v744
  %s748 = scalar_lea.vmem %s1, 391
  %749 = vst.msk [vmem:[%s748] ss:$16 sm:$0xc] %vm745, %v744
  %s750 = scalar_lea.vmem %s1, 391
  %751 = vst.msk [vmem:[%s750] ss:$16 sm:$0x30] %vm745, %v744
  %s752 = scalar_lea.vmem %s1, 391
  %753 = vst.msk [vmem:[%s752] ss:$16 sm:$0xc0] %vm745, %v744
  %s754 = scalar_lea.vmem %s0, 32
  %v755 = vld [vmem:[%s754] sm:$0xff]
  %756 = vrot.lane.b32.xlu0 %v755, 114
  %v757 = vpop.permute.xlu0 %756
  %vm758 = vcmask 15360
  %s759 = scalar_lea.vmem %s1, 519
  %760 = vst.msk [vmem:[%s759] ss:$16 sm:$0x3] %vm758, %v757
  %s761 = scalar_lea.vmem %s1, 519
  %762 = vst.msk [vmem:[%s761] ss:$16 sm:$0xc] %vm758, %v757
  %s763 = scalar_lea.vmem %s1, 519
  %764 = vst.msk [vmem:[%s763] ss:$16 sm:$0x30] %vm758, %v757
  %s765 = scalar_lea.vmem %s1, 519
  %766 = vst.msk [vmem:[%s765] ss:$16 sm:$0xc0] %vm758, %v757
  %s767 = scalar_lea.vmem %s0, 40
  %v768 = vld [vmem:[%s767] sm:$0xff]
  %769 = vrot.lane.b32.xlu0 %v768, 114
  %v770 = vpop.permute.xlu0 %769
  %vm771 = vcmask 15360
  %s772 = scalar_lea.vmem %s1, 647
  %773 = vst.msk [vmem:[%s772] ss:$16 sm:$0x3] %vm771, %v770
  %s774 = scalar_lea.vmem %s1, 647
  %775 = vst.msk [vmem:[%s774] ss:$16 sm:$0xc] %vm771, %v770
  %s776 = scalar_lea.vmem %s1, 647
  %777 = vst.msk [vmem:[%s776] ss:$16 sm:$0x30] %vm771, %v770
  %s778 = scalar_lea.vmem %s1, 647
  %779 = vst.msk [vmem:[%s778] ss:$16 sm:$0xc0] %vm771, %v770
  %s780 = scalar_lea.vmem %s0, 48
  %v781 = vld [vmem:[%s780] sm:$0xff]
  %782 = vrot.lane.b32.xlu0 %v781, 114
  %v783 = vpop.permute.xlu0 %782
  %vm784 = vcmask 15360
  %s785 = scalar_lea.vmem %s1, 775
  %786 = vst.msk [vmem:[%s785] ss:$16 sm:$0x3] %vm784, %v783
  %s787 = scalar_lea.vmem %s1, 775
  %788 = vst.msk [vmem:[%s787] ss:$16 sm:$0xc] %vm784, %v783
  %s789 = scalar_lea.vmem %s1, 775
  %790 = vst.msk [vmem:[%s789] ss:$16 sm:$0x30] %vm784, %v783
  %s791 = scalar_lea.vmem %s1, 775
  %792 = vst.msk [vmem:[%s791] ss:$16 sm:$0xc0] %vm784, %v783
  %s793 = scalar_lea.vmem %s0, 56
  %v794 = vld [vmem:[%s793] sm:$0xff]
  %795 = vrot.lane.b32.xlu0 %v794, 114
  %v796 = vpop.permute.xlu0 %795
  %vm797 = vcmask 15360
  %s798 = scalar_lea.vmem %s1, 903
  %799 = vst.msk [vmem:[%s798] ss:$16 sm:$0x3] %vm797, %v796
  %s800 = scalar_lea.vmem %s1, 903
  %801 = vst.msk [vmem:[%s800] ss:$16 sm:$0xc] %vm797, %v796
  %s802 = scalar_lea.vmem %s1, 903
  %803 = vst.msk [vmem:[%s802] ss:$16 sm:$0x30] %vm797, %v796
  %s804 = scalar_lea.vmem %s1, 903
  %805 = vst.msk [vmem:[%s804] ss:$16 sm:$0xc0] %vm797, %v796
  %v806 = vld [vmem:[%s0] sm:$0xff]
  %807 = vrot.lane.b32.xlu0 %v806, 112
  %v808 = vpop.permute.xlu0 %807
  %vm809 = vcmask 15360
  %s810 = scalar_lea.vmem %s1, 8
  %811 = vst.msk [vmem:[%s810] ss:$16 sm:$0x3] %vm809, %v808
  %s812 = scalar_lea.vmem %s1, 8
  %813 = vst.msk [vmem:[%s812] ss:$16 sm:$0xc] %vm809, %v808
  %s814 = scalar_lea.vmem %s1, 8
  %815 = vst.msk [vmem:[%s814] ss:$16 sm:$0x30] %vm809, %v808
  %s816 = scalar_lea.vmem %s1, 8
  %817 = vst.msk [vmem:[%s816] ss:$16 sm:$0xc0] %vm809, %v808
  %s818 = scalar_lea.vmem %s0, 8
  %v819 = vld [vmem:[%s818] sm:$0xff]
  %820 = vrot.lane.b32.xlu0 %v819, 112
  %v821 = vpop.permute.xlu0 %820
  %vm822 = vcmask 15360
  %s823 = scalar_lea.vmem %s1, 136
  %824 = vst.msk [vmem:[%s823] ss:$16 sm:$0x3] %vm822, %v821
  %s825 = scalar_lea.vmem %s1, 136
  %826 = vst.msk [vmem:[%s825] ss:$16 sm:$0xc] %vm822, %v821
  %s827 = scalar_lea.vmem %s1, 136
  %828 = vst.msk [vmem:[%s827] ss:$16 sm:$0x30] %vm822, %v821
  %s829 = scalar_lea.vmem %s1, 136
  %830 = vst.msk [vmem:[%s829] ss:$16 sm:$0xc0] %vm822, %v821
  %s831 = scalar_lea.vmem %s0, 16
  %v832 = vld [vmem:[%s831] sm:$0xff]
  %833 = vrot.lane.b32.xlu0 %v832, 112
  %v834 = vpop.permute.xlu0 %833
  %vm835 = vcmask 15360
  %s836 = scalar_lea.vmem %s1, 264
  %837 = vst.msk [vmem:[%s836] ss:$16 sm:$0x3] %vm835, %v834
  %s838 = scalar_lea.vmem %s1, 264
  %839 = vst.msk [vmem:[%s838] ss:$16 sm:$0xc] %vm835, %v834
  %s840 = scalar_lea.vmem %s1, 264
  %841 = vst.msk [vmem:[%s840] ss:$16 sm:$0x30] %vm835, %v834
  %s842 = scalar_lea.vmem %s1, 264
  %843 = vst.msk [vmem:[%s842] ss:$16 sm:$0xc0] %vm835, %v834
  %s844 = scalar_lea.vmem %s0, 24
  %v845 = vld [vmem:[%s844] sm:$0xff]
  %846 = vrot.lane.b32.xlu0 %v845, 112
  %v847 = vpop.permute.xlu0 %846
  %vm848 = vcmask 15360
  %s849 = scalar_lea.vmem %s1, 392
  %850 = vst.msk [vmem:[%s849] ss:$16 sm:$0x3] %vm848, %v847
  %s851 = scalar_lea.vmem %s1, 392
  %852 = vst.msk [vmem:[%s851] ss:$16 sm:$0xc] %vm848, %v847
  %s853 = scalar_lea.vmem %s1, 392
  %854 = vst.msk [vmem:[%s853] ss:$16 sm:$0x30] %vm848, %v847
  %s855 = scalar_lea.vmem %s1, 392
  %856 = vst.msk [vmem:[%s855] ss:$16 sm:$0xc0] %vm848, %v847
  %s857 = scalar_lea.vmem %s0, 32
  %v858 = vld [vmem:[%s857] sm:$0xff]
  %859 = vrot.lane.b32.xlu0 %v858, 112
  %v860 = vpop.permute.xlu0 %859
  %vm861 = vcmask 15360
  %s862 = scalar_lea.vmem %s1, 520
  %863 = vst.msk [vmem:[%s862] ss:$16 sm:$0x3] %vm861, %v860
  %s864 = scalar_lea.vmem %s1, 520
  %865 = vst.msk [vmem:[%s864] ss:$16 sm:$0xc] %vm861, %v860
  %s866 = scalar_lea.vmem %s1, 520
  %867 = vst.msk [vmem:[%s866] ss:$16 sm:$0x30] %vm861, %v860
  %s868 = scalar_lea.vmem %s1, 520
  %869 = vst.msk [vmem:[%s868] ss:$16 sm:$0xc0] %vm861, %v860
  %s870 = scalar_lea.vmem %s0, 40
  %v871 = vld [vmem:[%s870] sm:$0xff]
  %872 = vrot.lane.b32.xlu0 %v871, 112
  %v873 = vpop.permute.xlu0 %872
  %vm874 = vcmask 15360
  %s875 = scalar_lea.vmem %s1, 648
  %876 = vst.msk [vmem:[%s875] ss:$16 sm:$0x3] %vm874, %v873
  %s877 = scalar_lea.vmem %s1, 648
  %878 = vst.msk [vmem:[%s877] ss:$16 sm:$0xc] %vm874, %v873
  %s879 = scalar_lea.vmem %s1, 648
  %880 = vst.msk [vmem:[%s879] ss:$16 sm:$0x30] %vm874, %v873
  %s881 = scalar_lea.vmem %s1, 648
  %882 = vst.msk [vmem:[%s881] ss:$16 sm:$0xc0] %vm874, %v873
  %s883 = scalar_lea.vmem %s0, 48
  %v884 = vld [vmem:[%s883] sm:$0xff]
  %885 = vrot.lane.b32.xlu0 %v884, 112
  %v886 = vpop.permute.xlu0 %885
  %vm887 = vcmask 15360
  %s888 = scalar_lea.vmem %s1, 776
  %889 = vst.msk [vmem:[%s888] ss:$16 sm:$0x3] %vm887, %v886
  %s890 = scalar_lea.vmem %s1, 776
  %891 = vst.msk [vmem:[%s890] ss:$16 sm:$0xc] %vm887, %v886
  %s892 = scalar_lea.vmem %s1, 776
  %893 = vst.msk [vmem:[%s892] ss:$16 sm:$0x30] %vm887, %v886
  %s894 = scalar_lea.vmem %s1, 776
  %895 = vst.msk [vmem:[%s894] ss:$16 sm:$0xc0] %vm887, %v886
  %s896 = scalar_lea.vmem %s0, 56
  %v897 = vld [vmem:[%s896] sm:$0xff]
  %898 = vrot.lane.b32.xlu0 %v897, 112
  %v899 = vpop.permute.xlu0 %898
  %vm900 = vcmask 15360
  %s901 = scalar_lea.vmem %s1, 904
  %902 = vst.msk [vmem:[%s901] ss:$16 sm:$0x3] %vm900, %v899
  %s903 = scalar_lea.vmem %s1, 904
  %904 = vst.msk [vmem:[%s903] ss:$16 sm:$0xc] %vm900, %v899
  %s905 = scalar_lea.vmem %s1, 904
  %906 = vst.msk [vmem:[%s905] ss:$16 sm:$0x30] %vm900, %v899
  %s907 = scalar_lea.vmem %s1, 904
  %908 = vst.msk [vmem:[%s907] ss:$16 sm:$0xc0] %vm900, %v899
  %v909 = vld [vmem:[%s0] sm:$0xff]
  %910 = vrot.lane.b32.xlu0 %v909, 110
  %v911 = vpop.permute.xlu0 %910
  %vm912 = vcmask 15360
  %s913 = scalar_lea.vmem %s1, 9
  %914 = vst.msk [vmem:[%s913] ss:$16 sm:$0x3] %vm912, %v911
  %s915 = scalar_lea.vmem %s1, 9
  %916 = vst.msk [vmem:[%s915] ss:$16 sm:$0xc] %vm912, %v911
  %s917 = scalar_lea.vmem %s1, 9
  %918 = vst.msk [vmem:[%s917] ss:$16 sm:$0x30] %vm912, %v911
  %s919 = scalar_lea.vmem %s1, 9
  %920 = vst.msk [vmem:[%s919] ss:$16 sm:$0xc0] %vm912, %v911
  %s921 = scalar_lea.vmem %s0, 8
  %v922 = vld [vmem:[%s921] sm:$0xff]
  %923 = vrot.lane.b32.xlu0 %v922, 110
  %v924 = vpop.permute.xlu0 %923
  %vm925 = vcmask 15360
  %s926 = scalar_lea.vmem %s1, 137
  %927 = vst.msk [vmem:[%s926] ss:$16 sm:$0x3] %vm925, %v924
  %s928 = scalar_lea.vmem %s1, 137
  %929 = vst.msk [vmem:[%s928] ss:$16 sm:$0xc] %vm925, %v924
  %s930 = scalar_lea.vmem %s1, 137
  %931 = vst.msk [vmem:[%s930] ss:$16 sm:$0x30] %vm925, %v924
  %s932 = scalar_lea.vmem %s1, 137
  %933 = vst.msk [vmem:[%s932] ss:$16 sm:$0xc0] %vm925, %v924
  %s934 = scalar_lea.vmem %s0, 16
  %v935 = vld [vmem:[%s934] sm:$0xff]
  %936 = vrot.lane.b32.xlu0 %v935, 110
  %v937 = vpop.permute.xlu0 %936
  %vm938 = vcmask 15360
  %s939 = scalar_lea.vmem %s1, 265
  %940 = vst.msk [vmem:[%s939] ss:$16 sm:$0x3] %vm938, %v937
  %s941 = scalar_lea.vmem %s1, 265
  %942 = vst.msk [vmem:[%s941] ss:$16 sm:$0xc] %vm938, %v937
  %s943 = scalar_lea.vmem %s1, 265
  %944 = vst.msk [vmem:[%s943] ss:$16 sm:$0x30] %vm938, %v937
  %s945 = scalar_lea.vmem %s1, 265
  %946 = vst.msk [vmem:[%s945] ss:$16 sm:$0xc0] %vm938, %v937
  %s947 = scalar_lea.vmem %s0, 24
  %v948 = vld [vmem:[%s947] sm:$0xff]
  %949 = vrot.lane.b32.xlu0 %v948, 110
  %v950 = vpop.permute.xlu0 %949
  %vm951 = vcmask 15360
  %s952 = scalar_lea.vmem %s1, 393
  %953 = vst.msk [vmem:[%s952] ss:$16 sm:$0x3] %vm951, %v950
  %s954 = scalar_lea.vmem %s1, 393
  %955 = vst.msk [vmem:[%s954] ss:$16 sm:$0xc] %vm951, %v950
  %s956 = scalar_lea.vmem %s1, 393
  %957 = vst.msk [vmem:[%s956] ss:$16 sm:$0x30] %vm951, %v950
  %s958 = scalar_lea.vmem %s1, 393
  %959 = vst.msk [vmem:[%s958] ss:$16 sm:$0xc0] %vm951, %v950
  %s960 = scalar_lea.vmem %s0, 32
  %v961 = vld [vmem:[%s960] sm:$0xff]
  %962 = vrot.lane.b32.xlu0 %v961, 110
  %v963 = vpop.permute.xlu0 %962
  %vm964 = vcmask 15360
  %s965 = scalar_lea.vmem %s1, 521
  %966 = vst.msk [vmem:[%s965] ss:$16 sm:$0x3] %vm964, %v963
  %s967 = scalar_lea.vmem %s1, 521
  %968 = vst.msk [vmem:[%s967] ss:$16 sm:$0xc] %vm964, %v963
  %s969 = scalar_lea.vmem %s1, 521
  %970 = vst.msk [vmem:[%s969] ss:$16 sm:$0x30] %vm964, %v963
  %s971 = scalar_lea.vmem %s1, 521
  %972 = vst.msk [vmem:[%s971] ss:$16 sm:$0xc0] %vm964, %v963
  %s973 = scalar_lea.vmem %s0, 40
  %v974 = vld [vmem:[%s973] sm:$0xff]
  %975 = vrot.lane.b32.xlu0 %v974, 110
  %v976 = vpop.permute.xlu0 %975
  %vm977 = vcmask 15360
  %s978 = scalar_lea.vmem %s1, 649
  %979 = vst.msk [vmem:[%s978] ss:$16 sm:$0x3] %vm977, %v976
  %s980 = scalar_lea.vmem %s1, 649
  %981 = vst.msk [vmem:[%s980] ss:$16 sm:$0xc] %vm977, %v976
  %s982 = scalar_lea.vmem %s1, 649
  %983 = vst.msk [vmem:[%s982] ss:$16 sm:$0x30] %vm977, %v976
  %s984 = scalar_lea.vmem %s1, 649
  %985 = vst.msk [vmem:[%s984] ss:$16 sm:$0xc0] %vm977, %v976
  %s986 = scalar_lea.vmem %s0, 48
  %v987 = vld [vmem:[%s986] sm:$0xff]
  %988 = vrot.lane.b32.xlu0 %v987, 110
  %v989 = vpop.permute.xlu0 %988
  %vm990 = vcmask 15360
  %s991 = scalar_lea.vmem %s1, 777
  %992 = vst.msk [vmem:[%s991] ss:$16 sm:$0x3] %vm990, %v989
  %s993 = scalar_lea.vmem %s1, 777
  %994 = vst.msk [vmem:[%s993] ss:$16 sm:$0xc] %vm990, %v989
  %s995 = scalar_lea.vmem %s1, 777
  %996 = vst.msk [vmem:[%s995] ss:$16 sm:$0x30] %vm990, %v989
  %s997 = scalar_lea.vmem %s1, 777
  %998 = vst.msk [vmem:[%s997] ss:$16 sm:$0xc0] %vm990, %v989
  %s999 = scalar_lea.vmem %s0, 56
  %v1000 = vld [vmem:[%s999] sm:$0xff]
  %1001 = vrot.lane.b32.xlu0 %v1000, 110
  %v1002 = vpop.permute.xlu0 %1001
  %vm1003 = vcmask 15360
  %s1004 = scalar_lea.vmem %s1, 905
  %1005 = vst.msk [vmem:[%s1004] ss:$16 sm:$0x3] %vm1003, %v1002
  %s1006 = scalar_lea.vmem %s1, 905
  %1007 = vst.msk [vmem:[%s1006] ss:$16 sm:$0xc] %vm1003, %v1002
  %s1008 = scalar_lea.vmem %s1, 905
  %1009 = vst.msk [vmem:[%s1008] ss:$16 sm:$0x30] %vm1003, %v1002
  %s1010 = scalar_lea.vmem %s1, 905
  %1011 = vst.msk [vmem:[%s1010] ss:$16 sm:$0xc0] %vm1003, %v1002
  %v1012 = vld [vmem:[%s0] sm:$0xff]
  %1013 = vrot.lane.b32.xlu0 %v1012, 108
  %v1014 = vpop.permute.xlu0 %1013
  %vm1015 = vcmask 15360
  %s1016 = scalar_lea.vmem %s1, 10
  %1017 = vst.msk [vmem:[%s1016] ss:$16 sm:$0x3] %vm1015, %v1014
  %s1018 = scalar_lea.vmem %s1, 10
  %1019 = vst.msk [vmem:[%s1018] ss:$16 sm:$0xc] %vm1015, %v1014
  %s1020 = scalar_lea.vmem %s1, 10
  %1021 = vst.msk [vmem:[%s1020] ss:$16 sm:$0x30] %vm1015, %v1014
  %s1022 = scalar_lea.vmem %s1, 10
  %1023 = vst.msk [vmem:[%s1022] ss:$16 sm:$0xc0] %vm1015, %v1014
  %s1024 = scalar_lea.vmem %s0, 8
  %v1025 = vld [vmem:[%s1024] sm:$0xff]
  %1026 = vrot.lane.b32.xlu0 %v1025, 108
  %v1027 = vpop.permute.xlu0 %1026
  %vm1028 = vcmask 15360
  %s1029 = scalar_lea.vmem %s1, 138
  %1030 = vst.msk [vmem:[%s1029] ss:$16 sm:$0x3] %vm1028, %v1027
  %s1031 = scalar_lea.vmem %s1, 138
  %1032 = vst.msk [vmem:[%s1031] ss:$16 sm:$0xc] %vm1028, %v1027
  %s1033 = scalar_lea.vmem %s1, 138
  %1034 = vst.msk [vmem:[%s1033] ss:$16 sm:$0x30] %vm1028, %v1027
  %s1035 = scalar_lea.vmem %s1, 138
  %1036 = vst.msk [vmem:[%s1035] ss:$16 sm:$0xc0] %vm1028, %v1027
  %s1037 = scalar_lea.vmem %s0, 16
  %v1038 = vld [vmem:[%s1037] sm:$0xff]
  %1039 = vrot.lane.b32.xlu0 %v1038, 108
  %v1040 = vpop.permute.xlu0 %1039
  %vm1041 = vcmask 15360
  %s1042 = scalar_lea.vmem %s1, 266
  %1043 = vst.msk [vmem:[%s1042] ss:$16 sm:$0x3] %vm1041, %v1040
  %s1044 = scalar_lea.vmem %s1, 266
  %1045 = vst.msk [vmem:[%s1044] ss:$16 sm:$0xc] %vm1041, %v1040
  %s1046 = scalar_lea.vmem %s1, 266
  %1047 = vst.msk [vmem:[%s1046] ss:$16 sm:$0x30] %vm1041, %v1040
  %s1048 = scalar_lea.vmem %s1, 266
  %1049 = vst.msk [vmem:[%s1048] ss:$16 sm:$0xc0] %vm1041, %v1040
  %s1050 = scalar_lea.vmem %s0, 24
  %v1051 = vld [vmem:[%s1050] sm:$0xff]
  %1052 = vrot.lane.b32.xlu0 %v1051, 108
  %v1053 = vpop.permute.xlu0 %1052
  %vm1054 = vcmask 15360
  %s1055 = scalar_lea.vmem %s1, 394
  %1056 = vst.msk [vmem:[%s1055] ss:$16 sm:$0x3] %vm1054, %v1053
  %s1057 = scalar_lea.vmem %s1, 394
  %1058 = vst.msk [vmem:[%s1057] ss:$16 sm:$0xc] %vm1054, %v1053
  %s1059 = scalar_lea.vmem %s1, 394
  %1060 = vst.msk [vmem:[%s1059] ss:$16 sm:$0x30] %vm1054, %v1053
  %s1061 = scalar_lea.vmem %s1, 394
  %1062 = vst.msk [vmem:[%s1061] ss:$16 sm:$0xc0] %vm1054, %v1053
  %s1063 = scalar_lea.vmem %s0, 32
  %v1064 = vld [vmem:[%s1063] sm:$0xff]
  %1065 = vrot.lane.b32.xlu0 %v1064, 108
  %v1066 = vpop.permute.xlu0 %1065
  %vm1067 = vcmask 15360
  %s1068 = scalar_lea.vmem %s1, 522
  %1069 = vst.msk [vmem:[%s1068] ss:$16 sm:$0x3] %vm1067, %v1066
  %s1070 = scalar_lea.vmem %s1, 522
  %1071 = vst.msk [vmem:[%s1070] ss:$16 sm:$0xc] %vm1067, %v1066
  %s1072 = scalar_lea.vmem %s1, 522
  %1073 = vst.msk [vmem:[%s1072] ss:$16 sm:$0x30] %vm1067, %v1066
  %s1074 = scalar_lea.vmem %s1, 522
  %1075 = vst.msk [vmem:[%s1074] ss:$16 sm:$0xc0] %vm1067, %v1066
  %s1076 = scalar_lea.vmem %s0, 40
  %v1077 = vld [vmem:[%s1076] sm:$0xff]
  %1078 = vrot.lane.b32.xlu0 %v1077, 108
  %v1079 = vpop.permute.xlu0 %1078
  %vm1080 = vcmask 15360
  %s1081 = scalar_lea.vmem %s1, 650
  %1082 = vst.msk [vmem:[%s1081] ss:$16 sm:$0x3] %vm1080, %v1079
  %s1083 = scalar_lea.vmem %s1, 650
  %1084 = vst.msk [vmem:[%s1083] ss:$16 sm:$0xc] %vm1080, %v1079
  %s1085 = scalar_lea.vmem %s1, 650
  %1086 = vst.msk [vmem:[%s1085] ss:$16 sm:$0x30] %vm1080, %v1079
  %s1087 = scalar_lea.vmem %s1, 650
  %1088 = vst.msk [vmem:[%s1087] ss:$16 sm:$0xc0] %vm1080, %v1079
  %s1089 = scalar_lea.vmem %s0, 48
  %v1090 = vld [vmem:[%s1089] sm:$0xff]
  %1091 = vrot.lane.b32.xlu0 %v1090, 108
  %v1092 = vpop.permute.xlu0 %1091
  %vm1093 = vcmask 15360
  %s1094 = scalar_lea.vmem %s1, 778
  %1095 = vst.msk [vmem:[%s1094] ss:$16 sm:$0x3] %vm1093, %v1092
  %s1096 = scalar_lea.vmem %s1, 778
  %1097 = vst.msk [vmem:[%s1096] ss:$16 sm:$0xc] %vm1093, %v1092
  %s1098 = scalar_lea.vmem %s1, 778
  %1099 = vst.msk [vmem:[%s1098] ss:$16 sm:$0x30] %vm1093, %v1092
  %s1100 = scalar_lea.vmem %s1, 778
  %1101 = vst.msk [vmem:[%s1100] ss:$16 sm:$0xc0] %vm1093, %v1092
  %s1102 = scalar_lea.vmem %s0, 56
  %v1103 = vld [vmem:[%s1102] sm:$0xff]
  %1104 = vrot.lane.b32.xlu0 %v1103, 108
  %v1105 = vpop.permute.xlu0 %1104
  %vm1106 = vcmask 15360
  %s1107 = scalar_lea.vmem %s1, 906
  %1108 = vst.msk [vmem:[%s1107] ss:$16 sm:$0x3] %vm1106, %v1105
  %s1109 = scalar_lea.vmem %s1, 906
  %1110 = vst.msk [vmem:[%s1109] ss:$16 sm:$0xc] %vm1106, %v1105
  %s1111 = scalar_lea.vmem %s1, 906
  %1112 = vst.msk [vmem:[%s1111] ss:$16 sm:$0x30] %vm1106, %v1105
  %s1113 = scalar_lea.vmem %s1, 906
  %1114 = vst.msk [vmem:[%s1113] ss:$16 sm:$0xc0] %vm1106, %v1105
  %v1115 = vld [vmem:[%s0] sm:$0xff]
  %1116 = vrot.lane.b32.xlu0 %v1115, 106
  %v1117 = vpop.permute.xlu0 %1116
  %vm1118 = vcmask 15360
  %s1119 = scalar_lea.vmem %s1, 11
  %1120 = vst.msk [vmem:[%s1119] ss:$16 sm:$0x3] %vm1118, %v1117
  %s1121 = scalar_lea.vmem %s1, 11
  %1122 = vst.msk [vmem:[%s1121] ss:$16 sm:$0xc] %vm1118, %v1117
  %s1123 = scalar_lea.vmem %s1, 11
  %1124 = vst.msk [vmem:[%s1123] ss:$16 sm:$0x30] %vm1118, %v1117
  %s1125 = scalar_lea.vmem %s1, 11
  %1126 = vst.msk [vmem:[%s1125] ss:$16 sm:$0xc0] %vm1118, %v1117
  %s1127 = scalar_lea.vmem %s0, 8
  %v1128 = vld [vmem:[%s1127] sm:$0xff]
  %1129 = vrot.lane.b32.xlu0 %v1128, 106
  %v1130 = vpop.permute.xlu0 %1129
  %vm1131 = vcmask 15360
  %s1132 = scalar_lea.vmem %s1, 139
  %1133 = vst.msk [vmem:[%s1132] ss:$16 sm:$0x3] %vm1131, %v1130
  %s1134 = scalar_lea.vmem %s1, 139
  %1135 = vst.msk [vmem:[%s1134] ss:$16 sm:$0xc] %vm1131, %v1130
  %s1136 = scalar_lea.vmem %s1, 139
  %1137 = vst.msk [vmem:[%s1136] ss:$16 sm:$0x30] %vm1131, %v1130
  %s1138 = scalar_lea.vmem %s1, 139
  %1139 = vst.msk [vmem:[%s1138] ss:$16 sm:$0xc0] %vm1131, %v1130
  %s1140 = scalar_lea.vmem %s0, 16
  %v1141 = vld [vmem:[%s1140] sm:$0xff]
  %1142 = vrot.lane.b32.xlu0 %v1141, 106
  %v1143 = vpop.permute.xlu0 %1142
  %vm1144 = vcmask 15360
  %s1145 = scalar_lea.vmem %s1, 267
  %1146 = vst.msk [vmem:[%s1145] ss:$16 sm:$0x3] %vm1144, %v1143
  %s1147 = scalar_lea.vmem %s1, 267
  %1148 = vst.msk [vmem:[%s1147] ss:$16 sm:$0xc] %vm1144, %v1143
  %s1149 = scalar_lea.vmem %s1, 267
  %1150 = vst.msk [vmem:[%s1149] ss:$16 sm:$0x30] %vm1144, %v1143
  %s1151 = scalar_lea.vmem %s1, 267
  %1152 = vst.msk [vmem:[%s1151] ss:$16 sm:$0xc0] %vm1144, %v1143
  %s1153 = scalar_lea.vmem %s0, 24
  %v1154 = vld [vmem:[%s1153] sm:$0xff]
  %1155 = vrot.lane.b32.xlu0 %v1154, 106
  %v1156 = vpop.permute.xlu0 %1155
  %vm1157 = vcmask 15360
  %s1158 = scalar_lea.vmem %s1, 395
  %1159 = vst.msk [vmem:[%s1158] ss:$16 sm:$0x3] %vm1157, %v1156
  %s1160 = scalar_lea.vmem %s1, 395
  %1161 = vst.msk [vmem:[%s1160] ss:$16 sm:$0xc] %vm1157, %v1156
  %s1162 = scalar_lea.vmem %s1, 395
  %1163 = vst.msk [vmem:[%s1162] ss:$16 sm:$0x30] %vm1157, %v1156
  %s1164 = scalar_lea.vmem %s1, 395
  %1165 = vst.msk [vmem:[%s1164] ss:$16 sm:$0xc0] %vm1157, %v1156
  %s1166 = scalar_lea.vmem %s0, 32
  %v1167 = vld [vmem:[%s1166] sm:$0xff]
  %1168 = vrot.lane.b32.xlu0 %v1167, 106
  %v1169 = vpop.permute.xlu0 %1168
  %vm1170 = vcmask 15360
  %s1171 = scalar_lea.vmem %s1, 523
  %1172 = vst.msk [vmem:[%s1171] ss:$16 sm:$0x3] %vm1170, %v1169
  %s1173 = scalar_lea.vmem %s1, 523
  %1174 = vst.msk [vmem:[%s1173] ss:$16 sm:$0xc] %vm1170, %v1169
  %s1175 = scalar_lea.vmem %s1, 523
  %1176 = vst.msk [vmem:[%s1175] ss:$16 sm:$0x30] %vm1170, %v1169
  %s1177 = scalar_lea.vmem %s1, 523
  %1178 = vst.msk [vmem:[%s1177] ss:$16 sm:$0xc0] %vm1170, %v1169
  %s1179 = scalar_lea.vmem %s0, 40
  %v1180 = vld [vmem:[%s1179] sm:$0xff]
  %1181 = vrot.lane.b32.xlu0 %v1180, 106
  %v1182 = vpop.permute.xlu0 %1181
  %vm1183 = vcmask 15360
  %s1184 = scalar_lea.vmem %s1, 651
  %1185 = vst.msk [vmem:[%s1184] ss:$16 sm:$0x3] %vm1183, %v1182
  %s1186 = scalar_lea.vmem %s1, 651
  %1187 = vst.msk [vmem:[%s1186] ss:$16 sm:$0xc] %vm1183, %v1182
  %s1188 = scalar_lea.vmem %s1, 651
  %1189 = vst.msk [vmem:[%s1188] ss:$16 sm:$0x30] %vm1183, %v1182
  %s1190 = scalar_lea.vmem %s1, 651
  %1191 = vst.msk [vmem:[%s1190] ss:$16 sm:$0xc0] %vm1183, %v1182
  %s1192 = scalar_lea.vmem %s0, 48
  %v1193 = vld [vmem:[%s1192] sm:$0xff]
  %1194 = vrot.lane.b32.xlu0 %v1193, 106
  %v1195 = vpop.permute.xlu0 %1194
  %vm1196 = vcmask 15360
  %s1197 = scalar_lea.vmem %s1, 779
  %1198 = vst.msk [vmem:[%s1197] ss:$16 sm:$0x3] %vm1196, %v1195
  %s1199 = scalar_lea.vmem %s1, 779
  %1200 = vst.msk [vmem:[%s1199] ss:$16 sm:$0xc] %vm1196, %v1195
  %s1201 = scalar_lea.vmem %s1, 779
  %1202 = vst.msk [vmem:[%s1201] ss:$16 sm:$0x30] %vm1196, %v1195
  %s1203 = scalar_lea.vmem %s1, 779
  %1204 = vst.msk [vmem:[%s1203] ss:$16 sm:$0xc0] %vm1196, %v1195
  %s1205 = scalar_lea.vmem %s0, 56
  %v1206 = vld [vmem:[%s1205] sm:$0xff]
  %1207 = vrot.lane.b32.xlu0 %v1206, 106
  %v1208 = vpop.permute.xlu0 %1207
  %vm1209 = vcmask 15360
  %s1210 = scalar_lea.vmem %s1, 907
  %1211 = vst.msk [vmem:[%s1210] ss:$16 sm:$0x3] %vm1209, %v1208
  %s1212 = scalar_lea.vmem %s1, 907
  %1213 = vst.msk [vmem:[%s1212] ss:$16 sm:$0xc] %vm1209, %v1208
  %s1214 = scalar_lea.vmem %s1, 907
  %1215 = vst.msk [vmem:[%s1214] ss:$16 sm:$0x30] %vm1209, %v1208
  %s1216 = scalar_lea.vmem %s1, 907
  %1217 = vst.msk [vmem:[%s1216] ss:$16 sm:$0xc0] %vm1209, %v1208
  %v1218 = vld [vmem:[%s0] sm:$0xff]
  %1219 = vrot.lane.b32.xlu0 %v1218, 104
  %v1220 = vpop.permute.xlu0 %1219
  %vm1221 = vcmask 15360
  %s1222 = scalar_lea.vmem %s1, 12
  %1223 = vst.msk [vmem:[%s1222] ss:$16 sm:$0x3] %vm1221, %v1220
  %s1224 = scalar_lea.vmem %s1, 12
  %1225 = vst.msk [vmem:[%s1224] ss:$16 sm:$0xc] %vm1221, %v1220
  %s1226 = scalar_lea.vmem %s1, 12
  %1227 = vst.msk [vmem:[%s1226] ss:$16 sm:$0x30] %vm1221, %v1220
  %s1228 = scalar_lea.vmem %s1, 12
  %1229 = vst.msk [vmem:[%s1228] ss:$16 sm:$0xc0] %vm1221, %v1220
  %s1230 = scalar_lea.vmem %s0, 8
  %v1231 = vld [vmem:[%s1230] sm:$0xff]
  %1232 = vrot.lane.b32.xlu0 %v1231, 104
  %v1233 = vpop.permute.xlu0 %1232
  %vm1234 = vcmask 15360
  %s1235 = scalar_lea.vmem %s1, 140
  %1236 = vst.msk [vmem:[%s1235] ss:$16 sm:$0x3] %vm1234, %v1233
  %s1237 = scalar_lea.vmem %s1, 140
  %1238 = vst.msk [vmem:[%s1237] ss:$16 sm:$0xc] %vm1234, %v1233
  %s1239 = scalar_lea.vmem %s1, 140
  %1240 = vst.msk [vmem:[%s1239] ss:$16 sm:$0x30] %vm1234, %v1233
  %s1241 = scalar_lea.vmem %s1, 140
  %1242 = vst.msk [vmem:[%s1241] ss:$16 sm:$0xc0] %vm1234, %v1233
  %s1243 = scalar_lea.vmem %s0, 16
  %v1244 = vld [vmem:[%s1243] sm:$0xff]
  %1245 = vrot.lane.b32.xlu0 %v1244, 104
  %v1246 = vpop.permute.xlu0 %1245
  %vm1247 = vcmask 15360
  %s1248 = scalar_lea.vmem %s1, 268
  %1249 = vst.msk [vmem:[%s1248] ss:$16 sm:$0x3] %vm1247, %v1246
  %s1250 = scalar_lea.vmem %s1, 268
  %1251 = vst.msk [vmem:[%s1250] ss:$16 sm:$0xc] %vm1247, %v1246
  %s1252 = scalar_lea.vmem %s1, 268
  %1253 = vst.msk [vmem:[%s1252] ss:$16 sm:$0x30] %vm1247, %v1246
  %s1254 = scalar_lea.vmem %s1, 268
  %1255 = vst.msk [vmem:[%s1254] ss:$16 sm:$0xc0] %vm1247, %v1246
  %s1256 = scalar_lea.vmem %s0, 24
  %v1257 = vld [vmem:[%s1256] sm:$0xff]
  %1258 = vrot.lane.b32.xlu0 %v1257, 104
  %v1259 = vpop.permute.xlu0 %1258
  %vm1260 = vcmask 15360
  %s1261 = scalar_lea.vmem %s1, 396
  %1262 = vst.msk [vmem:[%s1261] ss:$16 sm:$0x3] %vm1260, %v1259
  %s1263 = scalar_lea.vmem %s1, 396
  %1264 = vst.msk [vmem:[%s1263] ss:$16 sm:$0xc] %vm1260, %v1259
  %s1265 = scalar_lea.vmem %s1, 396
  %1266 = vst.msk [vmem:[%s1265] ss:$16 sm:$0x30] %vm1260, %v1259
  %s1267 = scalar_lea.vmem %s1, 396
  %1268 = vst.msk [vmem:[%s1267] ss:$16 sm:$0xc0] %vm1260, %v1259
  %s1269 = scalar_lea.vmem %s0, 32
  %v1270 = vld [vmem:[%s1269] sm:$0xff]
  %1271 = vrot.lane.b32.xlu0 %v1270, 104
  %v1272 = vpop.permute.xlu0 %1271
  %vm1273 = vcmask 15360
  %s1274 = scalar_lea.vmem %s1, 524
  %1275 = vst.msk [vmem:[%s1274] ss:$16 sm:$0x3] %vm1273, %v1272
  %s1276 = scalar_lea.vmem %s1, 524
  %1277 = vst.msk [vmem:[%s1276] ss:$16 sm:$0xc] %vm1273, %v1272
  %s1278 = scalar_lea.vmem %s1, 524
  %1279 = vst.msk [vmem:[%s1278] ss:$16 sm:$0x30] %vm1273, %v1272
  %s1280 = scalar_lea.vmem %s1, 524
  %1281 = vst.msk [vmem:[%s1280] ss:$16 sm:$0xc0] %vm1273, %v1272
  %s1282 = scalar_lea.vmem %s0, 40
  %v1283 = vld [vmem:[%s1282] sm:$0xff]
  %1284 = vrot.lane.b32.xlu0 %v1283, 104
  %v1285 = vpop.permute.xlu0 %1284
  %vm1286 = vcmask 15360
  %s1287 = scalar_lea.vmem %s1, 652
  %1288 = vst.msk [vmem:[%s1287] ss:$16 sm:$0x3] %vm1286, %v1285
  %s1289 = scalar_lea.vmem %s1, 652
  %1290 = vst.msk [vmem:[%s1289] ss:$16 sm:$0xc] %vm1286, %v1285
  %s1291 = scalar_lea.vmem %s1, 652
  %1292 = vst.msk [vmem:[%s1291] ss:$16 sm:$0x30] %vm1286, %v1285
  %s1293 = scalar_lea.vmem %s1, 652
  %1294 = vst.msk [vmem:[%s1293] ss:$16 sm:$0xc0] %vm1286, %v1285
  %s1295 = scalar_lea.vmem %s0, 48
  %v1296 = vld [vmem:[%s1295] sm:$0xff]
  %1297 = vrot.lane.b32.xlu0 %v1296, 104
  %v1298 = vpop.permute.xlu0 %1297
  %vm1299 = vcmask 15360
  %s1300 = scalar_lea.vmem %s1, 780
  %1301 = vst.msk [vmem:[%s1300] ss:$16 sm:$0x3] %vm1299, %v1298
  %s1302 = scalar_lea.vmem %s1, 780
  %1303 = vst.msk [vmem:[%s1302] ss:$16 sm:$0xc] %vm1299, %v1298
  %s1304 = scalar_lea.vmem %s1, 780
  %1305 = vst.msk [vmem:[%s1304] ss:$16 sm:$0x30] %vm1299, %v1298
  %s1306 = scalar_lea.vmem %s1, 780
  %1307 = vst.msk [vmem:[%s1306] ss:$16 sm:$0xc0] %vm1299, %v1298
  %s1308 = scalar_lea.vmem %s0, 56
  %v1309 = vld [vmem:[%s1308] sm:$0xff]
  %1310 = vrot.lane.b32.xlu0 %v1309, 104
  %v1311 = vpop.permute.xlu0 %1310
  %vm1312 = vcmask 15360
  %s1313 = scalar_lea.vmem %s1, 908
  %1314 = vst.msk [vmem:[%s1313] ss:$16 sm:$0x3] %vm1312, %v1311
  %s1315 = scalar_lea.vmem %s1, 908
  %1316 = vst.msk [vmem:[%s1315] ss:$16 sm:$0xc] %vm1312, %v1311
  %s1317 = scalar_lea.vmem %s1, 908
  %1318 = vst.msk [vmem:[%s1317] ss:$16 sm:$0x30] %vm1312, %v1311
  %s1319 = scalar_lea.vmem %s1, 908
  %1320 = vst.msk [vmem:[%s1319] ss:$16 sm:$0xc0] %vm1312, %v1311
  %v1321 = vld [vmem:[%s0] sm:$0xff]
  %1322 = vrot.lane.b32.xlu0 %v1321, 102
  %v1323 = vpop.permute.xlu0 %1322
  %vm1324 = vcmask 15360
  %s1325 = scalar_lea.vmem %s1, 13
  %1326 = vst.msk [vmem:[%s1325] ss:$16 sm:$0x3] %vm1324, %v1323
  %s1327 = scalar_lea.vmem %s1, 13
  %1328 = vst.msk [vmem:[%s1327] ss:$16 sm:$0xc] %vm1324, %v1323
  %s1329 = scalar_lea.vmem %s1, 13
  %1330 = vst.msk [vmem:[%s1329] ss:$16 sm:$0x30] %vm1324, %v1323
  %s1331 = scalar_lea.vmem %s1, 13
  %1332 = vst.msk [vmem:[%s1331] ss:$16 sm:$0xc0] %vm1324, %v1323
  %s1333 = scalar_lea.vmem %s0, 8
  %v1334 = vld [vmem:[%s1333] sm:$0xff]
  %1335 = vrot.lane.b32.xlu0 %v1334, 102
  %v1336 = vpop.permute.xlu0 %1335
  %vm1337 = vcmask 15360
  %s1338 = scalar_lea.vmem %s1, 141
  %1339 = vst.msk [vmem:[%s1338] ss:$16 sm:$0x3] %vm1337, %v1336
  %s1340 = scalar_lea.vmem %s1, 141
  %1341 = vst.msk [vmem:[%s1340] ss:$16 sm:$0xc] %vm1337, %v1336
  %s1342 = scalar_lea.vmem %s1, 141
  %1343 = vst.msk [vmem:[%s1342] ss:$16 sm:$0x30] %vm1337, %v1336
  %s1344 = scalar_lea.vmem %s1, 141
  %1345 = vst.msk [vmem:[%s1344] ss:$16 sm:$0xc0] %vm1337, %v1336
  %s1346 = scalar_lea.vmem %s0, 16
  %v1347 = vld [vmem:[%s1346] sm:$0xff]
  %1348 = vrot.lane.b32.xlu0 %v1347, 102
  %v1349 = vpop.permute.xlu0 %1348
  %vm1350 = vcmask 15360
  %s1351 = scalar_lea.vmem %s1, 269
  %1352 = vst.msk [vmem:[%s1351] ss:$16 sm:$0x3] %vm1350, %v1349
  %s1353 = scalar_lea.vmem %s1, 269
  %1354 = vst.msk [vmem:[%s1353] ss:$16 sm:$0xc] %vm1350, %v1349
  %s1355 = scalar_lea.vmem %s1, 269
  %1356 = vst.msk [vmem:[%s1355] ss:$16 sm:$0x30] %vm1350, %v1349
  %s1357 = scalar_lea.vmem %s1, 269
  %1358 = vst.msk [vmem:[%s1357] ss:$16 sm:$0xc0] %vm1350, %v1349
  %s1359 = scalar_lea.vmem %s0, 24
  %v1360 = vld [vmem:[%s1359] sm:$0xff]
  %1361 = vrot.lane.b32.xlu0 %v1360, 102
  %v1362 = vpop.permute.xlu0 %1361
  %vm1363 = vcmask 15360
  %s1364 = scalar_lea.vmem %s1, 397
  %1365 = vst.msk [vmem:[%s1364] ss:$16 sm:$0x3] %vm1363, %v1362
  %s1366 = scalar_lea.vmem %s1, 397
  %1367 = vst.msk [vmem:[%s1366] ss:$16 sm:$0xc] %vm1363, %v1362
  %s1368 = scalar_lea.vmem %s1, 397
  %1369 = vst.msk [vmem:[%s1368] ss:$16 sm:$0x30] %vm1363, %v1362
  %s1370 = scalar_lea.vmem %s1, 397
  %1371 = vst.msk [vmem:[%s1370] ss:$16 sm:$0xc0] %vm1363, %v1362
  %s1372 = scalar_lea.vmem %s0, 32
  %v1373 = vld [vmem:[%s1372] sm:$0xff]
  %1374 = vrot.lane.b32.xlu0 %v1373, 102
  %v1375 = vpop.permute.xlu0 %1374
  %vm1376 = vcmask 15360
  %s1377 = scalar_lea.vmem %s1, 525
  %1378 = vst.msk [vmem:[%s1377] ss:$16 sm:$0x3] %vm1376, %v1375
  %s1379 = scalar_lea.vmem %s1, 525
  %1380 = vst.msk [vmem:[%s1379] ss:$16 sm:$0xc] %vm1376, %v1375
  %s1381 = scalar_lea.vmem %s1, 525
  %1382 = vst.msk [vmem:[%s1381] ss:$16 sm:$0x30] %vm1376, %v1375
  %s1383 = scalar_lea.vmem %s1, 525
  %1384 = vst.msk [vmem:[%s1383] ss:$16 sm:$0xc0] %vm1376, %v1375
  %s1385 = scalar_lea.vmem %s0, 40
  %v1386 = vld [vmem:[%s1385] sm:$0xff]
  %1387 = vrot.lane.b32.xlu0 %v1386, 102
  %v1388 = vpop.permute.xlu0 %1387
  %vm1389 = vcmask 15360
  %s1390 = scalar_lea.vmem %s1, 653
  %1391 = vst.msk [vmem:[%s1390] ss:$16 sm:$0x3] %vm1389, %v1388
  %s1392 = scalar_lea.vmem %s1, 653
  %1393 = vst.msk [vmem:[%s1392] ss:$16 sm:$0xc] %vm1389, %v1388
  %s1394 = scalar_lea.vmem %s1, 653
  %1395 = vst.msk [vmem:[%s1394] ss:$16 sm:$0x30] %vm1389, %v1388
  %s1396 = scalar_lea.vmem %s1, 653
  %1397 = vst.msk [vmem:[%s1396] ss:$16 sm:$0xc0] %vm1389, %v1388
  %s1398 = scalar_lea.vmem %s0, 48
  %v1399 = vld [vmem:[%s1398] sm:$0xff]
  %1400 = vrot.lane.b32.xlu0 %v1399, 102
  %v1401 = vpop.permute.xlu0 %1400
  %vm1402 = vcmask 15360
  %s1403 = scalar_lea.vmem %s1, 781
  %1404 = vst.msk [vmem:[%s1403] ss:$16 sm:$0x3] %vm1402, %v1401
  %s1405 = scalar_lea.vmem %s1, 781
  %1406 = vst.msk [vmem:[%s1405] ss:$16 sm:$0xc] %vm1402, %v1401
  %s1407 = scalar_lea.vmem %s1, 781
  %1408 = vst.msk [vmem:[%s1407] ss:$16 sm:$0x30] %vm1402, %v1401
  %s1409 = scalar_lea.vmem %s1, 781
  %1410 = vst.msk [vmem:[%s1409] ss:$16 sm:$0xc0] %vm1402, %v1401
  %s1411 = scalar_lea.vmem %s0, 56
  %v1412 = vld [vmem:[%s1411] sm:$0xff]
  %1413 = vrot.lane.b32.xlu0 %v1412, 102
  %v1414 = vpop.permute.xlu0 %1413
  %vm1415 = vcmask 15360
  %s1416 = scalar_lea.vmem %s1, 909
  %1417 = vst.msk [vmem:[%s1416] ss:$16 sm:$0x3] %vm1415, %v1414
  %s1418 = scalar_lea.vmem %s1, 909
  %1419 = vst.msk [vmem:[%s1418] ss:$16 sm:$0xc] %vm1415, %v1414
  %s1420 = scalar_lea.vmem %s1, 909
  %1421 = vst.msk [vmem:[%s1420] ss:$16 sm:$0x30] %vm1415, %v1414
  %s1422 = scalar_lea.vmem %s1, 909
  %1423 = vst.msk [vmem:[%s1422] ss:$16 sm:$0xc0] %vm1415, %v1414
  %v1424 = vld [vmem:[%s0] sm:$0xff]
  %1425 = vrot.lane.b32.xlu0 %v1424, 100
  %v1426 = vpop.permute.xlu0 %1425
  %vm1427 = vcmask 15360
  %s1428 = scalar_lea.vmem %s1, 14
  %1429 = vst.msk [vmem:[%s1428] ss:$16 sm:$0x3] %vm1427, %v1426
  %s1430 = scalar_lea.vmem %s1, 14
  %1431 = vst.msk [vmem:[%s1430] ss:$16 sm:$0xc] %vm1427, %v1426
  %s1432 = scalar_lea.vmem %s1, 14
  %1433 = vst.msk [vmem:[%s1432] ss:$16 sm:$0x30] %vm1427, %v1426
  %s1434 = scalar_lea.vmem %s1, 14
  %1435 = vst.msk [vmem:[%s1434] ss:$16 sm:$0xc0] %vm1427, %v1426
  %s1436 = scalar_lea.vmem %s0, 8
  %v1437 = vld [vmem:[%s1436] sm:$0xff]
  %1438 = vrot.lane.b32.xlu0 %v1437, 100
  %v1439 = vpop.permute.xlu0 %1438
  %vm1440 = vcmask 15360
  %s1441 = scalar_lea.vmem %s1, 142
  %1442 = vst.msk [vmem:[%s1441] ss:$16 sm:$0x3] %vm1440, %v1439
  %s1443 = scalar_lea.vmem %s1, 142
  %1444 = vst.msk [vmem:[%s1443] ss:$16 sm:$0xc] %vm1440, %v1439
  %s1445 = scalar_lea.vmem %s1, 142
  %1446 = vst.msk [vmem:[%s1445] ss:$16 sm:$0x30] %vm1440, %v1439
  %s1447 = scalar_lea.vmem %s1, 142
  %1448 = vst.msk [vmem:[%s1447] ss:$16 sm:$0xc0] %vm1440, %v1439
  %s1449 = scalar_lea.vmem %s0, 16
  %v1450 = vld [vmem:[%s1449] sm:$0xff]
  %1451 = vrot.lane.b32.xlu0 %v1450, 100
  %v1452 = vpop.permute.xlu0 %1451
  %vm1453 = vcmask 15360
  %s1454 = scalar_lea.vmem %s1, 270
  %1455 = vst.msk [vmem:[%s1454] ss:$16 sm:$0x3] %vm1453, %v1452
  %s1456 = scalar_lea.vmem %s1, 270
  %1457 = vst.msk [vmem:[%s1456] ss:$16 sm:$0xc] %vm1453, %v1452
  %s1458 = scalar_lea.vmem %s1, 270
  %1459 = vst.msk [vmem:[%s1458] ss:$16 sm:$0x30] %vm1453, %v1452
  %s1460 = scalar_lea.vmem %s1, 270
  %1461 = vst.msk [vmem:[%s1460] ss:$16 sm:$0xc0] %vm1453, %v1452
  %s1462 = scalar_lea.vmem %s0, 24
  %v1463 = vld [vmem:[%s1462] sm:$0xff]
  %1464 = vrot.lane.b32.xlu0 %v1463, 100
  %v1465 = vpop.permute.xlu0 %1464
  %vm1466 = vcmask 15360
  %s1467 = scalar_lea.vmem %s1, 398
  %1468 = vst.msk [vmem:[%s1467] ss:$16 sm:$0x3] %vm1466, %v1465
  %s1469 = scalar_lea.vmem %s1, 398
  %1470 = vst.msk [vmem:[%s1469] ss:$16 sm:$0xc] %vm1466, %v1465
  %s1471 = scalar_lea.vmem %s1, 398
  %1472 = vst.msk [vmem:[%s1471] ss:$16 sm:$0x30] %vm1466, %v1465
  %s1473 = scalar_lea.vmem %s1, 398
  %1474 = vst.msk [vmem:[%s1473] ss:$16 sm:$0xc0] %vm1466, %v1465
  %s1475 = scalar_lea.vmem %s0, 32
  %v1476 = vld [vmem:[%s1475] sm:$0xff]
  %1477 = vrot.lane.b32.xlu0 %v1476, 100
  %v1478 = vpop.permute.xlu0 %1477
  %vm1479 = vcmask 15360
  %s1480 = scalar_lea.vmem %s1, 526
  %1481 = vst.msk [vmem:[%s1480] ss:$16 sm:$0x3] %vm1479, %v1478
  %s1482 = scalar_lea.vmem %s1, 526
  %1483 = vst.msk [vmem:[%s1482] ss:$16 sm:$0xc] %vm1479, %v1478
  %s1484 = scalar_lea.vmem %s1, 526
  %1485 = vst.msk [vmem:[%s1484] ss:$16 sm:$0x30] %vm1479, %v1478
  %s1486 = scalar_lea.vmem %s1, 526
  %1487 = vst.msk [vmem:[%s1486] ss:$16 sm:$0xc0] %vm1479, %v1478
  %s1488 = scalar_lea.vmem %s0, 40
  %v1489 = vld [vmem:[%s1488] sm:$0xff]
  %1490 = vrot.lane.b32.xlu0 %v1489, 100
  %v1491 = vpop.permute.xlu0 %1490
  %vm1492 = vcmask 15360
  %s1493 = scalar_lea.vmem %s1, 654
  %1494 = vst.msk [vmem:[%s1493] ss:$16 sm:$0x3] %vm1492, %v1491
  %s1495 = scalar_lea.vmem %s1, 654
  %1496 = vst.msk [vmem:[%s1495] ss:$16 sm:$0xc] %vm1492, %v1491
  %s1497 = scalar_lea.vmem %s1, 654
  %1498 = vst.msk [vmem:[%s1497] ss:$16 sm:$0x30] %vm1492, %v1491
  %s1499 = scalar_lea.vmem %s1, 654
  %1500 = vst.msk [vmem:[%s1499] ss:$16 sm:$0xc0] %vm1492, %v1491
  %s1501 = scalar_lea.vmem %s0, 48
  %v1502 = vld [vmem:[%s1501] sm:$0xff]
  %1503 = vrot.lane.b32.xlu0 %v1502, 100
  %v1504 = vpop.permute.xlu0 %1503
  %vm1505 = vcmask 15360
  %s1506 = scalar_lea.vmem %s1, 782
  %1507 = vst.msk [vmem:[%s1506] ss:$16 sm:$0x3] %vm1505, %v1504
  %s1508 = scalar_lea.vmem %s1, 782
  %1509 = vst.msk [vmem:[%s1508] ss:$16 sm:$0xc] %vm1505, %v1504
  %s1510 = scalar_lea.vmem %s1, 782
  %1511 = vst.msk [vmem:[%s1510] ss:$16 sm:$0x30] %vm1505, %v1504
  %s1512 = scalar_lea.vmem %s1, 782
  %1513 = vst.msk [vmem:[%s1512] ss:$16 sm:$0xc0] %vm1505, %v1504
  %s1514 = scalar_lea.vmem %s0, 56
  %v1515 = vld [vmem:[%s1514] sm:$0xff]
  %1516 = vrot.lane.b32.xlu0 %v1515, 100
  %v1517 = vpop.permute.xlu0 %1516
  %vm1518 = vcmask 15360
  %s1519 = scalar_lea.vmem %s1, 910
  %1520 = vst.msk [vmem:[%s1519] ss:$16 sm:$0x3] %vm1518, %v1517
  %s1521 = scalar_lea.vmem %s1, 910
  %1522 = vst.msk [vmem:[%s1521] ss:$16 sm:$0xc] %vm1518, %v1517
  %s1523 = scalar_lea.vmem %s1, 910
  %1524 = vst.msk [vmem:[%s1523] ss:$16 sm:$0x30] %vm1518, %v1517
  %s1525 = scalar_lea.vmem %s1, 910
  %1526 = vst.msk [vmem:[%s1525] ss:$16 sm:$0xc0] %vm1518, %v1517
  %v1527 = vld [vmem:[%s0] sm:$0xff]
  %1528 = vrot.lane.b32.xlu0 %v1527, 98
  %v1529 = vpop.permute.xlu0 %1528
  %vm1530 = vcmask 15360
  %s1531 = scalar_lea.vmem %s1, 15
  %1532 = vst.msk [vmem:[%s1531] ss:$16 sm:$0x3] %vm1530, %v1529
  %s1533 = scalar_lea.vmem %s1, 15
  %1534 = vst.msk [vmem:[%s1533] ss:$16 sm:$0xc] %vm1530, %v1529
  %s1535 = scalar_lea.vmem %s1, 15
  %1536 = vst.msk [vmem:[%s1535] ss:$16 sm:$0x30] %vm1530, %v1529
  %s1537 = scalar_lea.vmem %s1, 15
  %1538 = vst.msk [vmem:[%s1537] ss:$16 sm:$0xc0] %vm1530, %v1529
  %s1539 = scalar_lea.vmem %s0, 8
  %v1540 = vld [vmem:[%s1539] sm:$0xff]
  %1541 = vrot.lane.b32.xlu0 %v1540, 98
  %v1542 = vpop.permute.xlu0 %1541
  %vm1543 = vcmask 15360
  %s1544 = scalar_lea.vmem %s1, 143
  %1545 = vst.msk [vmem:[%s1544] ss:$16 sm:$0x3] %vm1543, %v1542
  %s1546 = scalar_lea.vmem %s1, 143
  %1547 = vst.msk [vmem:[%s1546] ss:$16 sm:$0xc] %vm1543, %v1542
  %s1548 = scalar_lea.vmem %s1, 143
  %1549 = vst.msk [vmem:[%s1548] ss:$16 sm:$0x30] %vm1543, %v1542
  %s1550 = scalar_lea.vmem %s1, 143
  %1551 = vst.msk [vmem:[%s1550] ss:$16 sm:$0xc0] %vm1543, %v1542
  %s1552 = scalar_lea.vmem %s0, 16
  %v1553 = vld [vmem:[%s1552] sm:$0xff]
  %1554 = vrot.lane.b32.xlu0 %v1553, 98
  %v1555 = vpop.permute.xlu0 %1554
  %vm1556 = vcmask 15360
  %s1557 = scalar_lea.vmem %s1, 271
  %1558 = vst.msk [vmem:[%s1557] ss:$16 sm:$0x3] %vm1556, %v1555
  %s1559 = scalar_lea.vmem %s1, 271
  %1560 = vst.msk [vmem:[%s1559] ss:$16 sm:$0xc] %vm1556, %v1555
  %s1561 = scalar_lea.vmem %s1, 271
  %1562 = vst.msk [vmem:[%s1561] ss:$16 sm:$0x30] %vm1556, %v1555
  %s1563 = scalar_lea.vmem %s1, 271
  %1564 = vst.msk [vmem:[%s1563] ss:$16 sm:$0xc0] %vm1556, %v1555
  %s1565 = scalar_lea.vmem %s0, 24
  %v1566 = vld [vmem:[%s1565] sm:$0xff]
  %1567 = vrot.lane.b32.xlu0 %v1566, 98
  %v1568 = vpop.permute.xlu0 %1567
  %vm1569 = vcmask 15360
  %s1570 = scalar_lea.vmem %s1, 399
  %1571 = vst.msk [vmem:[%s1570] ss:$16 sm:$0x3] %vm1569, %v1568
  %s1572 = scalar_lea.vmem %s1, 399
  %1573 = vst.msk [vmem:[%s1572] ss:$16 sm:$0xc] %vm1569, %v1568
  %s1574 = scalar_lea.vmem %s1, 399
  %1575 = vst.msk [vmem:[%s1574] ss:$16 sm:$0x30] %vm1569, %v1568
  %s1576 = scalar_lea.vmem %s1, 399
  %1577 = vst.msk [vmem:[%s1576] ss:$16 sm:$0xc0] %vm1569, %v1568
  %s1578 = scalar_lea.vmem %s0, 32
  %v1579 = vld [vmem:[%s1578] sm:$0xff]
  %1580 = vrot.lane.b32.xlu0 %v1579, 98
  %v1581 = vpop.permute.xlu0 %1580
  %vm1582 = vcmask 15360
  %s1583 = scalar_lea.vmem %s1, 527
  %1584 = vst.msk [vmem:[%s1583] ss:$16 sm:$0x3] %vm1582, %v1581
  %s1585 = scalar_lea.vmem %s1, 527
  %1586 = vst.msk [vmem:[%s1585] ss:$16 sm:$0xc] %vm1582, %v1581
  %s1587 = scalar_lea.vmem %s1, 527
  %1588 = vst.msk [vmem:[%s1587] ss:$16 sm:$0x30] %vm1582, %v1581
  %s1589 = scalar_lea.vmem %s1, 527
  %1590 = vst.msk [vmem:[%s1589] ss:$16 sm:$0xc0] %vm1582, %v1581
  %s1591 = scalar_lea.vmem %s0, 40
  %v1592 = vld [vmem:[%s1591] sm:$0xff]
  %1593 = vrot.lane.b32.xlu0 %v1592, 98
  %v1594 = vpop.permute.xlu0 %1593
  %vm1595 = vcmask 15360
  %s1596 = scalar_lea.vmem %s1, 655
  %1597 = vst.msk [vmem:[%s1596] ss:$16 sm:$0x3] %vm1595, %v1594
  %s1598 = scalar_lea.vmem %s1, 655
  %1599 = vst.msk [vmem:[%s1598] ss:$16 sm:$0xc] %vm1595, %v1594
  %s1600 = scalar_lea.vmem %s1, 655
  %1601 = vst.msk [vmem:[%s1600] ss:$16 sm:$0x30] %vm1595, %v1594
  %s1602 = scalar_lea.vmem %s1, 655
  %1603 = vst.msk [vmem:[%s1602] ss:$16 sm:$0xc0] %vm1595, %v1594
  %s1604 = scalar_lea.vmem %s0, 48
  %v1605 = vld [vmem:[%s1604] sm:$0xff]
  %1606 = vrot.lane.b32.xlu0 %v1605, 98
  %v1607 = vpop.permute.xlu0 %1606
  %vm1608 = vcmask 15360
  %s1609 = scalar_lea.vmem %s1, 783
  %1610 = vst.msk [vmem:[%s1609] ss:$16 sm:$0x3] %vm1608, %v1607
  %s1611 = scalar_lea.vmem %s1, 783
  %1612 = vst.msk [vmem:[%s1611] ss:$16 sm:$0xc] %vm1608, %v1607
  %s1613 = scalar_lea.vmem %s1, 783
  %1614 = vst.msk [vmem:[%s1613] ss:$16 sm:$0x30] %vm1608, %v1607
  %s1615 = scalar_lea.vmem %s1, 783
  %1616 = vst.msk [vmem:[%s1615] ss:$16 sm:$0xc0] %vm1608, %v1607
  %s1617 = scalar_lea.vmem %s0, 56
  %v1618 = vld [vmem:[%s1617] sm:$0xff]
  %1619 = vrot.lane.b32.xlu0 %v1618, 98
  %v1620 = vpop.permute.xlu0 %1619
  %vm1621 = vcmask 15360
  %s1622 = scalar_lea.vmem %s1, 911
  %1623 = vst.msk [vmem:[%s1622] ss:$16 sm:$0x3] %vm1621, %v1620
  %s1624 = scalar_lea.vmem %s1, 911
  %1625 = vst.msk [vmem:[%s1624] ss:$16 sm:$0xc] %vm1621, %v1620
  %s1626 = scalar_lea.vmem %s1, 911
  %1627 = vst.msk [vmem:[%s1626] ss:$16 sm:$0x30] %vm1621, %v1620
  %s1628 = scalar_lea.vmem %s1, 911
  %1629 = vst.msk [vmem:[%s1628] ss:$16 sm:$0xc0] %vm1621, %v1620

// kernel: mixpool_forward.1
$region0: #{mixpool_forward.1}
  #allocation0 [shape = 'u32[]', space=smem, size = 0x4, offset = 0x4, fixed_abs, tag = 'smem constant byte address 0x4 - core index']
  #allocation1 [shape = 'u32[144,128]{1,0:T(1,128)}', space=vmem, size = 0x12000, scoped, tag = 'internal scratch']
  %s0 = inlined_call_operand.vmem [shape: f32[512,38], index: 0, kind: input, shape index: {}]
  %s1 = inlined_call_operand.vmem [shape: f32[38,12], index: 1, kind: input, shape index: {}]
  %s2 = inlined_call_operand.vmem [shape: f32[38,4], index: 2, kind: input, shape index: {}]
  %s3 = inlined_call_operand.vmem [shape: f32[1,9], index: 3, kind: input, shape index: {}]
  %s4 = inlined_call_operand.vmem [shape: f32[512,8], index: 4, kind: output, shape index: {}]
  %s5 = sld [smem:[#allocation0]]
  $region49: #{mixpool_forward.1} parent=0
    _
  %s7 = ssub.s32 1, %s5
  %s8 = scalar_select 0, %s7, %s5
  loop: start=0, step=1, limit=4
  $region2: #{mixpool_forward.1} parent=0 // loop_pre_header
    _
  $region3: #{mixpool_forward.1} parent=0 // loop_header
    %s10 = sphi 0, %s14
    %p11 = scmp.ge.s32.totalorder %s10, 4
    %s20 = sphi 0, %s22
    %s23 = sphi 0, %s20
    %s24 = sphi 0, %s23
    %s40 = sphi 0, %s24
    %s44 = sphi 0, %s44
    %s46 = sphi 0, %s44
    %s47 = sphi 0, %s46
    %s61 = sphi 0, %s47
    %s65 = sphi 0, %s65
    %s67 = sphi 0, %s65
    %s68 = sphi 0, %s67
    %s82 = sphi 0, %s68
    %s86 = sphi 0, %s86
    %s88 = sphi 0, %s86
    %s89 = sphi 0, %s88
    %s103 = sphi 0, %s89
    %s109 = sphi 0, %s111
    %s112 = sphi 0, %s109
    %s113 = sphi 0, %s112
    %s129 = sphi 0, %s113
  $region4: #{mixpool_forward.1} parent=0 // loop_header_branch
    %13 = sbr.rel (%p11) target = $region8
  $region5: #{mixpool_forward.1} parent=0 // loop_body
    %s15 = ssub.s32 %s10, 1
    %s16 = ssub.s32 %s10, 2
    %s17 = sadd.s32 %s10, 1
    %s18 = ssub.s32 %s10, %s17
    %p19 = scmp.eq.s32.totalorder %s18, 0
    %s21 = sadd.s32 %s20, 1
    %s22 = scalar_select %p19, %s20, %s21
    %p25 = pneg %p19
    %p26 = scmp.eq.s32.totalorder %s10, 1
    %p27 = por %p25, %p26
    %p28 = scmp.ne.s32.totalorder %s20, %s23
    %p29 = scmp.eq.s32.totalorder %s10, 0
    %p30 = por %p28, %p29
    %p31 = scmp.ne.s32.totalorder %s20, %s23
    %p32 = scmp.eq.s32.totalorder %s15, 1
    %p33 = por %p31, %p32
    %p34 = scmp.ne.s32.totalorder %s23, %s24
    %p35 = scmp.eq.s32.totalorder %s15, 0
    %p36 = por %p34, %p35
    %p37 = scmp.ne.s32.totalorder %s23, %s24
    %p38 = scmp.eq.s32.totalorder %s16, 1
    %p39 = por %p37, %p38
    %p41 = scmp.ne.s32.totalorder %s24, %s40
    %p42 = scmp.eq.s32.totalorder %s16, 0
    %p43 = por %p41, %p42
    %s45 = sadd.s32 %s44, 1
    %p48 = scmp.eq.s32.totalorder %s10, 1
    %p49 = scmp.ne.s32.totalorder %s44, %s46
    %p50 = scmp.eq.s32.totalorder %s10, 0
    %p51 = por %p49, %p50
    %p52 = scmp.ne.s32.totalorder %s44, %s46
    %p53 = scmp.eq.s32.totalorder %s15, 1
    %p54 = por %p52, %p53
    %p55 = scmp.ne.s32.totalorder %s46, %s47
    %p56 = scmp.eq.s32.totalorder %s15, 0
    %p57 = por %p55, %p56
    %p58 = scmp.ne.s32.totalorder %s46, %s47
    %p59 = scmp.eq.s32.totalorder %s16, 1
    %p60 = por %p58, %p59
    %p62 = scmp.ne.s32.totalorder %s47, %s61
    %p63 = scmp.eq.s32.totalorder %s16, 0
    %p64 = por %p62, %p63
    %s66 = sadd.s32 %s65, 1
    %p69 = scmp.eq.s32.totalorder %s10, 1
    %p70 = scmp.ne.s32.totalorder %s65, %s67
    %p71 = scmp.eq.s32.totalorder %s10, 0
    %p72 = por %p70, %p71
    %p73 = scmp.ne.s32.totalorder %s65, %s67
    %p74 = scmp.eq.s32.totalorder %s15, 1
    %p75 = por %p73, %p74
    %p76 = scmp.ne.s32.totalorder %s67, %s68
    %p77 = scmp.eq.s32.totalorder %s15, 0
    %p78 = por %p76, %p77
    %p79 = scmp.ne.s32.totalorder %s67, %s68
    %p80 = scmp.eq.s32.totalorder %s16, 1
    %p81 = por %p79, %p80
    %p83 = scmp.ne.s32.totalorder %s68, %s82
    %p84 = scmp.eq.s32.totalorder %s16, 0
    %p85 = por %p83, %p84
    %s87 = sadd.s32 %s86, 1
    %p90 = scmp.eq.s32.totalorder %s10, 1
    %p91 = scmp.ne.s32.totalorder %s86, %s88
    %p92 = scmp.eq.s32.totalorder %s10, 0
    %p93 = por %p91, %p92
    %p94 = scmp.ne.s32.totalorder %s86, %s88
    %p95 = scmp.eq.s32.totalorder %s15, 1
    %p96 = por %p94, %p95
    %p97 = scmp.ne.s32.totalorder %s88, %s89
    %p98 = scmp.eq.s32.totalorder %s15, 0
    %p99 = por %p97, %p98
    %p100 = scmp.ne.s32.totalorder %s88, %s89
    %p101 = scmp.eq.s32.totalorder %s16, 1
    %p102 = por %p100, %p101
    %p104 = scmp.ne.s32.totalorder %s89, %s103
    %p105 = scmp.eq.s32.totalorder %s16, 0
    %p106 = por %p104, %p105
    %s107 = ssub.s32 %s10, %s17
    %p108 = scmp.eq.s32.totalorder %s107, 0
    %s110 = sadd.s32 %s109, 1
    %s111 = scalar_select %p108, %s109, %s110
    %p114 = pneg %p108
    %p115 = scmp.eq.s32.totalorder %s10, 1
    %p116 = por %p114, %p115
    %p117 = scmp.ne.s32.totalorder %s109, %s112
    %p118 = scmp.eq.s32.totalorder %s10, 0
    %p119 = por %p117, %p118
    %p120 = scmp.ne.s32.totalorder %s109, %s112
    %p121 = scmp.eq.s32.totalorder %s15, 1
    %p122 = por %p120, %p121
    %p123 = scmp.ne.s32.totalorder %s112, %s113
    %p124 = scmp.eq.s32.totalorder %s15, 0
    %p125 = por %p123, %p124
    %p126 = scmp.ne.s32.totalorder %s112, %s113
    %p127 = scmp.eq.s32.totalorder %s16, 1
    %p128 = por %p126, %p127
    %p130 = scmp.ne.s32.totalorder %s113, %s129
    %p131 = scmp.eq.s32.totalorder %s16, 0
    %p132 = por %p130, %p131
    %p133 = scmp.le.s32.totalorder 1, %s10
    %p134 = scmp.lt.s32.totalorder %s10, 3
    %p135 = pnand %p133, %p134
    %p136 = pneg %p135
    // Predicated region
    $region9: #{mixpool_forward.1} parent=5 // pred_check
      _
    $region10: #{mixpool_forward.1} parent=5 // pred_check_branch
      %138 = sbr.rel (%p135) target = $region12
    $region11: #{mixpool_forward.1} parent=5 // pred_region
      %s139 = ssub.s32 %s10, 1
      // Predicated region
      $region13: #{mixpool_forward.1} parent=11 // pred_check
        %p140 = pneg %p57
      $region14: #{mixpool_forward.1} parent=11 // pred_check_branch
        %142 = sbr.rel (%p140) target = $region16
      $region15: #{mixpool_forward.1} parent=11 // pred_region
        _
      $region16: #{mixpool_forward.1} parent=11 // pred_fallthru
        _
      // Predicated region
      $region17: #{mixpool_forward.1} parent=11 // pred_check
        %p143 = pneg %p78
      $region18: #{mixpool_forward.1} parent=11 // pred_check_branch
        %145 = sbr.rel (%p143) target = $region20
      $region19: #{mixpool_forward.1} parent=11 // pred_region
        _
      $region20: #{mixpool_forward.1} parent=11 // pred_fallthru
        _
      // Predicated region
      $region21: #{mixpool_forward.1} parent=11 // pred_check
        %p146 = pneg %p99
      $region22: #{mixpool_forward.1} parent=11 // pred_check_branch
        %148 = sbr.rel (%p146) target = $region24
      $region23: #{mixpool_forward.1} parent=11 // pred_region
        _
      $region24: #{mixpool_forward.1} parent=11 // pred_fallthru
        _
    $region12: #{mixpool_forward.1} parent=5 // pred_fallthru
      _
    %p149 = scmp.lt.s32.totalorder %s10, 2
    // Predicated region
    $region25: #{mixpool_forward.1} parent=5 // pred_check
      %p150 = pneg %p149
    $region26: #{mixpool_forward.1} parent=5 // pred_check_branch
      %152 = sbr.rel (%p150) target = $region28
    $region27: #{mixpool_forward.1} parent=5 // pred_region
      // Predicated region
      $region29: #{mixpool_forward.1} parent=27 // pred_check
        %p153 = pneg %p30
      $region30: #{mixpool_forward.1} parent=27 // pred_check_branch
        %155 = sbr.rel (%p153) target = $region32
      $region31: #{mixpool_forward.1} parent=27 // pred_region
        %s156 = smul.u32 32, %s10
        %p157 = scmp.lt.s32.totalorder %s156, 63
        %s158 = scalar_select %p157, %s156, 63
        %s159 = smul.addr %s158, 8
        %s160 = scalar_lea.vmem %s0, %s159
        %s161 = smul.u32 32, %s10
      $region32: #{mixpool_forward.1} parent=27 // pred_fallthru
        _
    $region28: #{mixpool_forward.1} parent=5 // pred_fallthru
      _
    %p162 = scmp.le.s32.totalorder 1, %s10
    %p163 = scmp.lt.s32.totalorder %s10, 3
    %p164 = pnand %p162, %p163
    %p165 = pneg %p164
    // Predicated region
    $region33: #{mixpool_forward.1} parent=5 // pred_check
      _
    $region34: #{mixpool_forward.1} parent=5 // pred_check_branch
      %167 = sbr.rel (%p164) target = $region36
    $region35: #{mixpool_forward.1} parent=5 // pred_region
      %s168 = ssub.s32 %s10, 1
      %s169 = smul.u32 32, %s15
      %p170 = scmp.lt.s32.totalorder %s169, 63
      %s171 = scalar_select %p170, %s169, 63
      %s172 = smul.addr %s171, 8
      %s173 = scalar_lea.vmem %s0, %s172
      %p174 = pneg %p36
      %p175 = pneg %p33
      %p176 = pneg %p57
      %p177 = pneg %p54
      %p178 = pneg %p78
      %p179 = pneg %p75
      %p180 = pneg %p99
      %p181 = pneg %p96
      %p182 = pneg %p125
      %p183 = pneg %p122
      %s184 = smul.u32 32, %s15
      %p185 = scmp.lt.s32.totalorder %s184, 63
      %s186 = scalar_select %p185, %s184, 63
      %s187 = smul.addr %s186, 8
      %s188 = scalar_lea.vmem %s4, %s187
      %s189 = smul.u32 32, %s15
      %p190 = scmp.lt.s32.totalorder %s189, 63
      %s191 = scalar_select %p190, %s189, 63
      %s192 = smul.addr %s191, 8
      %s193 = scalar_lea.vmem %s0, %s192
      %s194 = smul.u32 32, %s15
      %s195 = smul.u32 32, %s15
      %p196 = scmp.lt.s32.totalorder %s195, 63
      %s197 = scalar_select %p196, %s195, 63
      %s198 = smul.addr %s197, 8
      %s199 = scalar_lea.vmem %s4, %s198
      %s200 = smul.u32 32, %s15
      %v201 = vld [vmem:[%s193] sm:$0xff]
      %v202 = vld [vmem:[%s193 + $0x8] sm:$0xff]
      %v203 = vld [vmem:[%s193 + $0x10] sm:$0xff]
      %v204 = vld [vmem:[%s193 + $0x18] sm:$0xff]
      %v205 = vld [vmem:[%s193 + $0x20] sm:$0xff]
      %v206 = vld [vmem:[%s193 + $0x28] sm:$0xff]
      %v207 = vld [vmem:[%s193 + $0x30] sm:$0xff]
      %v208 = vld [vmem:[%s193 + $0x38] sm:$0xff]
      %v209 = vld [vmem:[%s193 + $0x40] sm:$0xff]
      %v210 = vld [vmem:[%s193 + $0x48] sm:$0xff]
      %v211 = vld [vmem:[%s193 + $0x50] sm:$0xff]
      %v212 = vld [vmem:[%s193 + $0x58] sm:$0xff]
      %v213 = vld [vmem:[%s193 + $0x60] sm:$0xff]
      %v214 = vld [vmem:[%s193 + $0x68] sm:$0xff]
      %v215 = vld [vmem:[%s193 + $0x70] sm:$0xff]
      %v216 = vld [vmem:[%s193 + $0x78] sm:$0xff]
      %v217 = vld [vmem:[%s193 + $0x80] sm:$0xff]
      %v218 = vld [vmem:[%s193 + $0x88] sm:$0xff]
      %v219 = vld [vmem:[%s193 + $0x90] sm:$0xff]
      %v220 = vld [vmem:[%s193 + $0x98] sm:$0xff]
      %v221 = vld [vmem:[%s193 + $0xa0] sm:$0xff]
      %v222 = vld [vmem:[%s193 + $0xa8] sm:$0xff]
      %v223 = vld [vmem:[%s193 + $0xb0] sm:$0xff]
      %v224 = vld [vmem:[%s193 + $0xb8] sm:$0xff]
      %v225 = vld [vmem:[%s193 + $0xc0] sm:$0xff]
      %v226 = vld [vmem:[%s193 + $0xc8] sm:$0xff]
      %v227 = vld [vmem:[%s193 + $0xd0] sm:$0xff]
      %v228 = vld [vmem:[%s193 + $0xd8] sm:$0xff]
      %v229 = vld [vmem:[%s193 + $0xe0] sm:$0xff]
      %v230 = vld [vmem:[%s193 + $0xe8] sm:$0xff]
      %v231 = vld [vmem:[%s193 + $0xf0] sm:$0xff]
      %v232 = vld [vmem:[%s193 + $0xf8] sm:$0xff]
      %v233 = vld [vmem:[%s1] sm:$0xff]
      %v234 = vld [vmem:[%s1 + $0x8] sm:$0xff]
      %v235 = vld [vmem:[%s1 + $0x10] sm:$0xff]
      %v236 = vld [vmem:[%s1 + $0x18] sm:$0xff]
      %v237 = vld [vmem:[%s1 + $0x20] sm:$0x3f]
      %vm238 = vcmask 310272
      %v240 = vsel %vm238, %v201, 0
      %v243 = vsel %vm238, %v202, 0
      %v246 = vsel %vm238, %v203, 0
      %v249 = vsel %vm238, %v204, 0
      %v252 = vsel %vm238, %v205, 0
      %v255 = vsel %vm238, %v206, 0
      %v258 = vsel %vm238, %v207, 0
      %v261 = vsel %vm238, %v208, 0
      %v264 = vsel %vm238, %v209, 0
      %v267 = vsel %vm238, %v210, 0
      %v270 = vsel %vm238, %v211, 0
      %v273 = vsel %vm238, %v212, 0
      %v276 = vsel %vm238, %v213, 0
      %v279 = vsel %vm238, %v214, 0
      %v282 = vsel %vm238, %v215, 0
      %v285 = vsel %vm238, %v216, 0
      %v288 = vsel %vm238, %v217, 0
      %v291 = vsel %vm238, %v218, 0
      %v294 = vsel %vm238, %v219, 0
      %v297 = vsel %vm238, %v220, 0
      %v300 = vsel %vm238, %v221, 0
      %v303 = vsel %vm238, %v222, 0
      %v306 = vsel %vm238, %v223, 0
      %v309 = vsel %vm238, %v224, 0
      %v312 = vsel %vm238, %v225, 0
      %v315 = vsel %vm238, %v226, 0
      %v318 = vsel %vm238, %v227, 0
      %v321 = vsel %vm238, %v228, 0
      %v324 = vsel %vm238, %v229, 0
      %v327 = vsel %vm238, %v230, 0
      %v330 = vsel %vm238, %v231, 0
      %v333 = vsel %vm238, %v232, 0
      %vm335 = vcmask 1045504
      %v337 = vsel %vm335, %v237, 0
      %339 = vmatprep.subr.mxu0 0.0
      %340 = vmatpush1.msra.mxu0 %v233
      %341 = vmatprep.subr.mxu0 0.0
      %342 = vmatpush1.msra.mxu0 %v234
      %343 = vmatprep.subr.mxu0 0.0
      %344 = vmatpush1.msra.mxu0 %v235
      %345 = vmatprep.subr.mxu0 0.0
      %346 = vmatpush1.msra.mxu0 %v236
      %347 = vmatprep.subr.mxu0 0.0
      %348 = vmatpush1.msra.mxu0 %v337
      %349 = vmatprep.subr.mxu0 0.0
      %350 = vmatpush1.msra.mxu0 0.0
      %351 = vmatprep.subr.mxu0 0.0
      %352 = vmatpush1.msra.mxu0 0.0
      %353 = vmatprep.subr.mxu0 0.0
      %354 = vmatpush1.msra.mxu0 0.0
      %355 = vmatprep.subr.mxu0 0.0
      %356 = vmatpush1.msra.mxu0 0.0
      %357 = vmatprep.subr.mxu0 0.0
      %358 = vmatpush1.msra.mxu0 0.0
      %359 = vmatprep.subr.mxu0 0.0
      %360 = vmatpush1.msra.mxu0 0.0
      %361 = vmatprep.subr.mxu0 0.0
      %362 = vmatpush1.msra.mxu0 0.0
      %363 = vmatprep.subr.mxu0 0.0
      %364 = vmatpush1.msra.mxu0 0.0
      %365 = vmatprep.subr.mxu0 0.0
      %366 = vmatpush1.msra.mxu0 0.0
      %367 = vmatprep.subr.mxu0 0.0
      %368 = vmatpush1.msra.mxu0 0.0
      %369 = vmatprep.subr.mxu0 0.0
      %370 = vmatpush1.msra.mxu0 0.0
      %371 = vmatprep.subr.mxu0 0.0
      %372 = vmatpush1.msra.mxu0 0.0
      %373 = vmatprep.subr.mxu0 0.0
      %374 = vmatpush1.msra.mxu0 0.0
      %375 = vmatprep.subr.mxu0 0.0
      %376 = vmatpush1.msra.mxu0 0.0
      %377 = vmatprep.subr.mxu0 0.0
      %378 = vmatpush1.msra.mxu0 0.0
      %379 = vmatprep.subr.mxu0 0.0
      %380 = vmatpush1.msra.mxu0 0.0
      %381 = vmatprep.subr.mxu0 0.0
      %382 = vmatpush1.msra.mxu0 0.0
      %383 = vmatprep.subr.mxu0 0.0
      %384 = vmatpush1.msra.mxu0 0.0
      %385 = vmatprep.subr.mxu0 0.0
      %386 = vmatpush1.msra.mxu0 0.0
      %387 = vmatprep.subr.mxu0 0.0
      %388 = vmatpush1.msra.mxu0 0.0
      %389 = vmatprep.subr.mxu0 0.0
      %390 = vmatpush1.msra.mxu0 0.0
      %391 = vmatprep.subr.mxu0 0.0
      %392 = vmatpush1.msra.mxu0 0.0
      %393 = vmatprep.subr.mxu0 0.0
      %394 = vmatpush1.msra.mxu0 0.0
      %395 = vmatprep.subr.mxu0 0.0
      %396 = vmatpush1.msra.mxu0 0.0
      %397 = vmatprep.subr.mxu0 0.0
      %398 = vmatpush1.msra.mxu0 0.0
      %399 = vmatprep.subr.mxu0 0.0
      %400 = vmatpush1.msra.mxu0 0.0
      %401 = vmatprep.subr.mxu0 0.0
      %402 = vmatpush1.msra.mxu0 0.0
      %403 = vmatprep.mubr.f32.mxu0 0.0
      %404 = vmatmul.mubr.f32.gmra.mrb[0].mxu0 %v240
      %v405 = vpop.f32.mrb[0].mxu0
      %v406 = vadd.f32 0.0, %v405
      %v407 = vpop.f32.mrb[0].mxu0
      %408 = vmatprep.mubr.f32.mxu0 0.0
      %409 = vmatmul.mubr.f32.gmra.mrb[0].mxu0 %v243
      %v410 = vpop.f32.mrb[0].mxu0
      %v411 = vadd.f32 0.0, %v410
      %v412 = vpop.f32.mrb[0].mxu0
      %413 = vmatprep.mubr.f32.mxu0 0.0
      %414 = vmatmul.mubr.f32.gmra.mrb[0].mxu0 %v246
      %v415 = vpop.f32.mrb[0].mxu0
      %v416 = vadd.f32 0.0, %v415
      %v417 = vpop.f32.mrb[0].mxu0
      %418 = vmatprep.mubr.f32.mxu0 0.0
      %419 = vmatmul.mubr.f32.gmra.mrb[0].mxu0 %v249
      %v420 = vpop.f32.mrb[0].mxu0
      %v421 = vadd.f32 0.0, %v420
      %v422 = vpop.f32.mrb[0].mxu0
      %423 = vmatprep.mubr.f32.mxu0 0.0
      %424 = vmatmul.mubr.f32.gmra.mrb[0].mxu0 %v252
      %v425 = vpop.f32.mrb[0].mxu0
      %v426 = vadd.f32 0.0, %v425
      %v427 = vpop.f32.mrb[0].mxu0
      %428 = vmatprep.mubr.f32.mxu0 0.0
      %429 = vmatmul.mubr.f32.gmra.mrb[0].mxu0 %v255
      %v430 = vpop.f32.mrb[0].mxu0
      %v431 = vadd.f32 0.0, %v430
      %v432 = vpop.f32.mrb[0].mxu0
      %433 = vmatprep.mubr.f32.mxu0 0.0
      %434 = vmatmul.mubr.f32.gmra.mrb[0].mxu0 %v258
      %v435 = vpop.f32.mrb[0].mxu0
      %v436 = vadd.f32 0.0, %v435
      %v437 = vpop.f32.mrb[0].mxu0
      %438 = vmatprep.mubr.f32.mxu0 0.0
      %439 = vmatmul.mubr.f32.gmra.mrb[0].mxu0 %v261
      %v440 = vpop.f32.mrb[0].mxu0
      %v441 = vadd.f32 0.0, %v440
      %v442 = vpop.f32.mrb[0].mxu0
      %443 = vmatprep.mubr.f32.mxu0 0.0
      %444 = vmatmul.mubr.f32.gmra.mrb[0].mxu0 %v264
      %v445 = vpop.f32.mrb[0].mxu0
      %v446 = vadd.f32 0.0, %v445
      %v447 = vpop.f32.mrb[0].mxu0
      %448 = vmatprep.mubr.f32.mxu0 0.0
      %449 = vmatmul.mubr.f32.gmra.mrb[0].mxu0 %v267
      %v450 = vpop.f32.mrb[0].mxu0
      %v451 = vadd.f32 0.0, %v450
      %v452 = vpop.f32.mrb[0].mxu0
      %453 = vmatprep.mubr.f32.mxu0 0.0
      %454 = vmatmul.mubr.f32.gmra.mrb[0].mxu0 %v270
      %v455 = vpop.f32.mrb[0].mxu0
      %v456 = vadd.f32 0.0, %v455
      %v457 = vpop.f32.mrb[0].mxu0
      %458 = vmatprep.mubr.f32.mxu0 0.0
      %459 = vmatmul.mubr.f32.gmra.mrb[0].mxu0 %v273
      %v460 = vpop.f32.mrb[0].mxu0
      %v461 = vadd.f32 0.0, %v460
      %v462 = vpop.f32.mrb[0].mxu0
      %463 = vmatprep.mubr.f32.mxu0 0.0
      %464 = vmatmul.mubr.f32.gmra.mrb[0].mxu0 %v276
      %v465 = vpop.f32.mrb[0].mxu0
      %v466 = vadd.f32 0.0, %v465
      %v467 = vpop.f32.mrb[0].mxu0
      %468 = vmatprep.mubr.f32.mxu0 0.0
      %469 = vmatmul.mubr.f32.gmra.mrb[0].mxu0 %v279
      %v470 = vpop.f32.mrb[0].mxu0
      %v471 = vadd.f32 0.0, %v470
      %v472 = vpop.f32.mrb[0].mxu0
      %473 = vmatprep.mubr.f32.mxu0 0.0
      %474 = vmatmul.mubr.f32.gmra.mrb[0].mxu0 %v282
      %v475 = vpop.f32.mrb[0].mxu0
      %v476 = vadd.f32 0.0, %v475
      %v477 = vpop.f32.mrb[0].mxu0
      %478 = vmatprep.mubr.f32.mxu0 0.0
      %479 = vmatmul.mubr.f32.gmra.mrb[0].mxu0 %v285
      %v480 = vpop.f32.mrb[0].mxu0
      %v481 = vadd.f32 0.0, %v480
      %v482 = vpop.f32.mrb[0].mxu0
      %483 = vmatprep.mubr.f32.mxu0 0.0
      %484 = vmatmul.mubr.f32.gmra.mrb[0].mxu0 %v288
      %v485 = vpop.f32.mrb[0].mxu0
      %v486 = vadd.f32 0.0, %v485
      %v487 = vpop.f32.mrb[0].mxu0
      %488 = vmatprep.mubr.f32.mxu0 0.0
      %489 = vmatmul.mubr.f32.gmra.mrb[0].mxu0 %v291
      %v490 = vpop.f32.mrb[0].mxu0
      %v491 = vadd.f32 0.0, %v490
      %v492 = vpop.f32.mrb[0].mxu0
      %493 = vmatprep.mubr.f32.mxu0 0.0
      %494 = vmatmul.mubr.f32.gmra.mrb[0].mxu0 %v294
      %v495 = vpop.f32.mrb[0].mxu0
      %v496 = vadd.f32 0.0, %v495
      %v497 = vpop.f32.mrb[0].mxu0
      %498 = vmatprep.mubr.f32.mxu0 0.0
      %499 = vmatmul.mubr.f32.gmra.mrb[0].mxu0 %v297
      %v500 = vpop.f32.mrb[0].mxu0
      %v501 = vadd.f32 0.0, %v500
      %v502 = vpop.f32.mrb[0].mxu0
      %503 = vmatprep.mubr.f32.mxu0 0.0
      %504 = vmatmul.mubr.f32.gmra.mrb[0].mxu0 %v300
      %v505 = vpop.f32.mrb[0].mxu0
      %v506 = vadd.f32 0.0, %v505
      %v507 = vpop.f32.mrb[0].mxu0
      %508 = vmatprep.mubr.f32.mxu0 0.0
      %509 = vmatmul.mubr.f32.gmra.mrb[0].mxu0 %v303
      %v510 = vpop.f32.mrb[0].mxu0
      %v511 = vadd.f32 0.0, %v510
      %v512 = vpop.f32.mrb[0].mxu0
      %513 = vmatprep.mubr.f32.mxu0 0.0
      %514 = vmatmul.mubr.f32.gmra.mrb[0].mxu0 %v306
      %v515 = vpop.f32.mrb[0].mxu0
      %v516 = vadd.f32 0.0, %v515
      %v517 = vpop.f32.mrb[0].mxu0
      %518 = vmatprep.mubr.f32.mxu0 0.0
      %519 = vmatmul.mubr.f32.gmra.mrb[0].mxu0 %v309
      %v520 = vpop.f32.mrb[0].mxu0
      %v521 = vadd.f32 0.0, %v520
      %v522 = vpop.f32.mrb[0].mxu0
      %523 = vmatprep.mubr.f32.mxu0 0.0
      %524 = vmatmul.mubr.f32.gmra.mrb[0].mxu0 %v312
      %v525 = vpop.f32.mrb[0].mxu0
      %v526 = vadd.f32 0.0, %v525
      %v527 = vpop.f32.mrb[0].mxu0
      %528 = vmatprep.mubr.f32.mxu0 0.0
      %529 = vmatmul.mubr.f32.gmra.mrb[0].mxu0 %v315
      %v530 = vpop.f32.mrb[0].mxu0
      %v531 = vadd.f32 0.0, %v530
      %v532 = vpop.f32.mrb[0].mxu0
      %533 = vmatprep.mubr.f32.mxu0 0.0
      %534 = vmatmul.mubr.f32.gmra.mrb[0].mxu0 %v318
      %v535 = vpop.f32.mrb[0].mxu0
      %v536 = vadd.f32 0.0, %v535
      %v537 = vpop.f32.mrb[0].mxu0
      %538 = vmatprep.mubr.f32.mxu0 0.0
      %539 = vmatmul.mubr.f32.gmra.mrb[0].mxu0 %v321
      %v540 = vpop.f32.mrb[0].mxu0
      %v541 = vadd.f32 0.0, %v540
      %v542 = vpop.f32.mrb[0].mxu0
      %543 = vmatprep.mubr.f32.mxu0 0.0
      %544 = vmatmul.mubr.f32.gmra.mrb[0].mxu0 %v324
      %v545 = vpop.f32.mrb[0].mxu0
      %v546 = vadd.f32 0.0, %v545
      %v547 = vpop.f32.mrb[0].mxu0
      %548 = vmatprep.mubr.f32.mxu0 0.0
      %549 = vmatmul.mubr.f32.gmra.mrb[0].mxu0 %v327
      %v550 = vpop.f32.mrb[0].mxu0
      %v551 = vadd.f32 0.0, %v550
      %v552 = vpop.f32.mrb[0].mxu0
      %553 = vmatprep.mubr.f32.mxu0 0.0
      %554 = vmatmul.mubr.f32.gmra.mrb[0].mxu0 %v330
      %v555 = vpop.f32.mrb[0].mxu0
      %v556 = vadd.f32 0.0, %v555
      %v557 = vpop.f32.mrb[0].mxu0
      %558 = vmatprep.mubr.f32.mxu0 0.0
      %559 = vmatmul.mubr.f32.gmra.mrb[0].mxu0 %v333
      %v560 = vpop.f32.mrb[0].mxu0
      %v561 = vadd.f32 0.0, %v560
      %v562 = vpop.f32.mrb[0].mxu0
      %563 = vdwg.mxu0
      %v564 = vmax.f32 %v406, 0.0
      %v565 = vmax.f32 %v411, 0.0
      %v566 = vmax.f32 %v416, 0.0
      %v567 = vmax.f32 %v421, 0.0
      %v568 = vmax.f32 %v426, 0.0
      %v569 = vmax.f32 %v431, 0.0
      %v570 = vmax.f32 %v436, 0.0
      %v571 = vmax.f32 %v441, 0.0
      %v572 = vmax.f32 %v446, 0.0
      %v573 = vmax.f32 %v451, 0.0
      %v574 = vmax.f32 %v456, 0.0
      %v575 = vmax.f32 %v461, 0.0
      %v576 = vmax.f32 %v466, 0.0
      %v577 = vmax.f32 %v471, 0.0
      %v578 = vmax.f32 %v476, 0.0
      %v579 = vmax.f32 %v481, 0.0
      %v580 = vmax.f32 %v486, 0.0
      %v581 = vmax.f32 %v491, 0.0
      %v582 = vmax.f32 %v496, 0.0
      %v583 = vmax.f32 %v501, 0.0
      %v584 = vmax.f32 %v506, 0.0
      %v585 = vmax.f32 %v511, 0.0
      %v586 = vmax.f32 %v516, 0.0
      %v587 = vmax.f32 %v521, 0.0
      %v588 = vmax.f32 %v526, 0.0
      %v589 = vmax.f32 %v531, 0.0
      %v590 = vmax.f32 %v536, 0.0
      %v591 = vmax.f32 %v541, 0.0
      %v592 = vmax.f32 %v546, 0.0
      %v593 = vmax.f32 %v551, 0.0
      %v594 = vmax.f32 %v556, 0.0
      %v595 = vmax.f32 %v561, 0.0
      %v596 = vld [vmem:[%s3] sm:$0x1]
      %v598 = vlaneseq
      %v599 = vshrl.u32 %v598, 7
      %v600 = vsub.s32 0, %v599
      %v601 = vrot.slane %v596, %v600
      %v603 = vmul.f32 %v564, %v601
      %v604 = vmul.f32 %v565, %v601
      %v605 = vmul.f32 %v566, %v601
      %v606 = vmul.f32 %v567, %v601
      %v607 = vmul.f32 %v568, %v601
      %v608 = vmul.f32 %v569, %v601
      %v609 = vmul.f32 %v570, %v601
      %v610 = vmul.f32 %v571, %v601
      %v611 = vmul.f32 %v572, %v601
      %v612 = vmul.f32 %v573, %v601
      %v613 = vmul.f32 %v574, %v601
      %v614 = vmul.f32 %v575, %v601
      %v615 = vmul.f32 %v576, %v601
      %v616 = vmul.f32 %v577, %v601
      %v617 = vmul.f32 %v578, %v601
      %v618 = vmul.f32 %v579, %v601
      %v619 = vmul.f32 %v580, %v601
      %v620 = vmul.f32 %v581, %v601
      %v621 = vmul.f32 %v582, %v601
      %v622 = vmul.f32 %v583, %v601
      %v623 = vmul.f32 %v584, %v601
      %v624 = vmul.f32 %v585, %v601
      %v625 = vmul.f32 %v586, %v601
      %v626 = vmul.f32 %v587, %v601
      %v627 = vmul.f32 %v588, %v601
      %v628 = vmul.f32 %v589, %v601
      %v629 = vmul.f32 %v590, %v601
      %v630 = vmul.f32 %v591, %v601
      %v631 = vmul.f32 %v592, %v601
      %v632 = vmul.f32 %v593, %v601
      %v633 = vmul.f32 %v594, %v601
      %v634 = vmul.f32 %v595, %v601
      %vm635 = vcmask 64512
      %v636 = vsel %vm635, %v603, 0.0
      %637 = vadd.xlane.f32.xlu0 %v636
      %v638 = vpop.xlane.xlu0 %637
      %v639 = vsel %vm635, %v604, 0.0
      %640 = vadd.xlane.f32.xlu0 %v639
      %v641 = vpop.xlane.xlu0 %640
      %v642 = vsel %vm635, %v605, 0.0
      %643 = vadd.xlane.f32.xlu0 %v642
      %v644 = vpop.xlane.xlu0 %643
      %v645 = vsel %vm635, %v606, 0.0
      %646 = vadd.xlane.f32.xlu0 %v645
      %v647 = vpop.xlane.xlu0 %646
      %v648 = vsel %vm635, %v607, 0.0
      %649 = vadd.xlane.f32.xlu0 %v648
      %v650 = vpop.xlane.xlu0 %649
      %v651 = vsel %vm635, %v608, 0.0
      %652 = vadd.xlane.f32.xlu0 %v651
      %v653 = vpop.xlane.xlu0 %652
      %v654 = vsel %vm635, %v609, 0.0
      %655 = vadd.xlane.f32.xlu0 %v654
      %v656 = vpop.xlane.xlu0 %655
      %v657 = vsel %vm635, %v610, 0.0
      %658 = vadd.xlane.f32.xlu0 %v657
      %v659 = vpop.xlane.xlu0 %658
      %v660 = vsel %vm635, %v611, 0.0
      %661 = vadd.xlane.f32.xlu0 %v660
      %v662 = vpop.xlane.xlu0 %661
      %v663 = vsel %vm635, %v612, 0.0
      %664 = vadd.xlane.f32.xlu0 %v663
      %v665 = vpop.xlane.xlu0 %664
      %v666 = vsel %vm635, %v613, 0.0
      %667 = vadd.xlane.f32.xlu0 %v666
      %v668 = vpop.xlane.xlu0 %667
      %v669 = vsel %vm635, %v614, 0.0
      %670 = vadd.xlane.f32.xlu0 %v669
      %v671 = vpop.xlane.xlu0 %670
      %v672 = vsel %vm635, %v615, 0.0
      %673 = vadd.xlane.f32.xlu0 %v672
      %v674 = vpop.xlane.xlu0 %673
      %v675 = vsel %vm635, %v616, 0.0
      %676 = vadd.xlane.f32.xlu0 %v675
      %v677 = vpop.xlane.xlu0 %676
      %v678 = vsel %vm635, %v617, 0.0
      %679 = vadd.xlane.f32.xlu0 %v678
      %v680 = vpop.xlane.xlu0 %679
      %v681 = vsel %vm635, %v618, 0.0
      %682 = vadd.xlane.f32.xlu0 %v681
      %v683 = vpop.xlane.xlu0 %682
      %v684 = vsel %vm635, %v619, 0.0
      %685 = vadd.xlane.f32.xlu0 %v684
      %v686 = vpop.xlane.xlu0 %685
      %v687 = vsel %vm635, %v620, 0.0
      %688 = vadd.xlane.f32.xlu0 %v687
      %v689 = vpop.xlane.xlu0 %688
      %v690 = vsel %vm635, %v621, 0.0
      %691 = vadd.xlane.f32.xlu0 %v690
      %v692 = vpop.xlane.xlu0 %691
      %v693 = vsel %vm635, %v622, 0.0
      %694 = vadd.xlane.f32.xlu0 %v693
      %v695 = vpop.xlane.xlu0 %694
      %v696 = vsel %vm635, %v623, 0.0
      %697 = vadd.xlane.f32.xlu0 %v696
      %v698 = vpop.xlane.xlu0 %697
      %v699 = vsel %vm635, %v624, 0.0
      %700 = vadd.xlane.f32.xlu0 %v699
      %v701 = vpop.xlane.xlu0 %700
      %v702 = vsel %vm635, %v625, 0.0
      %703 = vadd.xlane.f32.xlu0 %v702
      %v704 = vpop.xlane.xlu0 %703
      %v705 = vsel %vm635, %v626, 0.0
      %706 = vadd.xlane.f32.xlu0 %v705
      %v707 = vpop.xlane.xlu0 %706
      %v708 = vsel %vm635, %v627, 0.0
      %709 = vadd.xlane.f32.xlu0 %v708
      %v710 = vpop.xlane.xlu0 %709
      %v711 = vsel %vm635, %v628, 0.0
      %712 = vadd.xlane.f32.xlu0 %v711
      %v713 = vpop.xlane.xlu0 %712
      %v714 = vsel %vm635, %v629, 0.0
      %715 = vadd.xlane.f32.xlu0 %v714
      %v716 = vpop.xlane.xlu0 %715
      %v717 = vsel %vm635, %v630, 0.0
      %718 = vadd.xlane.f32.xlu0 %v717
      %v719 = vpop.xlane.xlu0 %718
      %v720 = vsel %vm635, %v631, 0.0
      %721 = vadd.xlane.f32.xlu0 %v720
      %v722 = vpop.xlane.xlu0 %721
      %v723 = vsel %vm635, %v632, 0.0
      %724 = vadd.xlane.f32.xlu0 %v723
      %v725 = vpop.xlane.xlu0 %724
      %v726 = vsel %vm635, %v633, 0.0
      %727 = vadd.xlane.f32.xlu0 %v726
      %v728 = vpop.xlane.xlu0 %727
      %v729 = vsel %vm635, %v634, 0.0
      %730 = vadd.xlane.f32.xlu0 %v729
      %v731 = vpop.xlane.xlu0 %730
      %v732 = vadd.f32 %v638, %v601
      %v733 = vadd.f32 %v641, %v601
      %v734 = vadd.f32 %v644, %v601
      %v735 = vadd.f32 %v647, %v601
      %v736 = vadd.f32 %v650, %v601
      %v737 = vadd.f32 %v653, %v601
      %v738 = vadd.f32 %v656, %v601
      %v739 = vadd.f32 %v659, %v601
      %v740 = vadd.f32 %v662, %v601
      %v741 = vadd.f32 %v665, %v601
      %v742 = vadd.f32 %v668, %v601
      %v743 = vadd.f32 %v671, %v601
      %v744 = vadd.f32 %v674, %v601
      %v745 = vadd.f32 %v677, %v601
      %v746 = vadd.f32 %v680, %v601
      %v747 = vadd.f32 %v683, %v601
      %v748 = vadd.f32 %v686, %v601
      %v749 = vadd.f32 %v689, %v601
      %v750 = vadd.f32 %v692, %v601
      %v751 = vadd.f32 %v695, %v601
      %v752 = vadd.f32 %v698, %v601
      %v753 = vadd.f32 %v701, %v601
      %v754 = vadd.f32 %v704, %v601
      %v755 = vadd.f32 %v707, %v601
      %v756 = vadd.f32 %v710, %v601
      %v757 = vadd.f32 %v713, %v601
      %v758 = vadd.f32 %v716, %v601
      %v759 = vadd.f32 %v719, %v601
      %v760 = vadd.f32 %v722, %v601
      %v761 = vadd.f32 %v725, %v601
      %v762 = vadd.f32 %v728, %v601
      %v763 = vadd.f32 %v731, %v601
      %vm764 = vcmp.gt.f32.partialorder %v732, 0.0
      %vm765 = vcmp.gt.f32.partialorder %v733, 0.0
      %vm766 = vcmp.gt.f32.partialorder %v734, 0.0
      %vm767 = vcmp.gt.f32.partialorder %v735, 0.0
      %vm768 = vcmp.gt.f32.partialorder %v736, 0.0
      %vm769 = vcmp.gt.f32.partialorder %v737, 0.0
      %vm770 = vcmp.gt.f32.partialorder %v738, 0.0
      %vm771 = vcmp.gt.f32.partialorder %v739, 0.0
      %vm772 = vcmp.gt.f32.partialorder %v740, 0.0
      %vm773 = vcmp.gt.f32.partialorder %v741, 0.0
      %vm774 = vcmp.gt.f32.partialorder %v742, 0.0
      %vm775 = vcmp.gt.f32.partialorder %v743, 0.0
      %vm776 = vcmp.gt.f32.partialorder %v744, 0.0
      %vm777 = vcmp.gt.f32.partialorder %v745, 0.0
      %vm778 = vcmp.gt.f32.partialorder %v746, 0.0
      %vm779 = vcmp.gt.f32.partialorder %v747, 0.0
      %vm780 = vcmp.gt.f32.partialorder %v748, 0.0
      %vm781 = vcmp.gt.f32.partialorder %v749, 0.0
      %vm782 = vcmp.gt.f32.partialorder %v750, 0.0
      %vm783 = vcmp.gt.f32.partialorder %v751, 0.0
      %vm784 = vcmp.gt.f32.partialorder %v752, 0.0
      %vm785 = vcmp.gt.f32.partialorder %v753, 0.0
      %vm786 = vcmp.gt.f32.partialorder %v754, 0.0
      %vm787 = vcmp.gt.f32.partialorder %v755, 0.0
      %vm788 = vcmp.gt.f32.partialorder %v756, 0.0
      %vm789 = vcmp.gt.f32.partialorder %v757, 0.0
      %vm790 = vcmp.gt.f32.partialorder %v758, 0.0
      %vm791 = vcmp.gt.f32.partialorder %v759, 0.0
      %vm792 = vcmp.gt.f32.partialorder %v760, 0.0
      %vm793 = vcmp.gt.f32.partialorder %v761, 0.0
      %vm794 = vcmp.gt.f32.partialorder %v762, 0.0
      %vm795 = vcmp.gt.f32.partialorder %v763, 0.0
      %vm796 = vcmp.gt.f32.partialorder %v201, 0.0
      %vm797 = vcmp.gt.f32.partialorder %v202, 0.0
      %vm798 = vcmp.gt.f32.partialorder %v203, 0.0
      %vm799 = vcmp.gt.f32.partialorder %v204, 0.0
      %vm800 = vcmp.gt.f32.partialorder %v205, 0.0
      %vm801 = vcmp.gt.f32.partialorder %v206, 0.0
      %vm802 = vcmp.gt.f32.partialorder %v207, 0.0
      %vm803 = vcmp.gt.f32.partialorder %v208, 0.0
      %vm804 = vcmp.gt.f32.partialorder %v209, 0.0
      %vm805 = vcmp.gt.f32.partialorder %v210, 0.0
      %vm806 = vcmp.gt.f32.partialorder %v211, 0.0
      %vm807 = vcmp.gt.f32.partialorder %v212, 0.0
      %vm808 = vcmp.gt.f32.partialorder %v213, 0.0
      %vm809 = vcmp.gt.f32.partialorder %v214, 0.0
      %vm810 = vcmp.gt.f32.partialorder %v215, 0.0
      %vm811 = vcmp.gt.f32.partialorder %v216, 0.0
      %vm812 = vcmp.gt.f32.partialorder %v217, 0.0
      %vm813 = vcmp.gt.f32.partialorder %v218, 0.0
      %vm814 = vcmp.gt.f32.partialorder %v219, 0.0
      %vm815 = vcmp.gt.f32.partialorder %v220, 0.0
      %vm816 = vcmp.gt.f32.partialorder %v221, 0.0
      %vm817 = vcmp.gt.f32.partialorder %v222, 0.0
      %vm818 = vcmp.gt.f32.partialorder %v223, 0.0
      %vm819 = vcmp.gt.f32.partialorder %v224, 0.0
      %vm820 = vcmp.gt.f32.partialorder %v225, 0.0
      %vm821 = vcmp.gt.f32.partialorder %v226, 0.0
      %vm822 = vcmp.gt.f32.partialorder %v227, 0.0
      %vm823 = vcmp.gt.f32.partialorder %v228, 0.0
      %vm824 = vcmp.gt.f32.partialorder %v229, 0.0
      %vm825 = vcmp.gt.f32.partialorder %v230, 0.0
      %vm826 = vcmp.gt.f32.partialorder %v231, 0.0
      %vm827 = vcmp.gt.f32.partialorder %v232, 0.0
      %v828 = vsel %vm796, 1, 0
      %v829 = vsel %vm797, 1, 0
      %v830 = vsel %vm798, 1, 0
      %v831 = vsel %vm799, 1, 0
      %v832 = vsel %vm800, 1, 0
      %v833 = vsel %vm801, 1, 0
      %v834 = vsel %vm802, 1, 0
      %v835 = vsel %vm803, 1, 0
      %v836 = vsel %vm804, 1, 0
      %v837 = vsel %vm805, 1, 0
      %v838 = vsel %vm806, 1, 0
      %v839 = vsel %vm807, 1, 0
      %v840 = vsel %vm808, 1, 0
      %v841 = vsel %vm809, 1, 0
      %v842 = vsel %vm810, 1, 0
      %v843 = vsel %vm811, 1, 0
      %v844 = vsel %vm812, 1, 0
      %v845 = vsel %vm813, 1, 0
      %v846 = vsel %vm814, 1, 0
      %v847 = vsel %vm815, 1, 0
      %v848 = vsel %vm816, 1, 0
      %v849 = vsel %vm817, 1, 0
      %v850 = vsel %vm818, 1, 0
      %v851 = vsel %vm819, 1, 0
      %v852 = vsel %vm820, 1, 0
      %v853 = vsel %vm821, 1, 0
      %v854 = vsel %vm822, 1, 0
      %v855 = vsel %vm823, 1, 0
      %v856 = vsel %vm824, 1, 0
      %v857 = vsel %vm825, 1, 0
      %v858 = vsel %vm826, 1, 0
      %v859 = vsel %vm827, 1, 0
      %860 = vrot.lane.b32.xlu0 %v828, 99
      %v861 = vpop.permute.xlu0 %860
      %862 = vrot.lane.b32.xlu0 %v829, 99
      %v863 = vpop.permute.xlu0 %862
      %864 = vrot.lane.b32.xlu0 %v830, 99
      %v865 = vpop.permute.xlu0 %864
      %866 = vrot.lane.b32.xlu0 %v831, 99
      %v867 = vpop.permute.xlu0 %866
      %868 = vrot.lane.b32.xlu0 %v832, 99
      %v869 = vpop.permute.xlu0 %868
      %870 = vrot.lane.b32.xlu0 %v833, 99
      %v871 = vpop.permute.xlu0 %870
      %872 = vrot.lane.b32.xlu0 %v834, 99
      %v873 = vpop.permute.xlu0 %872
      %874 = vrot.lane.b32.xlu0 %v835, 99
      %v875 = vpop.permute.xlu0 %874
      %876 = vrot.lane.b32.xlu0 %v836, 99
      %v877 = vpop.permute.xlu0 %876
      %878 = vrot.lane.b32.xlu0 %v837, 99
      %v879 = vpop.permute.xlu0 %878
      %880 = vrot.lane.b32.xlu0 %v838, 99
      %v881 = vpop.permute.xlu0 %880
      %882 = vrot.lane.b32.xlu0 %v839, 99
      %v883 = vpop.permute.xlu0 %882
      %884 = vrot.lane.b32.xlu0 %v840, 99
      %v885 = vpop.permute.xlu0 %884
      %886 = vrot.lane.b32.xlu0 %v841, 99
      %v887 = vpop.permute.xlu0 %886
      %888 = vrot.lane.b32.xlu0 %v842, 99
      %v889 = vpop.permute.xlu0 %888
      %890 = vrot.lane.b32.xlu0 %v843, 99
      %v891 = vpop.permute.xlu0 %890
      %892 = vrot.lane.b32.xlu0 %v844, 99
      %v893 = vpop.permute.xlu0 %892
      %894 = vrot.lane.b32.xlu0 %v845, 99
      %v895 = vpop.permute.xlu0 %894
      %896 = vrot.lane.b32.xlu0 %v846, 99
      %v897 = vpop.permute.xlu0 %896
      %898 = vrot.lane.b32.xlu0 %v847, 99
      %v899 = vpop.permute.xlu0 %898
      %900 = vrot.lane.b32.xlu0 %v848, 99
      %v901 = vpop.permute.xlu0 %900
      %902 = vrot.lane.b32.xlu0 %v849, 99
      %v903 = vpop.permute.xlu0 %902
      %904 = vrot.lane.b32.xlu0 %v850, 99
      %v905 = vpop.permute.xlu0 %904
      %906 = vrot.lane.b32.xlu0 %v851, 99
      %v907 = vpop.permute.xlu0 %906
      %908 = vrot.lane.b32.xlu0 %v852, 99
      %v909 = vpop.permute.xlu0 %908
      %910 = vrot.lane.b32.xlu0 %v853, 99
      %v911 = vpop.permute.xlu0 %910
      %912 = vrot.lane.b32.xlu0 %v854, 99
      %v913 = vpop.permute.xlu0 %912
      %914 = vrot.lane.b32.xlu0 %v855, 99
      %v915 = vpop.permute.xlu0 %914
      %916 = vrot.lane.b32.xlu0 %v856, 99
      %v917 = vpop.permute.xlu0 %916
      %918 = vrot.lane.b32.xlu0 %v857, 99
      %v919 = vpop.permute.xlu0 %918
      %920 = vrot.lane.b32.xlu0 %v858, 99
      %v921 = vpop.permute.xlu0 %920
      %922 = vrot.lane.b32.xlu0 %v859, 99
      %v923 = vpop.permute.xlu0 %922
      %vm924 = vcmp.ne.s32.totalorder %v861, 0
      %vm925 = vcmp.ne.s32.totalorder %v863, 0
      %vm926 = vcmp.ne.s32.totalorder %v865, 0
      %vm927 = vcmp.ne.s32.totalorder %v867, 0
      %vm928 = vcmp.ne.s32.totalorder %v869, 0
      %vm929 = vcmp.ne.s32.totalorder %v871, 0
      %vm930 = vcmp.ne.s32.totalorder %v873, 0
      %vm931 = vcmp.ne.s32.totalorder %v875, 0
      %vm932 = vcmp.ne.s32.totalorder %v877, 0
      %vm933 = vcmp.ne.s32.totalorder %v879, 0
      %vm934 = vcmp.ne.s32.totalorder %v881, 0
      %vm935 = vcmp.ne.s32.totalorder %v883, 0
      %vm936 = vcmp.ne.s32.totalorder %v885, 0
      %vm937 = vcmp.ne.s32.totalorder %v887, 0
      %vm938 = vcmp.ne.s32.totalorder %v889, 0
      %vm939 = vcmp.ne.s32.totalorder %v891, 0
      %vm940 = vcmp.ne.s32.totalorder %v893, 0
      %vm941 = vcmp.ne.s32.totalorder %v895, 0
      %vm942 = vcmp.ne.s32.totalorder %v897, 0
      %vm943 = vcmp.ne.s32.totalorder %v899, 0
      %vm944 = vcmp.ne.s32.totalorder %v901, 0
      %vm945 = vcmp.ne.s32.totalorder %v903, 0
      %vm946 = vcmp.ne.s32.totalorder %v905, 0
      %vm947 = vcmp.ne.s32.totalorder %v907, 0
      %vm948 = vcmp.ne.s32.totalorder %v909, 0
      %vm949 = vcmp.ne.s32.totalorder %v911, 0
      %vm950 = vcmp.ne.s32.totalorder %v913, 0
      %vm951 = vcmp.ne.s32.totalorder %v915, 0
      %vm952 = vcmp.ne.s32.totalorder %v917, 0
      %vm953 = vcmp.ne.s32.totalorder %v919, 0
      %vm954 = vcmp.ne.s32.totalorder %v921, 0
      %vm955 = vcmp.ne.s32.totalorder %v923, 0
      %vm956 = vmor %vm764, %vm924
      %vm957 = vmor %vm765, %vm925
      %vm958 = vmor %vm766, %vm926
      %vm959 = vmor %vm767, %vm927
      %vm960 = vmor %vm768, %vm928
      %vm961 = vmor %vm769, %vm929
      %vm962 = vmor %vm770, %vm930
      %vm963 = vmor %vm771, %vm931
      %vm964 = vmor %vm772, %vm932
      %vm965 = vmor %vm773, %vm933
      %vm966 = vmor %vm774, %vm934
      %vm967 = vmor %vm775, %vm935
      %vm968 = vmor %vm776, %vm936
      %vm969 = vmor %vm777, %vm937
      %vm970 = vmor %vm778, %vm938
      %vm971 = vmor %vm779, %vm939
      %vm972 = vmor %vm780, %vm940
      %vm973 = vmor %vm781, %vm941
      %vm974 = vmor %vm782, %vm942
      %vm975 = vmor %vm783, %vm943
      %vm976 = vmor %vm784, %vm944
      %vm977 = vmor %vm785, %vm945
      %vm978 = vmor %vm786, %vm946
      %vm979 = vmor %vm787, %vm947
      %vm980 = vmor %vm788, %vm948
      %vm981 = vmor %vm789, %vm949
      %vm982 = vmor %vm790, %vm950
      %vm983 = vmor %vm791, %vm951
      %vm984 = vmor %vm792, %vm952
      %vm985 = vmor %vm793, %vm953
      %vm986 = vmor %vm794, %vm954
      %vm987 = vmor %vm795, %vm955
      %v988 = vsel %vm956, 1, 0
      %v989 = vsel %vm957, 1, 0
      %v990 = vsel %vm958, 1, 0
      %v991 = vsel %vm959, 1, 0
      %v992 = vsel %vm960, 1, 0
      %v993 = vsel %vm961, 1, 0
      %v994 = vsel %vm962, 1, 0
      %v995 = vsel %vm963, 1, 0
      %v996 = vsel %vm964, 1, 0
      %v997 = vsel %vm965, 1, 0
      %v998 = vsel %vm966, 1, 0
      %v999 = vsel %vm967, 1, 0
      %v1000 = vsel %vm968, 1, 0
      %v1001 = vsel %vm969, 1, 0
      %v1002 = vsel %vm970, 1, 0
      %v1003 = vsel %vm971, 1, 0
      %v1004 = vsel %vm972, 1, 0
      %v1005 = vsel %vm973, 1, 0
      %v1006 = vsel %vm974, 1, 0
      %v1007 = vsel %vm975, 1, 0
      %v1008 = vsel %vm976, 1, 0
      %v1009 = vsel %vm977, 1, 0
      %v1010 = vsel %vm978, 1, 0
      %v1011 = vsel %vm979, 1, 0
      %v1012 = vsel %vm980, 1, 0
      %v1013 = vsel %vm981, 1, 0
      %v1014 = vsel %vm982, 1, 0
      %v1015 = vsel %vm983, 1, 0
      %v1016 = vsel %vm984, 1, 0
      %v1017 = vsel %vm985, 1, 0
      %v1018 = vsel %vm986, 1, 0
      %v1019 = vsel %vm987, 1, 0
      %v1020 = vcvt.s32.f32 %v988
      %v1021 = vcvt.s32.f32 %v989
      %v1022 = vcvt.s32.f32 %v990
      %v1023 = vcvt.s32.f32 %v991
      %v1024 = vcvt.s32.f32 %v992
      %v1025 = vcvt.s32.f32 %v993
      %v1026 = vcvt.s32.f32 %v994
      %v1027 = vcvt.s32.f32 %v995
      %v1028 = vcvt.s32.f32 %v996
      %v1029 = vcvt.s32.f32 %v997
      %v1030 = vcvt.s32.f32 %v998
      %v1031 = vcvt.s32.f32 %v999
      %v1032 = vcvt.s32.f32 %v1000
      %v1033 = vcvt.s32.f32 %v1001
      %v1034 = vcvt.s32.f32 %v1002
      %v1035 = vcvt.s32.f32 %v1003
      %v1036 = vcvt.s32.f32 %v1004
      %v1037 = vcvt.s32.f32 %v1005
      %v1038 = vcvt.s32.f32 %v1006
      %v1039 = vcvt.s32.f32 %v1007
      %v1040 = vcvt.s32.f32 %v1008
      %v1041 = vcvt.s32.f32 %v1009
      %v1042 = vcvt.s32.f32 %v1010
      %v1043 = vcvt.s32.f32 %v1011
      %v1044 = vcvt.s32.f32 %v1012
      %v1045 = vcvt.s32.f32 %v1013
      %v1046 = vcvt.s32.f32 %v1014
      %v1047 = vcvt.s32.f32 %v1015
      %v1048 = vcvt.s32.f32 %v1016
      %v1049 = vcvt.s32.f32 %v1017
      %v1050 = vcvt.s32.f32 %v1018
      %v1051 = vcvt.s32.f32 %v1019
      %vm1084 = vcmask 1040384
      %v1085 = vrot.slane %v1020, 7
      %v1086 = vrot.slane %v1021, 7
      %v1087 = vsel %vm1084, %v1085, %v1086
      %v1088 = vrot.slane %v1022, 7
      %v1089 = vsel %vm1084, %v1086, %v1088
      %v1090 = vrot.slane %v1023, 7
      %v1091 = vsel %vm1084, %v1088, %v1090
      %v1092 = vrot.slane %v1024, 7
      %v1093 = vsel %vm1084, %v1090, %v1092
      %v1094 = vrot.slane %v1025, 7
      %v1095 = vsel %vm1084, %v1092, %v1094
      %v1096 = vrot.slane %v1026, 7
      %v1097 = vsel %vm1084, %v1094, %v1096
      %v1098 = vrot.slane %v1027, 7
      %v1099 = vsel %vm1084, %v1096, %v1098
      %v1100 = vrot.slane %v1028, 7
      %v1101 = vsel %vm1084, %v1098, %v1100
      %v1102 = vrot.slane %v1029, 7
      %v1103 = vsel %vm1084, %v1100, %v1102
      %v1104 = vrot.slane %v1030, 7
      %v1105 = vsel %vm1084, %v1102, %v1104
      %v1106 = vrot.slane %v1031, 7
      %v1107 = vsel %vm1084, %v1104, %v1106
      %v1108 = vrot.slane %v1032, 7
      %v1109 = vsel %vm1084, %v1106, %v1108
      %v1110 = vrot.slane %v1033, 7
      %v1111 = vsel %vm1084, %v1108, %v1110
      %v1112 = vrot.slane %v1034, 7
      %v1113 = vsel %vm1084, %v1110, %v1112
      %v1114 = vrot.slane %v1035, 7
      %v1115 = vsel %vm1084, %v1112, %v1114
      %v1116 = vrot.slane %v1036, 7
      %v1117 = vsel %vm1084, %v1114, %v1116
      %v1118 = vrot.slane %v1037, 7
      %v1119 = vsel %vm1084, %v1116, %v1118
      %v1120 = vrot.slane %v1038, 7
      %v1121 = vsel %vm1084, %v1118, %v1120
      %v1122 = vrot.slane %v1039, 7
      %v1123 = vsel %vm1084, %v1120, %v1122
      %v1124 = vrot.slane %v1040, 7
      %v1125 = vsel %vm1084, %v1122, %v1124
      %v1126 = vrot.slane %v1041, 7
      %v1127 = vsel %vm1084, %v1124, %v1126
      %v1128 = vrot.slane %v1042, 7
      %v1129 = vsel %vm1084, %v1126, %v1128
      %v1130 = vrot.slane %v1043, 7
      %v1131 = vsel %vm1084, %v1128, %v1130
      %v1132 = vrot.slane %v1044, 7
      %v1133 = vsel %vm1084, %v1130, %v1132
      %v1134 = vrot.slane %v1045, 7
      %v1135 = vsel %vm1084, %v1132, %v1134
      %v1136 = vrot.slane %v1046, 7
      %v1137 = vsel %vm1084, %v1134, %v1136
      %v1138 = vrot.slane %v1047, 7
      %v1139 = vsel %vm1084, %v1136, %v1138
      %v1140 = vrot.slane %v1048, 7
      %v1141 = vsel %vm1084, %v1138, %v1140
      %v1142 = vrot.slane %v1049, 7
      %v1143 = vsel %vm1084, %v1140, %v1142
      %v1144 = vrot.slane %v1050, 7
      %v1145 = vsel %vm1084, %v1142, %v1144
      %v1146 = vrot.slane %v1051, 7
      %v1147 = vsel %vm1084, %v1144, %v1146
      %1148 = vrot.lane.b32.xlu0 %v1085, 120
      %v1149 = vpop.permute.xlu0 %1148
      %1150 = vrot.lane.b32.xlu0 %v1087, 120
      %v1151 = vpop.permute.xlu0 %1150
      %1152 = vrot.lane.b32.xlu0 %v1089, 120
      %v1153 = vpop.permute.xlu0 %1152
      %1154 = vrot.lane.b32.xlu0 %v1091, 120
      %v1155 = vpop.permute.xlu0 %1154
      %1156 = vrot.lane.b32.xlu0 %v1093, 120
      %v1157 = vpop.permute.xlu0 %1156
      %1158 = vrot.lane.b32.xlu0 %v1095, 120
      %v1159 = vpop.permute.xlu0 %1158
      %1160 = vrot.lane.b32.xlu0 %v1097, 120
      %v1161 = vpop.permute.xlu0 %1160
      %1162 = vrot.lane.b32.xlu0 %v1099, 120
      %v1163 = vpop.permute.xlu0 %1162
      %1164 = vrot.lane.b32.xlu0 %v1101, 120
      %v1165 = vpop.permute.xlu0 %1164
      %1166 = vrot.lane.b32.xlu0 %v1103, 120
      %v1167 = vpop.permute.xlu0 %1166
      %1168 = vrot.lane.b32.xlu0 %v1105, 120
      %v1169 = vpop.permute.xlu0 %1168
      %1170 = vrot.lane.b32.xlu0 %v1107, 120
      %v1171 = vpop.permute.xlu0 %1170
      %1172 = vrot.lane.b32.xlu0 %v1109, 120
      %v1173 = vpop.permute.xlu0 %1172
      %1174 = vrot.lane.b32.xlu0 %v1111, 120
      %v1175 = vpop.permute.xlu0 %1174
      %1176 = vrot.lane.b32.xlu0 %v1113, 120
      %v1177 = vpop.permute.xlu0 %1176
      %1178 = vrot.lane.b32.xlu0 %v1115, 120
      %v1179 = vpop.permute.xlu0 %1178
      %1180 = vrot.lane.b32.xlu0 %v1117, 120
      %v1181 = vpop.permute.xlu0 %1180
      %1182 = vrot.lane.b32.xlu0 %v1119, 120
      %v1183 = vpop.permute.xlu0 %1182
      %1184 = vrot.lane.b32.xlu0 %v1121, 120
      %v1185 = vpop.permute.xlu0 %1184
      %1186 = vrot.lane.b32.xlu0 %v1123, 120
      %v1187 = vpop.permute.xlu0 %1186
      %1188 = vrot.lane.b32.xlu0 %v1125, 120
      %v1189 = vpop.permute.xlu0 %1188
      %1190 = vrot.lane.b32.xlu0 %v1127, 120
      %v1191 = vpop.permute.xlu0 %1190
      %1192 = vrot.lane.b32.xlu0 %v1129, 120
      %v1193 = vpop.permute.xlu0 %1192
      %1194 = vrot.lane.b32.xlu0 %v1131, 120
      %v1195 = vpop.permute.xlu0 %1194
      %1196 = vrot.lane.b32.xlu0 %v1133, 120
      %v1197 = vpop.permute.xlu0 %1196
      %1198 = vrot.lane.b32.xlu0 %v1135, 120
      %v1199 = vpop.permute.xlu0 %1198
      %1200 = vrot.lane.b32.xlu0 %v1137, 120
      %v1201 = vpop.permute.xlu0 %1200
      %1202 = vrot.lane.b32.xlu0 %v1139, 120
      %v1203 = vpop.permute.xlu0 %1202
      %1204 = vrot.lane.b32.xlu0 %v1141, 120
      %v1205 = vpop.permute.xlu0 %1204
      %1206 = vrot.lane.b32.xlu0 %v1143, 120
      %v1207 = vpop.permute.xlu0 %1206
      %1208 = vrot.lane.b32.xlu0 %v1145, 120
      %v1209 = vpop.permute.xlu0 %1208
      %1210 = vrot.lane.b32.xlu0 %v1147, 120
      %v1211 = vpop.permute.xlu0 %1210
      %v1213 = vsel %vm1084, 0.0, %v1149
      %1215 = vset.pattern.permute.xlu0 0
      %1216 = vperm.xlu0 %1215, %v1213
      %v1217 = vpop.permute.xlu0 %1216
      %1219 = vset.pattern.permute.xlu0 0
      %1220 = vperm.xlu0 %1219, %v1151
      %v1221 = vpop.permute.xlu0 %1220
      %1223 = vset.pattern.permute.xlu0 0
      %1224 = vperm.xlu0 %1223, %v1153
      %v1225 = vpop.permute.xlu0 %1224
      %1227 = vset.pattern.permute.xlu0 0
      %1228 = vperm.xlu0 %1227, %v1155
      %v1229 = vpop.permute.xlu0 %1228
      %1231 = vset.pattern.permute.xlu0 0
      %1232 = vperm.xlu0 %1231, %v1157
      %v1233 = vpop.permute.xlu0 %1232
      %1235 = vset.pattern.permute.xlu0 0
      %1236 = vperm.xlu0 %1235, %v1159
      %v1237 = vpop.permute.xlu0 %1236
      %1239 = vset.pattern.permute.xlu0 0
      %1240 = vperm.xlu0 %1239, %v1161
      %v1241 = vpop.permute.xlu0 %1240
      %1243 = vset.pattern.permute.xlu0 0
      %1244 = vperm.xlu0 %1243, %v1163
      %v1245 = vpop.permute.xlu0 %1244
      %1247 = vset.pattern.permute.xlu0 0
      %1248 = vperm.xlu0 %1247, %v1165
      %v1249 = vpop.permute.xlu0 %1248
      %1251 = vset.pattern.permute.xlu0 0
      %1252 = vperm.xlu0 %1251, %v1167
      %v1253 = vpop.permute.xlu0 %1252
      %1255 = vset.pattern.permute.xlu0 0
      %1256 = vperm.xlu0 %1255, %v1169
      %v1257 = vpop.permute.xlu0 %1256
      %1259 = vset.pattern.permute.xlu0 0
      %1260 = vperm.xlu0 %1259, %v1171
      %v1261 = vpop.permute.xlu0 %1260
      %1263 = vset.pattern.permute.xlu0 0
      %1264 = vperm.xlu0 %1263, %v1173
      %v1265 = vpop.permute.xlu0 %1264
      %1267 = vset.pattern.permute.xlu0 0
      %1268 = vperm.xlu0 %1267, %v1175
      %v1269 = vpop.permute.xlu0 %1268
      %1271 = vset.pattern.permute.xlu0 0
      %1272 = vperm.xlu0 %1271, %v1177
      %v1273 = vpop.permute.xlu0 %1272
      %1275 = vset.pattern.permute.xlu0 0
      %1276 = vperm.xlu0 %1275, %v1179
      %v1277 = vpop.permute.xlu0 %1276
      %1279 = vset.pattern.permute.xlu0 0
      %1280 = vperm.xlu0 %1279, %v1181
      %v1281 = vpop.permute.xlu0 %1280
      %1283 = vset.pattern.permute.xlu0 0
      %1284 = vperm.xlu0 %1283, %v1183
      %v1285 = vpop.permute.xlu0 %1284
      %1287 = vset.pattern.permute.xlu0 0
      %1288 = vperm.xlu0 %1287, %v1185
      %v1289 = vpop.permute.xlu0 %1288
      %1291 = vset.pattern.permute.xlu0 0
      %1292 = vperm.xlu0 %1291, %v1187
      %v1293 = vpop.permute.xlu0 %1292
      %1295 = vset.pattern.permute.xlu0 0
      %1296 = vperm.xlu0 %1295, %v1189
      %v1297 = vpop.permute.xlu0 %1296
      %1299 = vset.pattern.permute.xlu0 0
      %1300 = vperm.xlu0 %1299, %v1191
      %v1301 = vpop.permute.xlu0 %1300
      %1303 = vset.pattern.permute.xlu0 0
      %1304 = vperm.xlu0 %1303, %v1193
      %v1305 = vpop.permute.xlu0 %1304
      %1307 = vset.pattern.permute.xlu0 0
      %1308 = vperm.xlu0 %1307, %v1195
      %v1309 = vpop.permute.xlu0 %1308
      %1311 = vset.pattern.permute.xlu0 0
      %1312 = vperm.xlu0 %1311, %v1197
      %v1313 = vpop.permute.xlu0 %1312
      %1315 = vset.pattern.permute.xlu0 0
      %1316 = vperm.xlu0 %1315, %v1199
      %v1317 = vpop.permute.xlu0 %1316
      %1319 = vset.pattern.permute.xlu0 0
      %1320 = vperm.xlu0 %1319, %v1201
      %v1321 = vpop.permute.xlu0 %1320
      %1323 = vset.pattern.permute.xlu0 0
      %1324 = vperm.xlu0 %1323, %v1203
      %v1325 = vpop.permute.xlu0 %1324
      %1327 = vset.pattern.permute.xlu0 0
      %1328 = vperm.xlu0 %1327, %v1205
      %v1329 = vpop.permute.xlu0 %1328
      %1331 = vset.pattern.permute.xlu0 0
      %1332 = vperm.xlu0 %1331, %v1207
      %v1333 = vpop.permute.xlu0 %1332
      %1335 = vset.pattern.permute.xlu0 0
      %1336 = vperm.xlu0 %1335, %v1209
      %v1337 = vpop.permute.xlu0 %1336
      %1339 = vset.pattern.permute.xlu0 0
      %1340 = vperm.xlu0 %1339, %v1211
      %v1341 = vpop.permute.xlu0 %1340
      %1343 = vset.pattern.permute.xlu0 8
      %1344 = vperm.xlu0 %1343, %v1020
      %v1345 = vpop.permute.xlu0 %1344
      %1347 = vset.pattern.permute.xlu0 8
      %1348 = vperm.xlu0 %1347, %v1021
      %v1349 = vpop.permute.xlu0 %1348
      %1351 = vset.pattern.permute.xlu0 8
      %1352 = vperm.xlu0 %1351, %v1022
      %v1353 = vpop.permute.xlu0 %1352
      %1355 = vset.pattern.permute.xlu0 8
      %1356 = vperm.xlu0 %1355, %v1023
      %v1357 = vpop.permute.xlu0 %1356
      %1359 = vset.pattern.permute.xlu0 8
      %1360 = vperm.xlu0 %1359, %v1024
      %v1361 = vpop.permute.xlu0 %1360
      %1363 = vset.pattern.permute.xlu0 8
      %1364 = vperm.xlu0 %1363, %v1025
      %v1365 = vpop.permute.xlu0 %1364
      %1367 = vset.pattern.permute.xlu0 8
      %1368 = vperm.xlu0 %1367, %v1026
      %v1369 = vpop.permute.xlu0 %1368
      %1371 = vset.pattern.permute.xlu0 8
      %1372 = vperm.xlu0 %1371, %v1027
      %v1373 = vpop.permute.xlu0 %1372
      %1375 = vset.pattern.permute.xlu0 8
      %1376 = vperm.xlu0 %1375, %v1028
      %v1377 = vpop.permute.xlu0 %1376
      %1379 = vset.pattern.permute.xlu0 8
      %1380 = vperm.xlu0 %1379, %v1029
      %v1381 = vpop.permute.xlu0 %1380
      %1383 = vset.pattern.permute.xlu0 8
      %1384 = vperm.xlu0 %1383, %v1030
      %v1385 = vpop.permute.xlu0 %1384
      %1387 = vset.pattern.permute.xlu0 8
      %1388 = vperm.xlu0 %1387, %v1031
      %v1389 = vpop.permute.xlu0 %1388
      %1391 = vset.pattern.permute.xlu0 8
      %1392 = vperm.xlu0 %1391, %v1032
      %v1393 = vpop.permute.xlu0 %1392
      %1395 = vset.pattern.permute.xlu0 8
      %1396 = vperm.xlu0 %1395, %v1033
      %v1397 = vpop.permute.xlu0 %1396
      %1399 = vset.pattern.permute.xlu0 8
      %1400 = vperm.xlu0 %1399, %v1034
      %v1401 = vpop.permute.xlu0 %1400
      %1403 = vset.pattern.permute.xlu0 8
      %1404 = vperm.xlu0 %1403, %v1035
      %v1405 = vpop.permute.xlu0 %1404
      %1407 = vset.pattern.permute.xlu0 8
      %1408 = vperm.xlu0 %1407, %v1036
      %v1409 = vpop.permute.xlu0 %1408
      %1411 = vset.pattern.permute.xlu0 8
      %1412 = vperm.xlu0 %1411, %v1037
      %v1413 = vpop.permute.xlu0 %1412
      %1415 = vset.pattern.permute.xlu0 8
      %1416 = vperm.xlu0 %1415, %v1038
      %v1417 = vpop.permute.xlu0 %1416
      %1419 = vset.pattern.permute.xlu0 8
      %1420 = vperm.xlu0 %1419, %v1039
      %v1421 = vpop.permute.xlu0 %1420
      %1423 = vset.pattern.permute.xlu0 8
      %1424 = vperm.xlu0 %1423, %v1040
      %v1425 = vpop.permute.xlu0 %1424
      %1427 = vset.pattern.permute.xlu0 8
      %1428 = vperm.xlu0 %1427, %v1041
      %v1429 = vpop.permute.xlu0 %1428
      %1431 = vset.pattern.permute.xlu0 8
      %1432 = vperm.xlu0 %1431, %v1042
      %v1433 = vpop.permute.xlu0 %1432
      %1435 = vset.pattern.permute.xlu0 8
      %1436 = vperm.xlu0 %1435, %v1043
      %v1437 = vpop.permute.xlu0 %1436
      %1439 = vset.pattern.permute.xlu0 8
      %1440 = vperm.xlu0 %1439, %v1044
      %v1441 = vpop.permute.xlu0 %1440
      %1443 = vset.pattern.permute.xlu0 8
      %1444 = vperm.xlu0 %1443, %v1045
      %v1445 = vpop.permute.xlu0 %1444
      %1447 = vset.pattern.permute.xlu0 8
      %1448 = vperm.xlu0 %1447, %v1046
      %v1449 = vpop.permute.xlu0 %1448
      %1451 = vset.pattern.permute.xlu0 8
      %1452 = vperm.xlu0 %1451, %v1047
      %v1453 = vpop.permute.xlu0 %1452
      %1455 = vset.pattern.permute.xlu0 8
      %1456 = vperm.xlu0 %1455, %v1048
      %v1457 = vpop.permute.xlu0 %1456
      %1459 = vset.pattern.permute.xlu0 8
      %1460 = vperm.xlu0 %1459, %v1049
      %v1461 = vpop.permute.xlu0 %1460
      %1463 = vset.pattern.permute.xlu0 8
      %1464 = vperm.xlu0 %1463, %v1050
      %v1465 = vpop.permute.xlu0 %1464
      %1467 = vset.pattern.permute.xlu0 8
      %1468 = vperm.xlu0 %1467, %v1051
      %v1469 = vpop.permute.xlu0 %1468
      %vm1471 = vcmask 1046528
      %v1472 = vrot.slane %v1020, 1
      %v1473 = vrot.slane %v1021, 1
      %v1474 = vsel %vm1471, %v1472, %v1473
      %v1475 = vrot.slane %v1022, 1
      %v1476 = vsel %vm1471, %v1473, %v1475
      %v1477 = vrot.slane %v1023, 1
      %v1478 = vsel %vm1471, %v1475, %v1477
      %v1479 = vrot.slane %v1024, 1
      %v1480 = vsel %vm1471, %v1477, %v1479
      %v1481 = vrot.slane %v1025, 1
      %v1482 = vsel %vm1471, %v1479, %v1481
      %v1483 = vrot.slane %v1026, 1
      %v1484 = vsel %vm1471, %v1481, %v1483
      %v1485 = vrot.slane %v1027, 1
      %v1486 = vsel %vm1471, %v1483, %v1485
      %v1487 = vrot.slane %v1028, 1
      %v1488 = vsel %vm1471, %v1485, %v1487
      %v1489 = vrot.slane %v1029, 1
      %v1490 = vsel %vm1471, %v1487, %v1489
      %v1491 = vrot.slane %v1030, 1
      %v1492 = vsel %vm1471, %v1489, %v1491
      %v1493 = vrot.slane %v1031, 1
      %v1494 = vsel %vm1471, %v1491, %v1493
      %v1495 = vrot.slane %v1032, 1
      %v1496 = vsel %vm1471, %v1493, %v1495
      %v1497 = vrot.slane %v1033, 1
      %v1498 = vsel %vm1471, %v1495, %v1497
      %v1499 = vrot.slane %v1034, 1
      %v1500 = vsel %vm1471, %v1497, %v1499
      %v1501 = vrot.slane %v1035, 1
      %v1502 = vsel %vm1471, %v1499, %v1501
      %v1503 = vrot.slane %v1036, 1
      %v1504 = vsel %vm1471, %v1501, %v1503
      %v1505 = vrot.slane %v1037, 1
      %v1506 = vsel %vm1471, %v1503, %v1505
      %v1507 = vrot.slane %v1038, 1
      %v1508 = vsel %vm1471, %v1505, %v1507
      %v1509 = vrot.slane %v1039, 1
      %v1510 = vsel %vm1471, %v1507, %v1509
      %v1511 = vrot.slane %v1040, 1
      %v1512 = vsel %vm1471, %v1509, %v1511
      %v1513 = vrot.slane %v1041, 1
      %v1514 = vsel %vm1471, %v1511, %v1513
      %v1515 = vrot.slane %v1042, 1
      %v1516 = vsel %vm1471, %v1513, %v1515
      %v1517 = vrot.slane %v1043, 1
      %v1518 = vsel %vm1471, %v1515, %v1517
      %v1519 = vrot.slane %v1044, 1
      %v1520 = vsel %vm1471, %v1517, %v1519
      %v1521 = vrot.slane %v1045, 1
      %v1522 = vsel %vm1471, %v1519, %v1521
      %v1523 = vrot.slane %v1046, 1
      %v1524 = vsel %vm1471, %v1521, %v1523
      %v1525 = vrot.slane %v1047, 1
      %v1526 = vsel %vm1471, %v1523, %v1525
      %v1527 = vrot.slane %v1048, 1
      %v1528 = vsel %vm1471, %v1525, %v1527
      %v1529 = vrot.slane %v1049, 1
      %v1530 = vsel %vm1471, %v1527, %v1529
      %v1531 = vrot.slane %v1050, 1
      %v1532 = vsel %vm1471, %v1529, %v1531
      %v1533 = vrot.slane %v1051, 1
      %v1534 = vsel %vm1471, %v1531, %v1533
      %v1536 = vsel %vm1471, %v1533, 0.0
      %1537 = vset.pattern.permute.xlu0 8
      %1538 = vperm.xlu0 %1537, %v1474
      %v1539 = vpop.permute.xlu0 %1538
      %1541 = vset.pattern.permute.xlu0 8
      %1542 = vperm.xlu0 %1541, %v1476
      %v1543 = vpop.permute.xlu0 %1542
      %1545 = vset.pattern.permute.xlu0 8
      %1546 = vperm.xlu0 %1545, %v1478
      %v1547 = vpop.permute.xlu0 %1546
      %1549 = vset.pattern.permute.xlu0 8
      %1550 = vperm.xlu0 %1549, %v1480
      %v1551 = vpop.permute.xlu0 %1550
      %1553 = vset.pattern.permute.xlu0 8
      %1554 = vperm.xlu0 %1553, %v1482
      %v1555 = vpop.permute.xlu0 %1554
      %1557 = vset.pattern.permute.xlu0 8
      %1558 = vperm.xlu0 %1557, %v1484
      %v1559 = vpop.permute.xlu0 %1558
      %1561 = vset.pattern.permute.xlu0 8
      %1562 = vperm.xlu0 %1561, %v1486
      %v1563 = vpop.permute.xlu0 %1562
      %1565 = vset.pattern.permute.xlu0 8
      %1566 = vperm.xlu0 %1565, %v1488
      %v1567 = vpop.permute.xlu0 %1566
      %1569 = vset.pattern.permute.xlu0 8
      %1570 = vperm.xlu0 %1569, %v1490
      %v1571 = vpop.permute.xlu0 %1570
      %1573 = vset.pattern.permute.xlu0 8
      %1574 = vperm.xlu0 %1573, %v1492
      %v1575 = vpop.permute.xlu0 %1574
      %1577 = vset.pattern.permute.xlu0 8
      %1578 = vperm.xlu0 %1577, %v1494
      %v1579 = vpop.permute.xlu0 %1578
      %1581 = vset.pattern.permute.xlu0 8
      %1582 = vperm.xlu0 %1581, %v1496
      %v1583 = vpop.permute.xlu0 %1582
      %1585 = vset.pattern.permute.xlu0 8
      %1586 = vperm.xlu0 %1585, %v1498
      %v1587 = vpop.permute.xlu0 %1586
      %1589 = vset.pattern.permute.xlu0 8
      %1590 = vperm.xlu0 %1589, %v1500
      %v1591 = vpop.permute.xlu0 %1590
      %1593 = vset.pattern.permute.xlu0 8
      %1594 = vperm.xlu0 %1593, %v1502
      %v1595 = vpop.permute.xlu0 %1594
      %1597 = vset.pattern.permute.xlu0 8
      %1598 = vperm.xlu0 %1597, %v1504
      %v1599 = vpop.permute.xlu0 %1598
      %1601 = vset.pattern.permute.xlu0 8
      %1602 = vperm.xlu0 %1601, %v1506
      %v1603 = vpop.permute.xlu0 %1602
      %1605 = vset.pattern.permute.xlu0 8
      %1606 = vperm.xlu0 %1605, %v1508
      %v1607 = vpop.permute.xlu0 %1606
      %1609 = vset.pattern.permute.xlu0 8
      %1610 = vperm.xlu0 %1609, %v1510
      %v1611 = vpop.permute.xlu0 %1610
      %1613 = vset.pattern.permute.xlu0 8
      %1614 = vperm.xlu0 %1613, %v1512
      %v1615 = vpop.permute.xlu0 %1614
      %1617 = vset.pattern.permute.xlu0 8
      %1618 = vperm.xlu0 %1617, %v1514
      %v1619 = vpop.permute.xlu0 %1618
      %1621 = vset.pattern.permute.xlu0 8
      %1622 = vperm.xlu0 %1621, %v1516
      %v1623 = vpop.permute.xlu0 %1622
      %1625 = vset.pattern.permute.xlu0 8
      %1626 = vperm.xlu0 %1625, %v1518
      %v1627 = vpop.permute.xlu0 %1626
      %1629 = vset.pattern.permute.xlu0 8
      %1630 = vperm.xlu0 %1629, %v1520
      %v1631 = vpop.permute.xlu0 %1630
      %1633 = vset.pattern.permute.xlu0 8
      %1634 = vperm.xlu0 %1633, %v1522
      %v1635 = vpop.permute.xlu0 %1634
      %1637 = vset.pattern.permute.xlu0 8
      %1638 = vperm.xlu0 %1637, %v1524
      %v1639 = vpop.permute.xlu0 %1638
      %1641 = vset.pattern.permute.xlu0 8
      %1642 = vperm.xlu0 %1641, %v1526
      %v1643 = vpop.permute.xlu0 %1642
      %1645 = vset.pattern.permute.xlu0 8
      %1646 = vperm.xlu0 %1645, %v1528
      %v1647 = vpop.permute.xlu0 %1646
      %1649 = vset.pattern.permute.xlu0 8
      %1650 = vperm.xlu0 %1649, %v1530
      %v1651 = vpop.permute.xlu0 %1650
      %1653 = vset.pattern.permute.xlu0 8
      %1654 = vperm.xlu0 %1653, %v1532
      %v1655 = vpop.permute.xlu0 %1654
      %1657 = vset.pattern.permute.xlu0 8
      %1658 = vperm.xlu0 %1657, %v1534
      %v1659 = vpop.permute.xlu0 %1658
      %1662 = vset.pattern.permute.xlu0 8
      %1663 = vperm.xlu0 %1662, %v1536
      %v1664 = vpop.permute.xlu0 %1663
      %vm1666 = vcmask 31744
      %v1667 = vsel %vm1666, %v1217, %v1345
      %v1668 = vsel %vm1666, %v1221, %v1349
      %v1669 = vsel %vm1666, %v1225, %v1353
      %v1670 = vsel %vm1666, %v1229, %v1357
      %v1671 = vsel %vm1666, %v1233, %v1361
      %v1672 = vsel %vm1666, %v1237, %v1365
      %v1673 = vsel %vm1666, %v1241, %v1369
      %v1674 = vsel %vm1666, %v1245, %v1373
      %v1675 = vsel %vm1666, %v1249, %v1377
      %v1676 = vsel %vm1666, %v1253, %v1381
      %v1677 = vsel %vm1666, %v1257, %v1385
      %v1678 = vsel %vm1666, %v1261, %v1389
      %v1679 = vsel %vm1666, %v1265, %v1393
      %v1680 = vsel %vm1666, %v1269, %v1397
      %v1681 = vsel %vm1666, %v1273, %v1401
      %v1682 = vsel %vm1666, %v1277, %v1405
      %v1683 = vsel %vm1666, %v1281, %v1409
      %v1684 = vsel %vm1666, %v1285, %v1413
      %v1685 = vsel %vm1666, %v1289, %v1417
      %v1686 = vsel %vm1666, %v1293, %v1421
      %v1687 = vsel %vm1666, %v1297, %v1425
      %v1688 = vsel %vm1666, %v1301, %v1429
      %v1689 = vsel %vm1666, %v1305, %v1433
      %v1690 = vsel %vm1666, %v1309, %v1437
      %v1691 = vsel %vm1666, %v1313, %v1441
      %v1692 = vsel %vm1666, %v1317, %v1445
      %v1693 = vsel %vm1666, %v1321, %v1449
      %v1694 = vsel %vm1666, %v1325, %v1453
      %v1695 = vsel %vm1666, %v1329, %v1457
      %v1696 = vsel %vm1666, %v1333, %v1461
      %v1697 = vsel %vm1666, %v1337, %v1465
      %v1698 = vsel %vm1666, %v1341, %v1469
      %v1699 = vsel %vm635, %v1667, %v1539
      %v1700 = vsel %vm635, %v1668, %v1543
      %v1701 = vsel %vm635, %v1669, %v1547
      %v1702 = vsel %vm635, %v1670, %v1551
      %v1703 = vsel %vm635, %v1671, %v1555
      %v1704 = vsel %vm635, %v1672, %v1559
      %v1705 = vsel %vm635, %v1673, %v1563
      %v1706 = vsel %vm635, %v1674, %v1567
      %v1707 = vsel %vm635, %v1675, %v1571
      %v1708 = vsel %vm635, %v1676, %v1575
      %v1709 = vsel %vm635, %v1677, %v1579
      %v1710 = vsel %vm635, %v1678, %v1583
      %v1711 = vsel %vm635, %v1679, %v1587
      %v1712 = vsel %vm635, %v1680, %v1591
      %v1713 = vsel %vm635, %v1681, %v1595
      %v1714 = vsel %vm635, %v1682, %v1599
      %v1715 = vsel %vm635, %v1683, %v1603
      %v1716 = vsel %vm635, %v1684, %v1607
      %v1717 = vsel %vm635, %v1685, %v1611
      %v1718 = vsel %vm635, %v1686, %v1615
      %v1719 = vsel %vm635, %v1687, %v1619
      %v1720 = vsel %vm635, %v1688, %v1623
      %v1721 = vsel %vm635, %v1689, %v1627
      %v1722 = vsel %vm635, %v1690, %v1631
      %v1723 = vsel %vm635, %v1691, %v1635
      %v1724 = vsel %vm635, %v1692, %v1639
      %v1725 = vsel %vm635, %v1693, %v1643
      %v1726 = vsel %vm635, %v1694, %v1647
      %v1727 = vsel %vm635, %v1695, %v1651
      %v1728 = vsel %vm635, %v1696, %v1655
      %v1729 = vsel %vm635, %v1697, %v1659
      %v1730 = vsel %vm635, %v1698, %v1664
      %1763 = vrot.lane.b32.xlu0 %v1699, 12
      %v1764 = vpop.permute.xlu0 %1763
      %1765 = vrot.lane.b32.xlu0 %v1700, 12
      %v1766 = vpop.permute.xlu0 %1765
      %1767 = vrot.lane.b32.xlu0 %v1701, 12
      %v1768 = vpop.permute.xlu0 %1767
      %1769 = vrot.lane.b32.xlu0 %v1702, 12
      %v1770 = vpop.permute.xlu0 %1769
      %1771 = vrot.lane.b32.xlu0 %v1703, 12
      %v1772 = vpop.permute.xlu0 %1771
      %1773 = vrot.lane.b32.xlu0 %v1704, 12
      %v1774 = vpop.permute.xlu0 %1773
      %1775 = vrot.lane.b32.xlu0 %v1705, 12
      %v1776 = vpop.permute.xlu0 %1775
      %1777 = vrot.lane.b32.xlu0 %v1706, 12
      %v1778 = vpop.permute.xlu0 %1777
      %1779 = vrot.lane.b32.xlu0 %v1707, 12
      %v1780 = vpop.permute.xlu0 %1779
      %1781 = vrot.lane.b32.xlu0 %v1708, 12
      %v1782 = vpop.permute.xlu0 %1781
      %1783 = vrot.lane.b32.xlu0 %v1709, 12
      %v1784 = vpop.permute.xlu0 %1783
      %1785 = vrot.lane.b32.xlu0 %v1710, 12
      %v1786 = vpop.permute.xlu0 %1785
      %1787 = vrot.lane.b32.xlu0 %v1711, 12
      %v1788 = vpop.permute.xlu0 %1787
      %1789 = vrot.lane.b32.xlu0 %v1712, 12
      %v1790 = vpop.permute.xlu0 %1789
      %1791 = vrot.lane.b32.xlu0 %v1713, 12
      %v1792 = vpop.permute.xlu0 %1791
      %1793 = vrot.lane.b32.xlu0 %v1714, 12
      %v1794 = vpop.permute.xlu0 %1793
      %1795 = vrot.lane.b32.xlu0 %v1715, 12
      %v1796 = vpop.permute.xlu0 %1795
      %1797 = vrot.lane.b32.xlu0 %v1716, 12
      %v1798 = vpop.permute.xlu0 %1797
      %1799 = vrot.lane.b32.xlu0 %v1717, 12
      %v1800 = vpop.permute.xlu0 %1799
      %1801 = vrot.lane.b32.xlu0 %v1718, 12
      %v1802 = vpop.permute.xlu0 %1801
      %1803 = vrot.lane.b32.xlu0 %v1719, 12
      %v1804 = vpop.permute.xlu0 %1803
      %1805 = vrot.lane.b32.xlu0 %v1720, 12
      %v1806 = vpop.permute.xlu0 %1805
      %1807 = vrot.lane.b32.xlu0 %v1721, 12
      %v1808 = vpop.permute.xlu0 %1807
      %1809 = vrot.lane.b32.xlu0 %v1722, 12
      %v1810 = vpop.permute.xlu0 %1809
      %1811 = vrot.lane.b32.xlu0 %v1723, 12
      %v1812 = vpop.permute.xlu0 %1811
      %1813 = vrot.lane.b32.xlu0 %v1724, 12
      %v1814 = vpop.permute.xlu0 %1813
      %1815 = vrot.lane.b32.xlu0 %v1725, 12
      %v1816 = vpop.permute.xlu0 %1815
      %1817 = vrot.lane.b32.xlu0 %v1726, 12
      %v1818 = vpop.permute.xlu0 %1817
      %1819 = vrot.lane.b32.xlu0 %v1727, 12
      %v1820 = vpop.permute.xlu0 %1819
      %1821 = vrot.lane.b32.xlu0 %v1728, 12
      %v1822 = vpop.permute.xlu0 %1821
      %1823 = vrot.lane.b32.xlu0 %v1729, 12
      %v1824 = vpop.permute.xlu0 %1823
      %1825 = vrot.lane.b32.xlu0 %v1730, 12
      %v1826 = vpop.permute.xlu0 %1825
      %1860 = vrot.lane.b32.xlu0 %v1701, 24
      %v1861 = vpop.permute.xlu0 %1860
      %1862 = vrot.lane.b32.xlu0 %v1702, 24
      %v1863 = vpop.permute.xlu0 %1862
      %1864 = vrot.lane.b32.xlu0 %v1703, 24
      %v1865 = vpop.permute.xlu0 %1864
      %1866 = vrot.lane.b32.xlu0 %v1704, 24
      %v1867 = vpop.permute.xlu0 %1866
      %1868 = vrot.lane.b32.xlu0 %v1705, 24
      %v1869 = vpop.permute.xlu0 %1868
      %1870 = vrot.lane.b32.xlu0 %v1706, 24
      %v1871 = vpop.permute.xlu0 %1870
      %1872 = vrot.lane.b32.xlu0 %v1707, 24
      %v1873 = vpop.permute.xlu0 %1872
      %1874 = vrot.lane.b32.xlu0 %v1708, 24
      %v1875 = vpop.permute.xlu0 %1874
      %1876 = vrot.lane.b32.xlu0 %v1709, 24
      %v1877 = vpop.permute.xlu0 %1876
      %1878 = vrot.lane.b32.xlu0 %v1710, 24
      %v1879 = vpop.permute.xlu0 %1878
      %1880 = vrot.lane.b32.xlu0 %v1711, 24
      %v1881 = vpop.permute.xlu0 %1880
      %1882 = vrot.lane.b32.xlu0 %v1712, 24
      %v1883 = vpop.permute.xlu0 %1882
      %1884 = vrot.lane.b32.xlu0 %v1713, 24
      %v1885 = vpop.permute.xlu0 %1884
      %1886 = vrot.lane.b32.xlu0 %v1714, 24
      %v1887 = vpop.permute.xlu0 %1886
      %1888 = vrot.lane.b32.xlu0 %v1715, 24
      %v1889 = vpop.permute.xlu0 %1888
      %1890 = vrot.lane.b32.xlu0 %v1716, 24
      %v1891 = vpop.permute.xlu0 %1890
      %1892 = vrot.lane.b32.xlu0 %v1717, 24
      %v1893 = vpop.permute.xlu0 %1892
      %1894 = vrot.lane.b32.xlu0 %v1718, 24
      %v1895 = vpop.permute.xlu0 %1894
      %1896 = vrot.lane.b32.xlu0 %v1719, 24
      %v1897 = vpop.permute.xlu0 %1896
      %1898 = vrot.lane.b32.xlu0 %v1720, 24
      %v1899 = vpop.permute.xlu0 %1898
      %1900 = vrot.lane.b32.xlu0 %v1721, 24
      %v1901 = vpop.permute.xlu0 %1900
      %1902 = vrot.lane.b32.xlu0 %v1722, 24
      %v1903 = vpop.permute.xlu0 %1902
      %1904 = vrot.lane.b32.xlu0 %v1723, 24
      %v1905 = vpop.permute.xlu0 %1904
      %1906 = vrot.lane.b32.xlu0 %v1724, 24
      %v1907 = vpop.permute.xlu0 %1906
      %1908 = vrot.lane.b32.xlu0 %v1725, 24
      %v1909 = vpop.permute.xlu0 %1908
      %1910 = vrot.lane.b32.xlu0 %v1726, 24
      %v1911 = vpop.permute.xlu0 %1910
      %1912 = vrot.lane.b32.xlu0 %v1727, 24
      %v1913 = vpop.permute.xlu0 %1912
      %1914 = vrot.lane.b32.xlu0 %v1728, 24
      %v1915 = vpop.permute.xlu0 %1914
      %1916 = vrot.lane.b32.xlu0 %v1729, 24
      %v1917 = vpop.permute.xlu0 %1916
      %1918 = vrot.lane.b32.xlu0 %v1730, 24
      %v1919 = vpop.permute.xlu0 %1918
      %1920 = vrot.lane.b32.xlu0 0.0, 24
      %v1921 = vpop.permute.xlu0 %1920
      %vm1953 = vcmask 97280
      %v1954 = vsel %vm1953, 0.0, %v1764
      %v1955 = vsel %vm1953, 0.0, %v1766
      %v1956 = vsel %vm1953, %v1699, %v1768
      %v1957 = vsel %vm1953, %v1700, %v1770
      %v1958 = vsel %vm1953, %v1701, %v1772
      %v1959 = vsel %vm1953, %v1702, %v1774
      %v1960 = vsel %vm1953, %v1703, %v1776
      %v1961 = vsel %vm1953, %v1704, %v1778
      %v1962 = vsel %vm1953, %v1705, %v1780
      %v1963 = vsel %vm1953, %v1706, %v1782
      %v1964 = vsel %vm1953, %v1707, %v1784
      %v1965 = vsel %vm1953, %v1708, %v1786
      %v1966 = vsel %vm1953, %v1709, %v1788
      %v1967 = vsel %vm1953, %v1710, %v1790
      %v1968 = vsel %vm1953, %v1711, %v1792
      %v1969 = vsel %vm1953, %v1712, %v1794
      %v1970 = vsel %vm1953, %v1713, %v1796
      %v1971 = vsel %vm1953, %v1714, %v1798
      %v1972 = vsel %vm1953, %v1715, %v1800
      %v1973 = vsel %vm1953, %v1716, %v1802
      %v1974 = vsel %vm1953, %v1717, %v1804
      %v1975 = vsel %vm1953, %v1718, %v1806
      %v1976 = vsel %vm1953, %v1719, %v1808
      %v1977 = vsel %vm1953, %v1720, %v1810
      %v1978 = vsel %vm1953, %v1721, %v1812
      %v1979 = vsel %vm1953, %v1722, %v1814
      %v1980 = vsel %vm1953, %v1723, %v1816
      %v1981 = vsel %vm1953, %v1724, %v1818
      %v1982 = vsel %vm1953, %v1725, %v1820
      %v1983 = vsel %vm1953, %v1726, %v1822
      %v1984 = vsel %vm1953, %v1727, %v1824
      %v1985 = vsel %vm1953, %v1728, %v1826
      %vm1986 = vcmask 195584
      %v1987 = vsel %vm1986, %v1954, %v1861
      %v1988 = vsel %vm1986, %v1955, %v1863
      %v1989 = vsel %vm1986, %v1956, %v1865
      %v1990 = vsel %vm1986, %v1957, %v1867
      %v1991 = vsel %vm1986, %v1958, %v1869
      %v1992 = vsel %vm1986, %v1959, %v1871
      %v1993 = vsel %vm1986, %v1960, %v1873
      %v1994 = vsel %vm1986, %v1961, %v1875
      %v1995 = vsel %vm1986, %v1962, %v1877
      %v1996 = vsel %vm1986, %v1963, %v1879
      %v1997 = vsel %vm1986, %v1964, %v1881
      %v1998 = vsel %vm1986, %v1965, %v1883
      %v1999 = vsel %vm1986, %v1966, %v1885
      %v2000 = vsel %vm1986, %v1967, %v1887
      %v2001 = vsel %vm1986, %v1968, %v1889
      %v2002 = vsel %vm1986, %v1969, %v1891
      %v2003 = vsel %vm1986, %v1970, %v1893
      %v2004 = vsel %vm1986, %v1971, %v1895
      %v2005 = vsel %vm1986, %v1972, %v1897
      %v2006 = vsel %vm1986, %v1973, %v1899
      %v2007 = vsel %vm1986, %v1974, %v1901
      %v2008 = vsel %vm1986, %v1975, %v1903
      %v2009 = vsel %vm1986, %v1976, %v1905
      %v2010 = vsel %vm1986, %v1977, %v1907
      %v2011 = vsel %vm1986, %v1978, %v1909
      %v2012 = vsel %vm1986, %v1979, %v1911
      %v2013 = vsel %vm1986, %v1980, %v1913
      %v2014 = vsel %vm1986, %v1981, %v1915
      %v2015 = vsel %vm1986, %v1982, %v1917
      %v2016 = vsel %vm1986, %v1983, %v1919
      %v2017 = vsel %vm1986, %v1984, %v1921
      %v2018 = vsel %vm1986, %v1985, %v1921
      %vm2019 = vcmask 293888
      %v2020 = vsel %vm2019, %v1987, 1.0
      %v2021 = vsel %vm2019, %v1988, 1.0
      %v2022 = vsel %vm2019, %v1989, 1.0
      %v2023 = vsel %vm2019, %v1990, 1.0
      %v2024 = vsel %vm2019, %v1991, 1.0
      %v2025 = vsel %vm2019, %v1992, 1.0
      %v2026 = vsel %vm2019, %v1993, 1.0
      %v2027 = vsel %vm2019, %v1994, 1.0
      %v2028 = vsel %vm2019, %v1995, 1.0
      %v2029 = vsel %vm2019, %v1996, 1.0
      %v2030 = vsel %vm2019, %v1997, 1.0
      %v2031 = vsel %vm2019, %v1998, 1.0
      %v2032 = vsel %vm2019, %v1999, 1.0
      %v2033 = vsel %vm2019, %v2000, 1.0
      %v2034 = vsel %vm2019, %v2001, 1.0
      %v2035 = vsel %vm2019, %v2002, 1.0
      %v2036 = vsel %vm2019, %v2003, 1.0
      %v2037 = vsel %vm2019, %v2004, 1.0
      %v2038 = vsel %vm2019, %v2005, 1.0
      %v2039 = vsel %vm2019, %v2006, 1.0
      %v2040 = vsel %vm2019, %v2007, 1.0
      %v2041 = vsel %vm2019, %v2008, 1.0
      %v2042 = vsel %vm2019, %v2009, 1.0
      %v2043 = vsel %vm2019, %v2010, 1.0
      %v2044 = vsel %vm2019, %v2011, 1.0
      %v2045 = vsel %vm2019, %v2012, 1.0
      %v2046 = vsel %vm2019, %v2013, 1.0
      %v2047 = vsel %vm2019, %v2014, 1.0
      %v2048 = vsel %vm2019, %v2015, 1.0
      %v2049 = vsel %vm2019, %v2016, 1.0
      %v2050 = vsel %vm2019, %v2017, 1.0
      %v2051 = vsel %vm2019, %v2018, 1.0
      %v2052 = vmul.f32 %v201, %v2020
      %v2053 = vmul.f32 %v202, %v2021
      %v2054 = vmul.f32 %v203, %v2022
      %v2055 = vmul.f32 %v204, %v2023
      %v2056 = vmul.f32 %v205, %v2024
      %v2057 = vmul.f32 %v206, %v2025
      %v2058 = vmul.f32 %v207, %v2026
      %v2059 = vmul.f32 %v208, %v2027
      %v2060 = vmul.f32 %v209, %v2028
      %v2061 = vmul.f32 %v210, %v2029
      %v2062 = vmul.f32 %v211, %v2030
      %v2063 = vmul.f32 %v212, %v2031
      %v2064 = vmul.f32 %v213, %v2032
      %v2065 = vmul.f32 %v214, %v2033
      %v2066 = vmul.f32 %v215, %v2034
      %v2067 = vmul.f32 %v216, %v2035
      %v2068 = vmul.f32 %v217, %v2036
      %v2069 = vmul.f32 %v218, %v2037
      %v2070 = vmul.f32 %v219, %v2038
      %v2071 = vmul.f32 %v220, %v2039
      %v2072 = vmul.f32 %v221, %v2040
      %v2073 = vmul.f32 %v222, %v2041
      %v2074 = vmul.f32 %v223, %v2042
      %v2075 = vmul.f32 %v224, %v2043
      %v2076 = vmul.f32 %v225, %v2044
      %v2077 = vmul.f32 %v226, %v2045
      %v2078 = vmul.f32 %v227, %v2046
      %v2079 = vmul.f32 %v228, %v2047
      %v2080 = vmul.f32 %v229, %v2048
      %v2081 = vmul.f32 %v230, %v2049
      %v2082 = vmul.f32 %v231, %v2050
      %v2083 = vmul.f32 %v232, %v2051
      %v2084 = vld [vmem:[%s2] sm:$0xff]
      %v2085 = vld [vmem:[%s2 + $0x8] sm:$0xff]
      %v2086 = vld [vmem:[%s2 + $0x10] sm:$0xff]
      %v2087 = vld [vmem:[%s2 + $0x18] sm:$0xff]
      %v2088 = vld [vmem:[%s2 + $0x20] sm:$0x3f]
      %v2090 = vsel %vm238, %v2052, 0
      %v2093 = vsel %vm238, %v2053, 0
      %v2096 = vsel %vm238, %v2054, 0
      %v2099 = vsel %vm238, %v2055, 0
      %v2102 = vsel %vm238, %v2056, 0
      %v2105 = vsel %vm238, %v2057, 0
      %v2108 = vsel %vm238, %v2058, 0
      %v2111 = vsel %vm238, %v2059, 0
      %v2114 = vsel %vm238, %v2060, 0
      %v2117 = vsel %vm238, %v2061, 0
      %v2120 = vsel %vm238, %v2062, 0
      %v2123 = vsel %vm238, %v2063, 0
      %v2126 = vsel %vm238, %v2064, 0
      %v2129 = vsel %vm238, %v2065, 0
      %v2132 = vsel %vm238, %v2066, 0
      %v2135 = vsel %vm238, %v2067, 0
      %v2138 = vsel %vm238, %v2068, 0
      %v2141 = vsel %vm238, %v2069, 0
      %v2144 = vsel %vm238, %v2070, 0
      %v2147 = vsel %vm238, %v2071, 0
      %v2150 = vsel %vm238, %v2072, 0
      %v2153 = vsel %vm238, %v2073, 0
      %v2156 = vsel %vm238, %v2074, 0
      %v2159 = vsel %vm238, %v2075, 0
      %v2162 = vsel %vm238, %v2076, 0
      %v2165 = vsel %vm238, %v2077, 0
      %v2168 = vsel %vm238, %v2078, 0
      %v2171 = vsel %vm238, %v2079, 0
      %v2174 = vsel %vm238, %v2080, 0
      %v2177 = vsel %vm238, %v2081, 0
      %v2180 = vsel %vm238, %v2082, 0
      %v2183 = vsel %vm238, %v2083, 0
      %v2186 = vsel %vm335, %v2088, 0
      %2188 = vmatprep.subr.mxu0 0.0
      %2189 = vmatpush1.msra.mxu0 %v2084
      %2190 = vmatprep.subr.mxu0 0.0
      %2191 = vmatpush1.msra.mxu0 %v2085
      %2192 = vmatprep.subr.mxu0 0.0
      %2193 = vmatpush1.msra.mxu0 %v2086
      %2194 = vmatprep.subr.mxu0 0.0
      %2195 = vmatpush1.msra.mxu0 %v2087
      %2196 = vmatprep.subr.mxu0 0.0
      %2197 = vmatpush1.msra.mxu0 %v2186
      %2198 = vmatprep.subr.mxu0 0.0
      %2199 = vmatpush1.msra.mxu0 0.0
      %2200 = vmatprep.subr.mxu0 0.0
      %2201 = vmatpush1.msra.mxu0 0.0
      %2202 = vmatprep.subr.mxu0 0.0
      %2203 = vmatpush1.msra.mxu0 0.0
      %2204 = vmatprep.subr.mxu0 0.0
      %2205 = vmatpush1.msra.mxu0 0.0
      %2206 = vmatprep.subr.mxu0 0.0
      %2207 = vmatpush1.msra.mxu0 0.0
      %2208 = vmatprep.subr.mxu0 0.0
      %2209 = vmatpush1.msra.mxu0 0.0
      %2210 = vmatprep.subr.mxu0 0.0
      %2211 = vmatpush1.msra.mxu0 0.0
      %2212 = vmatprep.subr.mxu0 0.0
      %2213 = vmatpush1.msra.mxu0 0.0
      %2214 = vmatprep.subr.mxu0 0.0
      %2215 = vmatpush1.msra.mxu0 0.0
      %2216 = vmatprep.subr.mxu0 0.0
      %2217 = vmatpush1.msra.mxu0 0.0
      %2218 = vmatprep.subr.mxu0 0.0
      %2219 = vmatpush1.msra.mxu0 0.0
      %2220 = vmatprep.subr.mxu0 0.0
      %2221 = vmatpush1.msra.mxu0 0.0
      %2222 = vmatprep.subr.mxu0 0.0
      %2223 = vmatpush1.msra.mxu0 0.0
      %2224 = vmatprep.subr.mxu0 0.0
      %2225 = vmatpush1.msra.mxu0 0.0
      %2226 = vmatprep.subr.mxu0 0.0
      %2227 = vmatpush1.msra.mxu0 0.0
      %2228 = vmatprep.subr.mxu0 0.0
      %2229 = vmatpush1.msra.mxu0 0.0
      %2230 = vmatprep.subr.mxu0 0.0
      %2231 = vmatpush1.msra.mxu0 0.0
      %2232 = vmatprep.subr.mxu0 0.0
      %2233 = vmatpush1.msra.mxu0 0.0
      %2234 = vmatprep.subr.mxu0 0.0
      %2235 = vmatpush1.msra.mxu0 0.0
      %2236 = vmatprep.subr.mxu0 0.0
      %2237 = vmatpush1.msra.mxu0 0.0
      %2238 = vmatprep.subr.mxu0 0.0
      %2239 = vmatpush1.msra.mxu0 0.0
      %2240 = vmatprep.subr.mxu0 0.0
      %2241 = vmatpush1.msra.mxu0 0.0
      %2242 = vmatprep.subr.mxu0 0.0
      %2243 = vmatpush1.msra.mxu0 0.0
      %2244 = vmatprep.subr.mxu0 0.0
      %2245 = vmatpush1.msra.mxu0 0.0
      %2246 = vmatprep.subr.mxu0 0.0
      %2247 = vmatpush1.msra.mxu0 0.0
      %2248 = vmatprep.subr.mxu0 0.0
      %2249 = vmatpush1.msra.mxu0 0.0
      %2250 = vmatprep.subr.mxu0 0.0
      %2251 = vmatpush1.msra.mxu0 0.0
      %2252 = vmatprep.mubr.f32.mxu0 0.0
      %2253 = vmatmul.mubr.f32.gmra.mrb[0].mxu0 %v2090
      %v2254 = vpop.f32.mrb[0].mxu0
      %v2255 = vadd.f32 0.0, %v2254
      %v2256 = vpop.f32.mrb[0].mxu0
      %2257 = vmatprep.mubr.f32.mxu0 0.0
      %2258 = vmatmul.mubr.f32.gmra.mrb[0].mxu0 %v2093
      %v2259 = vpop.f32.mrb[0].mxu0
      %v2260 = vadd.f32 0.0, %v2259
      %v2261 = vpop.f32.mrb[0].mxu0
      %2262 = vmatprep.mubr.f32.mxu0 0.0
      %2263 = vmatmul.mubr.f32.gmra.mrb[0].mxu0 %v2096
      %v2264 = vpop.f32.mrb[0].mxu0
      %v2265 = vadd.f32 0.0, %v2264
      %v2266 = vpop.f32.mrb[0].mxu0
      %2267 = vmatprep.mubr.f32.mxu0 0.0
      %2268 = vmatmul.mubr.f32.gmra.mrb[0].mxu0 %v2099
      %v2269 = vpop.f32.mrb[0].mxu0
      %v2270 = vadd.f32 0.0, %v2269
      %v2271 = vpop.f32.mrb[0].mxu0
      %2272 = vmatprep.mubr.f32.mxu0 0.0
      %2273 = vmatmul.mubr.f32.gmra.mrb[0].mxu0 %v2102
      %v2274 = vpop.f32.mrb[0].mxu0
      %v2275 = vadd.f32 0.0, %v2274
      %v2276 = vpop.f32.mrb[0].mxu0
      %2277 = vmatprep.mubr.f32.mxu0 0.0
      %2278 = vmatmul.mubr.f32.gmra.mrb[0].mxu0 %v2105
      %v2279 = vpop.f32.mrb[0].mxu0
      %v2280 = vadd.f32 0.0, %v2279
      %v2281 = vpop.f32.mrb[0].mxu0
      %2282 = vmatprep.mubr.f32.mxu0 0.0
      %2283 = vmatmul.mubr.f32.gmra.mrb[0].mxu0 %v2108
      %v2284 = vpop.f32.mrb[0].mxu0
      %v2285 = vadd.f32 0.0, %v2284
      %v2286 = vpop.f32.mrb[0].mxu0
      %2287 = vmatprep.mubr.f32.mxu0 0.0
      %2288 = vmatmul.mubr.f32.gmra.mrb[0].mxu0 %v2111
      %v2289 = vpop.f32.mrb[0].mxu0
      %v2290 = vadd.f32 0.0, %v2289
      %v2291 = vpop.f32.mrb[0].mxu0
      %2292 = vmatprep.mubr.f32.mxu0 0.0
      %2293 = vmatmul.mubr.f32.gmra.mrb[0].mxu0 %v2114
      %v2294 = vpop.f32.mrb[0].mxu0
      %v2295 = vadd.f32 0.0, %v2294
      %v2296 = vpop.f32.mrb[0].mxu0
      %2297 = vmatprep.mubr.f32.mxu0 0.0
      %2298 = vmatmul.mubr.f32.gmra.mrb[0].mxu0 %v2117
      %v2299 = vpop.f32.mrb[0].mxu0
      %v2300 = vadd.f32 0.0, %v2299
      %v2301 = vpop.f32.mrb[0].mxu0
      %2302 = vmatprep.mubr.f32.mxu0 0.0
      %2303 = vmatmul.mubr.f32.gmra.mrb[0].mxu0 %v2120
      %v2304 = vpop.f32.mrb[0].mxu0
      %v2305 = vadd.f32 0.0, %v2304
      %v2306 = vpop.f32.mrb[0].mxu0
      %2307 = vmatprep.mubr.f32.mxu0 0.0
      %2308 = vmatmul.mubr.f32.gmra.mrb[0].mxu0 %v2123
      %v2309 = vpop.f32.mrb[0].mxu0
      %v2310 = vadd.f32 0.0, %v2309
      %v2311 = vpop.f32.mrb[0].mxu0
      %2312 = vmatprep.mubr.f32.mxu0 0.0
      %2313 = vmatmul.mubr.f32.gmra.mrb[0].mxu0 %v2126
      %v2314 = vpop.f32.mrb[0].mxu0
      %v2315 = vadd.f32 0.0, %v2314
      %v2316 = vpop.f32.mrb[0].mxu0
      %2317 = vmatprep.mubr.f32.mxu0 0.0
      %2318 = vmatmul.mubr.f32.gmra.mrb[0].mxu0 %v2129
      %v2319 = vpop.f32.mrb[0].mxu0
      %v2320 = vadd.f32 0.0, %v2319
      %v2321 = vpop.f32.mrb[0].mxu0
      %2322 = vmatprep.mubr.f32.mxu0 0.0
      %2323 = vmatmul.mubr.f32.gmra.mrb[0].mxu0 %v2132
      %v2324 = vpop.f32.mrb[0].mxu0
      %v2325 = vadd.f32 0.0, %v2324
      %v2326 = vpop.f32.mrb[0].mxu0
      %2327 = vmatprep.mubr.f32.mxu0 0.0
      %2328 = vmatmul.mubr.f32.gmra.mrb[0].mxu0 %v2135
      %v2329 = vpop.f32.mrb[0].mxu0
      %v2330 = vadd.f32 0.0, %v2329
      %v2331 = vpop.f32.mrb[0].mxu0
      %2332 = vmatprep.mubr.f32.mxu0 0.0
      %2333 = vmatmul.mubr.f32.gmra.mrb[0].mxu0 %v2138
      %v2334 = vpop.f32.mrb[0].mxu0
      %v2335 = vadd.f32 0.0, %v2334
      %v2336 = vpop.f32.mrb[0].mxu0
      %2337 = vmatprep.mubr.f32.mxu0 0.0
      %2338 = vmatmul.mubr.f32.gmra.mrb[0].mxu0 %v2141
      %v2339 = vpop.f32.mrb[0].mxu0
      %v2340 = vadd.f32 0.0, %v2339
      %v2341 = vpop.f32.mrb[0].mxu0
      %2342 = vmatprep.mubr.f32.mxu0 0.0
      %2343 = vmatmul.mubr.f32.gmra.mrb[0].mxu0 %v2144
      %v2344 = vpop.f32.mrb[0].mxu0
      %v2345 = vadd.f32 0.0, %v2344
      %v2346 = vpop.f32.mrb[0].mxu0
      %2347 = vmatprep.mubr.f32.mxu0 0.0
      %2348 = vmatmul.mubr.f32.gmra.mrb[0].mxu0 %v2147
      %v2349 = vpop.f32.mrb[0].mxu0
      %v2350 = vadd.f32 0.0, %v2349
      %v2351 = vpop.f32.mrb[0].mxu0
      %2352 = vmatprep.mubr.f32.mxu0 0.0
      %2353 = vmatmul.mubr.f32.gmra.mrb[0].mxu0 %v2150
      %v2354 = vpop.f32.mrb[0].mxu0
      %v2355 = vadd.f32 0.0, %v2354
      %v2356 = vpop.f32.mrb[0].mxu0
      %2357 = vmatprep.mubr.f32.mxu0 0.0
      %2358 = vmatmul.mubr.f32.gmra.mrb[0].mxu0 %v2153
      %v2359 = vpop.f32.mrb[0].mxu0
      %v2360 = vadd.f32 0.0, %v2359
      %v2361 = vpop.f32.mrb[0].mxu0
      %2362 = vmatprep.mubr.f32.mxu0 0.0
      %2363 = vmatmul.mubr.f32.gmra.mrb[0].mxu0 %v2156
      %v2364 = vpop.f32.mrb[0].mxu0
      %v2365 = vadd.f32 0.0, %v2364
      %v2366 = vpop.f32.mrb[0].mxu0
      %2367 = vmatprep.mubr.f32.mxu0 0.0
      %2368 = vmatmul.mubr.f32.gmra.mrb[0].mxu0 %v2159
      %v2369 = vpop.f32.mrb[0].mxu0
      %v2370 = vadd.f32 0.0, %v2369
      %v2371 = vpop.f32.mrb[0].mxu0
      %2372 = vmatprep.mubr.f32.mxu0 0.0
      %2373 = vmatmul.mubr.f32.gmra.mrb[0].mxu0 %v2162
      %v2374 = vpop.f32.mrb[0].mxu0
      %v2375 = vadd.f32 0.0, %v2374
      %v2376 = vpop.f32.mrb[0].mxu0
      %2377 = vmatprep.mubr.f32.mxu0 0.0
      %2378 = vmatmul.mubr.f32.gmra.mrb[0].mxu0 %v2165
      %v2379 = vpop.f32.mrb[0].mxu0
      %v2380 = vadd.f32 0.0, %v2379
      %v2381 = vpop.f32.mrb[0].mxu0
      %2382 = vmatprep.mubr.f32.mxu0 0.0
      %2383 = vmatmul.mubr.f32.gmra.mrb[0].mxu0 %v2168
      %v2384 = vpop.f32.mrb[0].mxu0
      %v2385 = vadd.f32 0.0, %v2384
      %v2386 = vpop.f32.mrb[0].mxu0
      %2387 = vmatprep.mubr.f32.mxu0 0.0
      %2388 = vmatmul.mubr.f32.gmra.mrb[0].mxu0 %v2171
      %v2389 = vpop.f32.mrb[0].mxu0
      %v2390 = vadd.f32 0.0, %v2389
      %v2391 = vpop.f32.mrb[0].mxu0
      %2392 = vmatprep.mubr.f32.mxu0 0.0
      %2393 = vmatmul.mubr.f32.gmra.mrb[0].mxu0 %v2174
      %v2394 = vpop.f32.mrb[0].mxu0
      %v2395 = vadd.f32 0.0, %v2394
      %v2396 = vpop.f32.mrb[0].mxu0
      %2397 = vmatprep.mubr.f32.mxu0 0.0
      %2398 = vmatmul.mubr.f32.gmra.mrb[0].mxu0 %v2177
      %v2399 = vpop.f32.mrb[0].mxu0
      %v2400 = vadd.f32 0.0, %v2399
      %v2401 = vpop.f32.mrb[0].mxu0
      %2402 = vmatprep.mubr.f32.mxu0 0.0
      %2403 = vmatmul.mubr.f32.gmra.mrb[0].mxu0 %v2180
      %v2404 = vpop.f32.mrb[0].mxu0
      %v2405 = vadd.f32 0.0, %v2404
      %v2406 = vpop.f32.mrb[0].mxu0
      %2407 = vmatprep.mubr.f32.mxu0 0.0
      %2408 = vmatmul.mubr.f32.gmra.mrb[0].mxu0 %v2183
      %v2409 = vpop.f32.mrb[0].mxu0
      %v2410 = vadd.f32 0.0, %v2409
      %v2411 = vpop.f32.mrb[0].mxu0
      %2412 = vdwg.mxu0
      %v2413 = vmax.f32 %v2255, 0.0
      %v2414 = vmax.f32 %v2260, 0.0
      %v2415 = vmax.f32 %v2265, 0.0
      %v2416 = vmax.f32 %v2270, 0.0
      %v2417 = vmax.f32 %v2275, 0.0
      %v2418 = vmax.f32 %v2280, 0.0
      %v2419 = vmax.f32 %v2285, 0.0
      %v2420 = vmax.f32 %v2290, 0.0
      %v2421 = vmax.f32 %v2295, 0.0
      %v2422 = vmax.f32 %v2300, 0.0
      %v2423 = vmax.f32 %v2305, 0.0
      %v2424 = vmax.f32 %v2310, 0.0
      %v2425 = vmax.f32 %v2315, 0.0
      %v2426 = vmax.f32 %v2320, 0.0
      %v2427 = vmax.f32 %v2325, 0.0
      %v2428 = vmax.f32 %v2330, 0.0
      %v2429 = vmax.f32 %v2335, 0.0
      %v2430 = vmax.f32 %v2340, 0.0
      %v2431 = vmax.f32 %v2345, 0.0
      %v2432 = vmax.f32 %v2350, 0.0
      %v2433 = vmax.f32 %v2355, 0.0
      %v2434 = vmax.f32 %v2360, 0.0
      %v2435 = vmax.f32 %v2365, 0.0
      %v2436 = vmax.f32 %v2370, 0.0
      %v2437 = vmax.f32 %v2375, 0.0
      %v2438 = vmax.f32 %v2380, 0.0
      %v2439 = vmax.f32 %v2385, 0.0
      %v2440 = vmax.f32 %v2390, 0.0
      %v2441 = vmax.f32 %v2395, 0.0
      %v2442 = vmax.f32 %v2400, 0.0
      %v2443 = vmax.f32 %v2405, 0.0
      %v2444 = vmax.f32 %v2410, 0.0
      %2445 = vst.msk [vmem:[%s199] sm:$0xff] %vm1666, %v2413
      %2446 = vst.msk [vmem:[%s199 + $0x8] sm:$0xff] %vm1666, %v2414
      %2447 = vst.msk [vmem:[%s199 + $0x10] sm:$0xff] %vm1666, %v2415
      %2448 = vst.msk [vmem:[%s199 + $0x18] sm:$0xff] %vm1666, %v2416
      %2449 = vst.msk [vmem:[%s199 + $0x20] sm:$0xff] %vm1666, %v2417
      %2450 = vst.msk [vmem:[%s199 + $0x28] sm:$0xff] %vm1666, %v2418
      %2451 = vst.msk [vmem:[%s199 + $0x30] sm:$0xff] %vm1666, %v2419
      %2452 = vst.msk [vmem:[%s199 + $0x38] sm:$0xff] %vm1666, %v2420
      %2453 = vst.msk [vmem:[%s199 + $0x40] sm:$0xff] %vm1666, %v2421
      %2454 = vst.msk [vmem:[%s199 + $0x48] sm:$0xff] %vm1666, %v2422
      %2455 = vst.msk [vmem:[%s199 + $0x50] sm:$0xff] %vm1666, %v2423
      %2456 = vst.msk [vmem:[%s199 + $0x58] sm:$0xff] %vm1666, %v2424
      %2457 = vst.msk [vmem:[%s199 + $0x60] sm:$0xff] %vm1666, %v2425
      %2458 = vst.msk [vmem:[%s199 + $0x68] sm:$0xff] %vm1666, %v2426
      %2459 = vst.msk [vmem:[%s199 + $0x70] sm:$0xff] %vm1666, %v2427
      %2460 = vst.msk [vmem:[%s199 + $0x78] sm:$0xff] %vm1666, %v2428
      %2461 = vst.msk [vmem:[%s199 + $0x80] sm:$0xff] %vm1666, %v2429
      %2462 = vst.msk [vmem:[%s199 + $0x88] sm:$0xff] %vm1666, %v2430
      %2463 = vst.msk [vmem:[%s199 + $0x90] sm:$0xff] %vm1666, %v2431
      %2464 = vst.msk [vmem:[%s199 + $0x98] sm:$0xff] %vm1666, %v2432
      %2465 = vst.msk [vmem:[%s199 + $0xa0] sm:$0xff] %vm1666, %v2433
      %2466 = vst.msk [vmem:[%s199 + $0xa8] sm:$0xff] %vm1666, %v2434
      %2467 = vst.msk [vmem:[%s199 + $0xb0] sm:$0xff] %vm1666, %v2435
      %2468 = vst.msk [vmem:[%s199 + $0xb8] sm:$0xff] %vm1666, %v2436
      %2469 = vst.msk [vmem:[%s199 + $0xc0] sm:$0xff] %vm1666, %v2437
      %2470 = vst.msk [vmem:[%s199 + $0xc8] sm:$0xff] %vm1666, %v2438
      %2471 = vst.msk [vmem:[%s199 + $0xd0] sm:$0xff] %vm1666, %v2439
      %2472 = vst.msk [vmem:[%s199 + $0xd8] sm:$0xff] %vm1666, %v2440
      %2473 = vst.msk [vmem:[%s199 + $0xe0] sm:$0xff] %vm1666, %v2441
      %2474 = vst.msk [vmem:[%s199 + $0xe8] sm:$0xff] %vm1666, %v2442
      %2475 = vst.msk [vmem:[%s199 + $0xf0] sm:$0xff] %vm1666, %v2443
      %2476 = vst.msk [vmem:[%s199 + $0xf8] sm:$0xff] %vm1666, %v2444
      %2509 = vrot.lane.b32.xlu0 %v564, 124
      %v2510 = vpop.permute.xlu0 %2509
      %2511 = vrot.lane.b32.xlu0 %v565, 124
      %v2512 = vpop.permute.xlu0 %2511
      %2513 = vrot.lane.b32.xlu0 %v566, 124
      %v2514 = vpop.permute.xlu0 %2513
      %2515 = vrot.lane.b32.xlu0 %v567, 124
      %v2516 = vpop.permute.xlu0 %2515
      %2517 = vrot.lane.b32.xlu0 %v568, 124
      %v2518 = vpop.permute.xlu0 %2517
      %2519 = vrot.lane.b32.xlu0 %v569, 124
      %v2520 = vpop.permute.xlu0 %2519
      %2521 = vrot.lane.b32.xlu0 %v570, 124
      %v2522 = vpop.permute.xlu0 %2521
      %2523 = vrot.lane.b32.xlu0 %v571, 124
      %v2524 = vpop.permute.xlu0 %2523
      %2525 = vrot.lane.b32.xlu0 %v572, 124
      %v2526 = vpop.permute.xlu0 %2525
      %2527 = vrot.lane.b32.xlu0 %v573, 124
      %v2528 = vpop.permute.xlu0 %2527
      %2529 = vrot.lane.b32.xlu0 %v574, 124
      %v2530 = vpop.permute.xlu0 %2529
      %2531 = vrot.lane.b32.xlu0 %v575, 124
      %v2532 = vpop.permute.xlu0 %2531
      %2533 = vrot.lane.b32.xlu0 %v576, 124
      %v2534 = vpop.permute.xlu0 %2533
      %2535 = vrot.lane.b32.xlu0 %v577, 124
      %v2536 = vpop.permute.xlu0 %2535
      %2537 = vrot.lane.b32.xlu0 %v578, 124
      %v2538 = vpop.permute.xlu0 %2537
      %2539 = vrot.lane.b32.xlu0 %v579, 124
      %v2540 = vpop.permute.xlu0 %2539
      %2541 = vrot.lane.b32.xlu0 %v580, 124
      %v2542 = vpop.permute.xlu0 %2541
      %2543 = vrot.lane.b32.xlu0 %v581, 124
      %v2544 = vpop.permute.xlu0 %2543
      %2545 = vrot.lane.b32.xlu0 %v582, 124
      %v2546 = vpop.permute.xlu0 %2545
      %2547 = vrot.lane.b32.xlu0 %v583, 124
      %v2548 = vpop.permute.xlu0 %2547
      %2549 = vrot.lane.b32.xlu0 %v584, 124
      %v2550 = vpop.permute.xlu0 %2549
      %2551 = vrot.lane.b32.xlu0 %v585, 124
      %v2552 = vpop.permute.xlu0 %2551
      %2553 = vrot.lane.b32.xlu0 %v586, 124
      %v2554 = vpop.permute.xlu0 %2553
      %2555 = vrot.lane.b32.xlu0 %v587, 124
      %v2556 = vpop.permute.xlu0 %2555
      %2557 = vrot.lane.b32.xlu0 %v588, 124
      %v2558 = vpop.permute.xlu0 %2557
      %2559 = vrot.lane.b32.xlu0 %v589, 124
      %v2560 = vpop.permute.xlu0 %2559
      %2561 = vrot.lane.b32.xlu0 %v590, 124
      %v2562 = vpop.permute.xlu0 %2561
      %2563 = vrot.lane.b32.xlu0 %v591, 124
      %v2564 = vpop.permute.xlu0 %2563
      %2565 = vrot.lane.b32.xlu0 %v592, 124
      %v2566 = vpop.permute.xlu0 %2565
      %2567 = vrot.lane.b32.xlu0 %v593, 124
      %v2568 = vpop.permute.xlu0 %2567
      %2569 = vrot.lane.b32.xlu0 %v594, 124
      %v2570 = vpop.permute.xlu0 %2569
      %2571 = vrot.lane.b32.xlu0 %v595, 124
      %v2572 = vpop.permute.xlu0 %2571
      %vm2605 = vcmask 64544
      %2606 = vst.msk [vmem:[%s199] sm:$0xff] %vm2605, %v2510
      %2607 = vst.msk [vmem:[%s199 + $0x8] sm:$0xff] %vm2605, %v2512
      %2608 = vst.msk [vmem:[%s199 + $0x10] sm:$0xff] %vm2605, %v2514
      %2609 = vst.msk [vmem:[%s199 + $0x18] sm:$0xff] %vm2605, %v2516
      %2610 = vst.msk [vmem:[%s199 + $0x20] sm:$0xff] %vm2605, %v2518
      %2611 = vst.msk [vmem:[%s199 + $0x28] sm:$0xff] %vm2605, %v2520
      %2612 = vst.msk [vmem:[%s199 + $0x30] sm:$0xff] %vm2605, %v2522
      %2613 = vst.msk [vmem:[%s199 + $0x38] sm:$0xff] %vm2605, %v2524
      %2614 = vst.msk [vmem:[%s199 + $0x40] sm:$0xff] %vm2605, %v2526
      %2615 = vst.msk [vmem:[%s199 + $0x48] sm:$0xff] %vm2605, %v2528
      %2616 = vst.msk [vmem:[%s199 + $0x50] sm:$0xff] %vm2605, %v2530
      %2617 = vst.msk [vmem:[%s199 + $0x58] sm:$0xff] %vm2605, %v2532
      %2618 = vst.msk [vmem:[%s199 + $0x60] sm:$0xff] %vm2605, %v2534
      %2619 = vst.msk [vmem:[%s199 + $0x68] sm:$0xff] %vm2605, %v2536
      %2620 = vst.msk [vmem:[%s199 + $0x70] sm:$0xff] %vm2605, %v2538
      %2621 = vst.msk [vmem:[%s199 + $0x78] sm:$0xff] %vm2605, %v2540
      %2622 = vst.msk [vmem:[%s199 + $0x80] sm:$0xff] %vm2605, %v2542
      %2623 = vst.msk [vmem:[%s199 + $0x88] sm:$0xff] %vm2605, %v2544
      %2624 = vst.msk [vmem:[%s199 + $0x90] sm:$0xff] %vm2605, %v2546
      %2625 = vst.msk [vmem:[%s199 + $0x98] sm:$0xff] %vm2605, %v2548
      %2626 = vst.msk [vmem:[%s199 + $0xa0] sm:$0xff] %vm2605, %v2550
      %2627 = vst.msk [vmem:[%s199 + $0xa8] sm:$0xff] %vm2605, %v2552
      %2628 = vst.msk [vmem:[%s199 + $0xb0] sm:$0xff] %vm2605, %v2554
      %2629 = vst.msk [vmem:[%s199 + $0xb8] sm:$0xff] %vm2605, %v2556
      %2630 = vst.msk [vmem:[%s199 + $0xc0] sm:$0xff] %vm2605, %v2558
      %2631 = vst.msk [vmem:[%s199 + $0xc8] sm:$0xff] %vm2605, %v2560
      %2632 = vst.msk [vmem:[%s199 + $0xd0] sm:$0xff] %vm2605, %v2562
      %2633 = vst.msk [vmem:[%s199 + $0xd8] sm:$0xff] %vm2605, %v2564
      %2634 = vst.msk [vmem:[%s199 + $0xe0] sm:$0xff] %vm2605, %v2566
      %2635 = vst.msk [vmem:[%s199 + $0xe8] sm:$0xff] %vm2605, %v2568
      %2636 = vst.msk [vmem:[%s199 + $0xf0] sm:$0xff] %vm2605, %v2570
      %2637 = vst.msk [vmem:[%s199 + $0xf8] sm:$0xff] %vm2605, %v2572
      %s2638 = smul.u32 32, %s15
      %p2639 = scmp.lt.s32.totalorder %s2638, 63
      %s2640 = scalar_select %p2639, %s2638, 63
      %s2641 = smul.addr %s2640, 8
      %s2642 = scalar_lea.vmem %s4, %s2641
      // Predicated region
      $region37: #{mixpool_forward.1} parent=35 // pred_check
        %p2643 = pneg %p122
      $region38: #{mixpool_forward.1} parent=35 // pred_check_branch
        %2645 = sbr.rel (%p2643) target = $region40
      $region39: #{mixpool_forward.1} parent=35 // pred_region
        %s2646 = smul.u32 32, %s15
      $region40: #{mixpool_forward.1} parent=35 // pred_fallthru
        _
    $region36: #{mixpool_forward.1} parent=5 // pred_fallthru
      _
    %p2647 = scmp.le.s32.totalorder 2, %s10
    // Predicated region
    $region41: #{mixpool_forward.1} parent=5 // pred_check
      %p2648 = pneg %p2647
    $region42: #{mixpool_forward.1} parent=5 // pred_check_branch
      %2650 = sbr.rel (%p2648) target = $region44
    $region43: #{mixpool_forward.1} parent=5 // pred_region
      %s2651 = ssub.s32 %s10, 2
      // Predicated region
      $region45: #{mixpool_forward.1} parent=43 // pred_check
        %p2652 = pneg %p128
      $region46: #{mixpool_forward.1} parent=43 // pred_check_branch
        %2654 = sbr.rel (%p2652) target = $region48
      $region47: #{mixpool_forward.1} parent=43 // pred_region
        %s2655 = smul.u32 32, %s16
        %p2656 = scmp.lt.s32.totalorder %s2655, 63
        %s2657 = scalar_select %p2656, %s2655, 63
        %s2658 = smul.addr %s2657, 8
        %s2659 = scalar_lea.vmem %s4, %s2658
      $region48: #{mixpool_forward.1} parent=43 // pred_fallthru
        _
    $region44: #{mixpool_forward.1} parent=5 // pred_fallthru
      _
  $region6: #{mixpool_forward.1} parent=0 // loop_footer
    %s14 = sadd.s32 1, %s10
  $region7: #{mixpool_forward.1} parent=0 // loop_footer_branch
    %9 = sbr.rel target = $region3
  $region8: #{mixpool_forward.1} parent=0 // loop_exit
    _

</llo_original>
